<compile_context>
chip_gen: v7x
topology: tpu7x:2x2x1
jax: 0.10.0
libtpu: 0.0.40
codegen_flags: <defaults>
</compile_context>

<pallas_src>
import math

import jax
import jax.numpy as jnp
from jax import lax
from jax.experimental import pallas as pl
from jax.experimental.pallas import tpu as pltpu


def _offset_union(pads):
    """Union of (dy, dx) tap offsets over all branches + which branches cover each."""
    p_max = max(pads)
    struct = []
    for dy in range(-p_max, p_max + 1):
        for dx in range(-p_max, p_max + 1):
            branches = tuple(i for i, p in enumerate(pads)
                             if abs(dy) <= p and abs(dx) <= p)
            if branches:
                struct.append(((dy, dx), branches))
    return tuple(struct)


def _make_sknet_kernel(M, offsets_struct, H, W, use_planes):
    HW = H * W

    def kernel(w_ref, bias_ref, fc_wT_ref, fc_b_ref, fcs_wT_ref, fcs_b_ref,
               x_ref, o_ref):
        x = x_ref[...].astype(jnp.float32)                      # (Bt, C, HW)
        C = x.shape[1]

        if not use_planes:
            # Fallback: boundary masks computed in-kernel, once per offset.
            pos = lax.broadcasted_iota(jnp.int32, (1, 1, HW), 2)
            row = pos // W
            col = pos - row * W

        # --- shared tap loop: one roll per unique offset, accumulate into every
        # branch that covers it (weights are BN-folded, masks baked into planes).
        accs = [jnp.zeros_like(x) for _ in range(M)]
        p_idx = 0
        for (dy, dx), branches in offsets_struct:
            off = dy * W + dx
            rolled = pltpu.roll(x, shift=(-off) % HW, axis=2) if off else x
            if (not use_planes) and (dy != 0 or dx != 0):
                valid = ((row + dy >= 0) & (row + dy < H) &
                         (col + dx >= 0) & (col + dx < W))
                rolled = jnp.where(valid, rolled, 0.0)
            for b_i in branches:
                w_t = w_ref[p_idx]                              # (C, HW) or (C, 1)
                accs[b_i] = accs[b_i] + rolled * w_t[None, :, :]
                p_idx += 1

        # --- BN-folded bias + ReLU per branch ------------------------------
        feas = [jnp.maximum(accs[i] + bias_ref[i][None, :, :], 0.0)
                for i in range(M)]

        # --- fea_U = sum_i fea_i ; global average pool ----------------------
        fea_U = feas[0]
        for i in range(1, M):
            fea_U = fea_U + feas[i]
        fea_s = jnp.mean(fea_U, axis=2)                         # (Bt, C)

        # --- squeeze FC + fused excite FCs (one matmul) + softmax -----------
        fea_z = (jnp.dot(fea_s, fc_wT_ref[...],
                         preferred_element_type=jnp.float32) + fc_b_ref[...])
        logits_all = (jnp.dot(fea_z, fcs_wT_ref[...],
                              preferred_element_type=jnp.float32)
                      + fcs_b_ref[...])                         # (Bt, M*C)
        logits = [logits_all[:, i * C:(i + 1) * C] for i in range(M)]

        m = logits[0]
        for i in range(1, M):
            m = jnp.maximum(m, logits[i])
        exps = [jnp.exp(l - m) for l in logits]
        denom = exps[0]
        for i in range(1, M):
            denom = denom + exps[i]
        # Exact divide kept on purpose: pl.reciprocal(approx=True) would move
        # this to the EUP but its ~2^-12 relative error eats the 1e-4 accuracy
        # budget, and the tensor is only (Bt, C) so the win is negligible.
        inv = 1.0 / denom

        # --- attention-weighted branch sum -----------------------------------
        out = feas[0] * (exps[0] * inv)[:, :, None]
        for i in range(1, M):
            out = out + feas[i] * (exps[i] * inv)[:, :, None]
        o_ref[...] = out.astype(o_ref.dtype)

    return kernel


def _tpu_vmem_capacity():
    cap = 64 << 20                       # conservative default (v7x per-TC VMEM)
    try:
        info = pltpu.get_tpu_info()
        cap = int(getattr(info, "vmem_capacity_bytes", cap)) or cap
    except Exception:
        pass
    return cap


def _num_tensorcores():
    try:
        dev = jax.devices()[0]
        n = int(getattr(dev, "num_cores", 0) or 0)
        if n > 1:
            return n
        kind = str(getattr(dev, "device_kind", "")).lower()
        if ("v4" in kind) or ("v5p" in kind) or ("7" in kind):
            return 2
    except Exception:
        pass
    return 1


def _pick_batch_block(B, bytes_per_image, target_bytes, multi_core,
                      min_split_bytes=256 << 10):
    """Largest divisor of B giving ~target-sized blocks.  Only force >=2 grid
    steps on multi-TensorCore chips, and only if each resulting block still
    amortizes the ~0.35us per-step overhead (>= min_split_bytes)."""
    bt = max(1, min(B, target_bytes // max(1, bytes_per_image)))
    while B % bt:
        bt -= 1
    if multi_core and B > 1 and B // bt < 2:
        half = max(1, bt // 2)
        while B % half:
            half -= 1
        if half < bt and half * bytes_per_image >= min_split_bytes:
            bt = half
    return bt


def sknet_forward(x, params, *, eps=1e-5, plane_budget_bytes=8 << 20):
    """SKnet forward (eval-mode BatchNorm, folded into the convs).

    x: (B, C, H, W).  The HBM boundary dtype follows x: bf16 is accepted (and
    recommended on v6e/v7x to halve streaming traffic); in-kernel accumulation
    is always f32, so expect ~1e-2-level agreement vs an f32 reference on the
    bf16 path rather than 1e-4.
    """
    B, C, H, W = x.shape
    HW = H * W
    conv_ws = params["conv_w"]
    M = len(conv_ws)
    # TODO(synk): only depthwise (groups == features) is implemented in-kernel;
    # general grouped conv (channels-per-group > 1) would need a per-group
    # channel gather/matmul and is not expressible in this tap-plane form.
    assert all(int(w.shape[1]) == 1 for w in conv_ws), \
        "kernel supports groups == features (depthwise) on every branch only"

    ksizes = [int(w.shape[-1]) for w in conv_ws]
    pads = [k // 2 for k in ksizes]
    # Roll+mask zero-padding needs every tap offset to stay inside one image.
    assert max(pads) * (W + 1) < HW, "feature map too small for roll-based taps"

    offsets_struct = _offset_union(pads)
    n_pairs = sum(len(bs) for _, bs in offsets_struct)      # == sum_i k_i**2

    # Fold BatchNorm (running stats) into conv weights / bias.
    w_effs, b_effs = [], []
    for i in range(M):
        scale = params["bn_gamma"][i] / jnp.sqrt(params["bn_var"][i] + eps)
        shift = params["bn_beta"][i] - params["bn_mean"][i] * scale
        k = ksizes[i]
        w_effs.append((conv_ws[i] * scale[:, None, None, None]).reshape(C, k, k))
        b_effs.append(params["conv_b"][i] * scale + shift)

    # Precomputed masked weight planes (lane-dense) when they fit a small VMEM
    # budget: removes the in-kernel select and the (C,1)->(C,HW) splat.
    use_planes = n_pairs * C * HW * 4 <= plane_budget_bytes
    pos = jnp.arange(HW, dtype=jnp.int32)
    row = pos // W
    col = pos - row * W
    pieces = []
    for (dy, dx), branches in offsets_struct:
        if use_planes:
            valid = ((row + dy >= 0) & (row + dy < H) &
                     (col + dx >= 0) & (col + dx < W)).astype(jnp.float32)
        for b_i in branches:
            w_col = w_effs[b_i][:, dy + pads[b_i], dx + pads[b_i]]   # (C,)
            if use_planes:
                pieces.append(w_col[:, None] * valid[None, :])       # (C, HW)
            else:
                pieces.append(w_col[:, None])                        # (C, 1)
    w_packed = jnp.stack(pieces).astype(jnp.float32)   # (P, C, HW) or (P, C, 1)
    bias_packed = jnp.stack([b[:, None] for b in b_effs]).astype(jnp.float32)  # (M,C,1)

    d = int(params["fc_w"].shape[0])
    fc_wT = jnp.transpose(params["fc_w"], (1, 0)).astype(jnp.float32)        # (C, d)
    fc_b = params["fc_b"].astype(jnp.float32)[None, :]                       # (1, d)
    # Fuse the M excite FCs into a single (d, M*C) matmul (one MXU push/pop).
    fcs_wT = jnp.concatenate(
        [jnp.transpose(w, (1, 0)) for w in params["fcs_w"]], axis=1
    ).astype(jnp.float32)                                                    # (d, M*C)
    fcs_b = jnp.concatenate(list(params["fcs_b"]), axis=0
                            ).astype(jnp.float32)[None, :]                   # (1, M*C)

    x_flat = x.reshape(B, C, HW)
    kernel_inputs = [w_packed, bias_packed, fc_wT, fc_b, fcs_wT, fcs_b, x_flat]

    # --- generation-aware block / VMEM sizing --------------------------------
    vmem_cap = _tpu_vmem_capacity()
    n_cores = _num_tensorcores()
    bytes_per_image = C * HW * x.dtype.itemsize
    # v5e/v6e (128 MiB VMEM): big blocks amortize the per-grid-step overhead;
    # v7x (64 MiB per TC): keep blocks ~2 MiB so the (M+3) f32 live tensors fit.
    target_bytes = (8 << 20) if vmem_cap >= (96 << 20) else (2 << 20)
    bt = _pick_batch_block(B, bytes_per_image, target_bytes, n_cores > 1)
    grid = (B // bt,)

    param_bytes = sum(int(a.size) * a.dtype.itemsize for a in kernel_inputs[:-1])
    block_bytes_io = bt * bytes_per_image
    block_bytes_f32 = bt * C * HW * 4
    # Live set: double-buffered in+out blocks, (x + M feas + fea_U + out) f32
    # intermediates, double-buffered params (kept default-buffered; ~2 MiB here
    # — single-buffering them via pipeline_mode is extra headroom if needed).
    vmem_need = (4 * block_bytes_io + (M + 3) * block_bytes_f32
                 + 2 * param_bytes + (1 << 20))
    vmem_limit = int(min(max(vmem_need, 16 << 20), min(48 << 20, vmem_cap // 2)))

    cost = pl.CostEstimate(
        flops=int(2 * B * C * HW * n_pairs + (M + 2) * B * C * HW
                  + 2 * B * C * d + 2 * B * d * M * C),
        transcendentals=int(M * B * C),
        bytes_accessed=int(2 * B * C * HW * x.dtype.itemsize + param_bytes),
    )

    w_block = (n_pairs, C, HW) if use_planes else (n_pairs, C, 1)
    in_specs = [
        pl.BlockSpec(w_block, lambda b: (0, 0, 0)),
        pl.BlockSpec((M, C, 1), lambda b: (0, 0, 0)),
        pl.BlockSpec((C, d), lambda b: (0, 0)),
        pl.BlockSpec((1, d), lambda b: (0, 0)),
        pl.BlockSpec((d, M * C), lambda b: (0, 0)),
        pl.BlockSpec((1, M * C), lambda b: (0, 0)),
        pl.BlockSpec((bt, C, HW), lambda b: (b, 0, 0)),
    ]
    out_specs = pl.BlockSpec((bt, C, HW), lambda b: (b, 0, 0))

    # TODO(synk): at production SKNet sizes (HW ~ 3136, C >= 64) the M live
    # branch outputs no longer fit per-TC VMEM on v7x; restructure as a
    # two-pass (gate-then-recompute over spatial tiles) kernel in that regime.
    out = pl.pallas_call(
        _make_sknet_kernel(M, offsets_struct, H, W, use_planes),
        out_shape=jax.ShapeDtypeStruct((B, C, HW), x.dtype),
        grid=grid,
        in_specs=in_specs,
        out_specs=out_specs,
        compiler_params=pltpu.CompilerParams(
            dimension_semantics=("parallel",),
            vmem_limit_bytes=vmem_limit),
        cost_estimate=cost,
    )(*kernel_inputs)
    return out.reshape(B, C, H, W)


def sknet_reference(x, params, *, eps=1e-5):
    """Pure-JAX reference matching the PyTorch SKnet forward (eval-mode BN)."""
    B, C, H, W = x.shape
    M = len(params["conv_w"])
    G = C // params["conv_w"][0].shape[1]
    feas = []
    for i in range(M):
        w = params["conv_w"][i]
        k = w.shape[-1]
        pad = k // 2
        y = lax.conv_general_dilated(
            x, w, window_strides=(1, 1),
            padding=[(pad, pad), (pad, pad)],
            dimension_numbers=("NCHW", "OIHW", "NCHW"),
            feature_group_count=G)
        y = y + params["conv_b"][i][None, :, None, None]
        scale = params["bn_gamma"][i] / jnp.sqrt(params["bn_var"][i] + eps)
        y = ((y - params["bn_mean"][i][None, :, None, None])
             * scale[None, :, None, None]
             + params["bn_beta"][i][None, :, None, None])
        feas.append(jnp.maximum(y, 0.0))
    fea_U = sum(feas)
    fea_s = fea_U.mean(axis=(2, 3))                           # (B, C)
    fea_z = fea_s @ params["fc_w"].T + params["fc_b"]         # (B, d)
    logits = jnp.stack([fea_z @ params["fcs_w"][i].T + params["fcs_b"][i]
                        for i in range(M)], axis=1)           # (B, M, C)
    att = jax.nn.softmax(logits, axis=1)
    return sum(feas[i] * att[:, i, :, None, None] for i in range(M))


if __name__ == "__main__":
    # SKnet hyper-params: features=32, G=32 (depthwise), r=16, L=32, M=2
    features, G, r, L, M = 32, 32, 16, 32, 2
    d = max(features // r, L)                                 # 32
    B, H, W = 2, 16, 16

    key = jax.random.PRNGKey(0)
    ki = iter(jax.random.split(key, 6 * M + 2 + 2 * M + 1))

    params = {"conv_w": [], "conv_b": [], "bn_gamma": [], "bn_beta": [],
              "bn_mean": [], "bn_var": [], "fcs_w": [], "fcs_b": []}
    for i in range(M):
        k = 3 + 2 * i
        fan_in = (features // G) * k * k
        bound = 1.0 / math.sqrt(fan_in)
        params["conv_w"].append(jax.random.uniform(
            next(ki), (features, features // G, k, k), jnp.float32, -bound, bound))
        params["conv_b"].append(jax.random.uniform(
            next(ki), (features,), jnp.float32, -bound, bound))
        params["bn_gamma"].append(jax.random.uniform(
            next(ki), (features,), jnp.float32, 0.8, 1.2))
        params["bn_beta"].append(jax.random.uniform(
            next(ki), (features,), jnp.float32, -0.1, 0.1))
        params["bn_mean"].append(jax.random.uniform(
            next(ki), (features,), jnp.float32, -0.1, 0.1))
        params["bn_var"].append(jax.random.uniform(
            next(ki), (features,), jnp.float32, 0.5, 1.5))
    bound = 1.0 / math.sqrt(features)
    params["fc_w"] = jax.random.uniform(next(ki), (d, features), jnp.float32, -bound, bound)
    params["fc_b"] = jax.random.uniform(next(ki), (d,), jnp.float32, -bound, bound)
    bound = 1.0 / math.sqrt(d)
    for i in range(M):
        params["fcs_w"].append(jax.random.uniform(
            next(ki), (features, d), jnp.float32, -bound, bound))
        params["fcs_b"].append(jax.random.uniform(
            next(ki), (features,), jnp.float32, -bound, bound))

    x = jax.random.normal(next(ki), (B, features, H, W), dtype=jnp.float32)

    out = jax.block_until_ready(sknet_forward(x, params))
    ref = sknet_reference(x, params)
    assert out.shape == (B, features, H, W)
    err = float(jnp.max(jnp.abs(out - ref)))
    assert jnp.allclose(out, ref, atol=1e-4, rtol=1e-4), f"mismatch vs reference: {err}"
    print("KERNEL_OK")
</pallas_src>

<mosaic_0001>
module attributes {stable_mosaic.version = 11 : i64} {
  func.func @kernel(%arg0: i32, %arg1: memref<34x32x256xf32, #tpu.memory_space<vmem>>, %arg2: memref<2x32x1xf32, #tpu.memory_space<vmem>>, %arg3: memref<32x32xf32, #tpu.memory_space<vmem>>, %arg4: memref<1x32xf32, #tpu.memory_space<vmem>>, %arg5: memref<32x64xf32, #tpu.memory_space<vmem>>, %arg6: memref<1x64xf32, #tpu.memory_space<vmem>>, %arg7: memref<2x32x256xf32, #tpu.memory_space<vmem>>, %arg8: memref<2x32x256xf32, #tpu.memory_space<vmem>>) attributes {dimension_semantics = [#tpu.dimension_semantics<parallel>], iteration_bounds = array<i64: 1>, scalar_prefetch = 0 : i64, scratch_operands = 0 : i64, tpu.core_type = #tpu.core_type<tc>, window_params = [{pipeline_mode = #tpu.pipeline_mode<synchronous>, transform_indices = @transform_0, window_bounds = array<i64: 34, 32, 256>}, {pipeline_mode = #tpu.pipeline_mode<synchronous>, transform_indices = @transform_1, window_bounds = array<i64: 2, 32, 1>}, {pipeline_mode = #tpu.pipeline_mode<synchronous>, transform_indices = @transform_2, window_bounds = array<i64: 32, 32>}, {pipeline_mode = #tpu.pipeline_mode<synchronous>, transform_indices = @transform_3, window_bounds = array<i64: 1, 32>}, {pipeline_mode = #tpu.pipeline_mode<synchronous>, transform_indices = @transform_4, window_bounds = array<i64: 32, 64>}, {pipeline_mode = #tpu.pipeline_mode<synchronous>, transform_indices = @transform_5, window_bounds = array<i64: 1, 64>}, {transform_indices = @transform_6, window_bounds = array<i64: 2, 32, 256>}, {transform_indices = @transform_7, window_bounds = array<i64: 2, 32, 256>}]} {
    %c0 = arith.constant 0 : index
    %c0_0 = arith.constant 0 : index
    %c0_1 = arith.constant 0 : index
    %0 = vector.load %arg7[%c0, %c0_0, %c0_1] : memref<2x32x256xf32, #tpu.memory_space<vmem>>, vector<2x32x256xf32>
    %cst = arith.constant 0.000000e+00 : f32
    %1 = vector.broadcast %cst : f32 to vector<2x32x256xf32>
    %cst_2 = arith.constant 0.000000e+00 : f32
    %2 = vector.broadcast %cst_2 : f32 to vector<2x32x256xf32>
    %c34_i32 = arith.constant 34 : i32
    %3 = tpu.dynamic_rotate %0 by %c34_i32 dim 2 : vector<2x32x256xf32>, i32 -> vector<2x32x256xf32>
    %c0_3 = arith.constant 0 : index
    %c0_4 = arith.constant 0 : index
    %c0_5 = arith.constant 0 : index
    %4 = vector.load %arg1[%c0_3, %c0_4, %c0_5] : memref<34x32x256xf32, #tpu.memory_space<vmem>>, vector<1x32x256xf32>
    %5 = vector.shape_cast %4 : vector<1x32x256xf32> to vector<32x256xf32>
    %6 = vector.shape_cast %5 : vector<32x256xf32> to vector<1x32x256xf32>
    %7 = vector.broadcast %6 : vector<1x32x256xf32> to vector<2x32x256xf32>
    %8 = arith.mulf %3, %7 : vector<2x32x256xf32>
    %9 = arith.addf %2, %8 : vector<2x32x256xf32>
    %c33_i32 = arith.constant 33 : i32
    %10 = tpu.dynamic_rotate %0 by %c33_i32 dim 2 : vector<2x32x256xf32>, i32 -> vector<2x32x256xf32>
    %c1 = arith.constant 1 : index
    %c0_6 = arith.constant 0 : index
    %c0_7 = arith.constant 0 : index
    %11 = vector.load %arg1[%c1, %c0_6, %c0_7] : memref<34x32x256xf32, #tpu.memory_space<vmem>>, vector<1x32x256xf32>
    %12 = vector.shape_cast %11 : vector<1x32x256xf32> to vector<32x256xf32>
    %13 = vector.shape_cast %12 : vector<32x256xf32> to vector<1x32x256xf32>
    %14 = vector.broadcast %13 : vector<1x32x256xf32> to vector<2x32x256xf32>
    %15 = arith.mulf %10, %14 : vector<2x32x256xf32>
    %16 = arith.addf %9, %15 : vector<2x32x256xf32>
    %c32_i32 = arith.constant 32 : i32
    %17 = tpu.dynamic_rotate %0 by %c32_i32 dim 2 : vector<2x32x256xf32>, i32 -> vector<2x32x256xf32>
    %c2 = arith.constant 2 : index
    %c0_8 = arith.constant 0 : index
    %c0_9 = arith.constant 0 : index
    %18 = vector.load %arg1[%c2, %c0_8, %c0_9] : memref<34x32x256xf32, #tpu.memory_space<vmem>>, vector<1x32x256xf32>
    %19 = vector.shape_cast %18 : vector<1x32x256xf32> to vector<32x256xf32>
    %20 = vector.shape_cast %19 : vector<32x256xf32> to vector<1x32x256xf32>
    %21 = vector.broadcast %20 : vector<1x32x256xf32> to vector<2x32x256xf32>
    %22 = arith.mulf %17, %21 : vector<2x32x256xf32>
    %23 = arith.addf %16, %22 : vector<2x32x256xf32>
    %c31_i32 = arith.constant 31 : i32
    %24 = tpu.dynamic_rotate %0 by %c31_i32 dim 2 : vector<2x32x256xf32>, i32 -> vector<2x32x256xf32>
    %c3 = arith.constant 3 : index
    %c0_10 = arith.constant 0 : index
    %c0_11 = arith.constant 0 : index
    %25 = vector.load %arg1[%c3, %c0_10, %c0_11] : memref<34x32x256xf32, #tpu.memory_space<vmem>>, vector<1x32x256xf32>
    %26 = vector.shape_cast %25 : vector<1x32x256xf32> to vector<32x256xf32>
    %27 = vector.shape_cast %26 : vector<32x256xf32> to vector<1x32x256xf32>
    %28 = vector.broadcast %27 : vector<1x32x256xf32> to vector<2x32x256xf32>
    %29 = arith.mulf %24, %28 : vector<2x32x256xf32>
    %30 = arith.addf %23, %29 : vector<2x32x256xf32>
    %c30_i32 = arith.constant 30 : i32
    %31 = tpu.dynamic_rotate %0 by %c30_i32 dim 2 : vector<2x32x256xf32>, i32 -> vector<2x32x256xf32>
    %c4 = arith.constant 4 : index
    %c0_12 = arith.constant 0 : index
    %c0_13 = arith.constant 0 : index
    %32 = vector.load %arg1[%c4, %c0_12, %c0_13] : memref<34x32x256xf32, #tpu.memory_space<vmem>>, vector<1x32x256xf32>
    %33 = vector.shape_cast %32 : vector<1x32x256xf32> to vector<32x256xf32>
    %34 = vector.shape_cast %33 : vector<32x256xf32> to vector<1x32x256xf32>
    %35 = vector.broadcast %34 : vector<1x32x256xf32> to vector<2x32x256xf32>
    %36 = arith.mulf %31, %35 : vector<2x32x256xf32>
    %37 = arith.addf %30, %36 : vector<2x32x256xf32>
    %c18_i32 = arith.constant 18 : i32
    %38 = tpu.dynamic_rotate %0 by %c18_i32 dim 2 : vector<2x32x256xf32>, i32 -> vector<2x32x256xf32>
    %c5 = arith.constant 5 : index
    %c0_14 = arith.constant 0 : index
    %c0_15 = arith.constant 0 : index
    %39 = vector.load %arg1[%c5, %c0_14, %c0_15] : memref<34x32x256xf32, #tpu.memory_space<vmem>>, vector<1x32x256xf32>
    %40 = vector.shape_cast %39 : vector<1x32x256xf32> to vector<32x256xf32>
    %41 = vector.shape_cast %40 : vector<32x256xf32> to vector<1x32x256xf32>
    %42 = vector.broadcast %41 : vector<1x32x256xf32> to vector<2x32x256xf32>
    %43 = arith.mulf %38, %42 : vector<2x32x256xf32>
    %44 = arith.addf %37, %43 : vector<2x32x256xf32>
    %c17_i32 = arith.constant 17 : i32
    %45 = tpu.dynamic_rotate %0 by %c17_i32 dim 2 : vector<2x32x256xf32>, i32 -> vector<2x32x256xf32>
    %c6 = arith.constant 6 : index
    %c0_16 = arith.constant 0 : index
    %c0_17 = arith.constant 0 : index
    %46 = vector.load %arg1[%c6, %c0_16, %c0_17] : memref<34x32x256xf32, #tpu.memory_space<vmem>>, vector<1x32x256xf32>
    %47 = vector.shape_cast %46 : vector<1x32x256xf32> to vector<32x256xf32>
    %48 = vector.shape_cast %47 : vector<32x256xf32> to vector<1x32x256xf32>
    %49 = vector.broadcast %48 : vector<1x32x256xf32> to vector<2x32x256xf32>
    %50 = arith.mulf %45, %49 : vector<2x32x256xf32>
    %51 = arith.addf %1, %50 : vector<2x32x256xf32>
    %c7 = arith.constant 7 : index
    %c0_18 = arith.constant 0 : index
    %c0_19 = arith.constant 0 : index
    %52 = vector.load %arg1[%c7, %c0_18, %c0_19] : memref<34x32x256xf32, #tpu.memory_space<vmem>>, vector<1x32x256xf32>
    %53 = vector.shape_cast %52 : vector<1x32x256xf32> to vector<32x256xf32>
    %54 = vector.shape_cast %53 : vector<32x256xf32> to vector<1x32x256xf32>
    %55 = vector.broadcast %54 : vector<1x32x256xf32> to vector<2x32x256xf32>
    %56 = arith.mulf %45, %55 : vector<2x32x256xf32>
    %57 = arith.addf %44, %56 : vector<2x32x256xf32>
    %c16_i32 = arith.constant 16 : i32
    %58 = tpu.dynamic_rotate %0 by %c16_i32 dim 2 : vector<2x32x256xf32>, i32 -> vector<2x32x256xf32>
    %c8 = arith.constant 8 : index
    %c0_20 = arith.constant 0 : index
    %c0_21 = arith.constant 0 : index
    %59 = vector.load %arg1[%c8, %c0_20, %c0_21] : memref<34x32x256xf32, #tpu.memory_space<vmem>>, vector<1x32x256xf32>
    %60 = vector.shape_cast %59 : vector<1x32x256xf32> to vector<32x256xf32>
    %61 = vector.shape_cast %60 : vector<32x256xf32> to vector<1x32x256xf32>
    %62 = vector.broadcast %61 : vector<1x32x256xf32> to vector<2x32x256xf32>
    %63 = arith.mulf %58, %62 : vector<2x32x256xf32>
    %64 = arith.addf %51, %63 : vector<2x32x256xf32>
    %c9 = arith.constant 9 : index
    %c0_22 = arith.constant 0 : index
    %c0_23 = arith.constant 0 : index
    %65 = vector.load %arg1[%c9, %c0_22, %c0_23] : memref<34x32x256xf32, #tpu.memory_space<vmem>>, vector<1x32x256xf32>
    %66 = vector.shape_cast %65 : vector<1x32x256xf32> to vector<32x256xf32>
    %67 = vector.shape_cast %66 : vector<32x256xf32> to vector<1x32x256xf32>
    %68 = vector.broadcast %67 : vector<1x32x256xf32> to vector<2x32x256xf32>
    %69 = arith.mulf %58, %68 : vector<2x32x256xf32>
    %70 = arith.addf %57, %69 : vector<2x32x256xf32>
    %c15_i32 = arith.constant 15 : i32
    %71 = tpu.dynamic_rotate %0 by %c15_i32 dim 2 : vector<2x32x256xf32>, i32 -> vector<2x32x256xf32>
    %c10 = arith.constant 10 : index
    %c0_24 = arith.constant 0 : index
    %c0_25 = arith.constant 0 : index
    %72 = vector.load %arg1[%c10, %c0_24, %c0_25] : memref<34x32x256xf32, #tpu.memory_space<vmem>>, vector<1x32x256xf32>
    %73 = vector.shape_cast %72 : vector<1x32x256xf32> to vector<32x256xf32>
    %74 = vector.shape_cast %73 : vector<32x256xf32> to vector<1x32x256xf32>
    %75 = vector.broadcast %74 : vector<1x32x256xf32> to vector<2x32x256xf32>
    %76 = arith.mulf %71, %75 : vector<2x32x256xf32>
    %77 = arith.addf %64, %76 : vector<2x32x256xf32>
    %c11 = arith.constant 11 : index
    %c0_26 = arith.constant 0 : index
    %c0_27 = arith.constant 0 : index
    %78 = vector.load %arg1[%c11, %c0_26, %c0_27] : memref<34x32x256xf32, #tpu.memory_space<vmem>>, vector<1x32x256xf32>
    %79 = vector.shape_cast %78 : vector<1x32x256xf32> to vector<32x256xf32>
    %80 = vector.shape_cast %79 : vector<32x256xf32> to vector<1x32x256xf32>
    %81 = vector.broadcast %80 : vector<1x32x256xf32> to vector<2x32x256xf32>
    %82 = arith.mulf %71, %81 : vector<2x32x256xf32>
    %83 = arith.addf %70, %82 : vector<2x32x256xf32>
    %c14_i32 = arith.constant 14 : i32
    %84 = tpu.dynamic_rotate %0 by %c14_i32 dim 2 : vector<2x32x256xf32>, i32 -> vector<2x32x256xf32>
    %c12 = arith.constant 12 : index
    %c0_28 = arith.constant 0 : index
    %c0_29 = arith.constant 0 : index
    %85 = vector.load %arg1[%c12, %c0_28, %c0_29] : memref<34x32x256xf32, #tpu.memory_space<vmem>>, vector<1x32x256xf32>
    %86 = vector.shape_cast %85 : vector<1x32x256xf32> to vector<32x256xf32>
    %87 = vector.shape_cast %86 : vector<32x256xf32> to vector<1x32x256xf32>
    %88 = vector.broadcast %87 : vector<1x32x256xf32> to vector<2x32x256xf32>
    %89 = arith.mulf %84, %88 : vector<2x32x256xf32>
    %90 = arith.addf %83, %89 : vector<2x32x256xf32>
    %c2_i32 = arith.constant 2 : i32
    %91 = tpu.dynamic_rotate %0 by %c2_i32 dim 2 : vector<2x32x256xf32>, i32 -> vector<2x32x256xf32>
    %c13 = arith.constant 13 : index
    %c0_30 = arith.constant 0 : index
    %c0_31 = arith.constant 0 : index
    %92 = vector.load %arg1[%c13, %c0_30, %c0_31] : memref<34x32x256xf32, #tpu.memory_space<vmem>>, vector<1x32x256xf32>
    %93 = vector.shape_cast %92 : vector<1x32x256xf32> to vector<32x256xf32>
    %94 = vector.shape_cast %93 : vector<32x256xf32> to vector<1x32x256xf32>
    %95 = vector.broadcast %94 : vector<1x32x256xf32> to vector<2x32x256xf32>
    %96 = arith.mulf %91, %95 : vector<2x32x256xf32>
    %97 = arith.addf %90, %96 : vector<2x32x256xf32>
    %c1_i32 = arith.constant 1 : i32
    %98 = tpu.dynamic_rotate %0 by %c1_i32 dim 2 : vector<2x32x256xf32>, i32 -> vector<2x32x256xf32>
    %c14 = arith.constant 14 : index
    %c0_32 = arith.constant 0 : index
    %c0_33 = arith.constant 0 : index
    %99 = vector.load %arg1[%c14, %c0_32, %c0_33] : memref<34x32x256xf32, #tpu.memory_space<vmem>>, vector<1x32x256xf32>
    %100 = vector.shape_cast %99 : vector<1x32x256xf32> to vector<32x256xf32>
    %101 = vector.shape_cast %100 : vector<32x256xf32> to vector<1x32x256xf32>
    %102 = vector.broadcast %101 : vector<1x32x256xf32> to vector<2x32x256xf32>
    %103 = arith.mulf %98, %102 : vector<2x32x256xf32>
    %104 = arith.addf %77, %103 : vector<2x32x256xf32>
    %c15 = arith.constant 15 : index
    %c0_34 = arith.constant 0 : index
    %c0_35 = arith.constant 0 : index
    %105 = vector.load %arg1[%c15, %c0_34, %c0_35] : memref<34x32x256xf32, #tpu.memory_space<vmem>>, vector<1x32x256xf32>
    %106 = vector.shape_cast %105 : vector<1x32x256xf32> to vector<32x256xf32>
    %107 = vector.shape_cast %106 : vector<32x256xf32> to vector<1x32x256xf32>
    %108 = vector.broadcast %107 : vector<1x32x256xf32> to vector<2x32x256xf32>
    %109 = arith.mulf %98, %108 : vector<2x32x256xf32>
    %110 = arith.addf %97, %109 : vector<2x32x256xf32>
    %c16 = arith.constant 16 : index
    %c0_36 = arith.constant 0 : index
    %c0_37 = arith.constant 0 : index
    %111 = vector.load %arg1[%c16, %c0_36, %c0_37] : memref<34x32x256xf32, #tpu.memory_space<vmem>>, vector<1x32x256xf32>
    %112 = vector.shape_cast %111 : vector<1x32x256xf32> to vector<32x256xf32>
    %113 = vector.shape_cast %112 : vector<32x256xf32> to vector<1x32x256xf32>
    %114 = vector.broadcast %113 : vector<1x32x256xf32> to vector<2x32x256xf32>
    %115 = arith.mulf %0, %114 : vector<2x32x256xf32>
    %116 = arith.addf %104, %115 : vector<2x32x256xf32>
    %c17 = arith.constant 17 : index
    %c0_38 = arith.constant 0 : index
    %c0_39 = arith.constant 0 : index
    %117 = vector.load %arg1[%c17, %c0_38, %c0_39] : memref<34x32x256xf32, #tpu.memory_space<vmem>>, vector<1x32x256xf32>
    %118 = vector.shape_cast %117 : vector<1x32x256xf32> to vector<32x256xf32>
    %119 = vector.shape_cast %118 : vector<32x256xf32> to vector<1x32x256xf32>
    %120 = vector.broadcast %119 : vector<1x32x256xf32> to vector<2x32x256xf32>
    %121 = arith.mulf %0, %120 : vector<2x32x256xf32>
    %122 = arith.addf %110, %121 : vector<2x32x256xf32>
    %c255_i32 = arith.constant 255 : i32
    %123 = tpu.dynamic_rotate %0 by %c255_i32 dim 2 : vector<2x32x256xf32>, i32 -> vector<2x32x256xf32>
    %c18 = arith.constant 18 : index
    %c0_40 = arith.constant 0 : index
    %c0_41 = arith.constant 0 : index
    %124 = vector.load %arg1[%c18, %c0_40, %c0_41] : memref<34x32x256xf32, #tpu.memory_space<vmem>>, vector<1x32x256xf32>
    %125 = vector.shape_cast %124 : vector<1x32x256xf32> to vector<32x256xf32>
    %126 = vector.shape_cast %125 : vector<32x256xf32> to vector<1x32x256xf32>
    %127 = vector.broadcast %126 : vector<1x32x256xf32> to vector<2x32x256xf32>
    %128 = arith.mulf %123, %127 : vector<2x32x256xf32>
    %129 = arith.addf %116, %128 : vector<2x32x256xf32>
    %c19 = arith.constant 19 : index
    %c0_42 = arith.constant 0 : index
    %c0_43 = arith.constant 0 : index
    %130 = vector.load %arg1[%c19, %c0_42, %c0_43] : memref<34x32x256xf32, #tpu.memory_space<vmem>>, vector<1x32x256xf32>
    %131 = vector.shape_cast %130 : vector<1x32x256xf32> to vector<32x256xf32>
    %132 = vector.shape_cast %131 : vector<32x256xf32> to vector<1x32x256xf32>
    %133 = vector.broadcast %132 : vector<1x32x256xf32> to vector<2x32x256xf32>
    %134 = arith.mulf %123, %133 : vector<2x32x256xf32>
    %135 = arith.addf %122, %134 : vector<2x32x256xf32>
    %c254_i32 = arith.constant 254 : i32
    %136 = tpu.dynamic_rotate %0 by %c254_i32 dim 2 : vector<2x32x256xf32>, i32 -> vector<2x32x256xf32>
    %c20 = arith.constant 20 : index
    %c0_44 = arith.constant 0 : index
    %c0_45 = arith.constant 0 : index
    %137 = vector.load %arg1[%c20, %c0_44, %c0_45] : memref<34x32x256xf32, #tpu.memory_space<vmem>>, vector<1x32x256xf32>
    %138 = vector.shape_cast %137 : vector<1x32x256xf32> to vector<32x256xf32>
    %139 = vector.shape_cast %138 : vector<32x256xf32> to vector<1x32x256xf32>
    %140 = vector.broadcast %139 : vector<1x32x256xf32> to vector<2x32x256xf32>
    %141 = arith.mulf %136, %140 : vector<2x32x256xf32>
    %142 = arith.addf %135, %141 : vector<2x32x256xf32>
    %c242_i32 = arith.constant 242 : i32
    %143 = tpu.dynamic_rotate %0 by %c242_i32 dim 2 : vector<2x32x256xf32>, i32 -> vector<2x32x256xf32>
    %c21 = arith.constant 21 : index
    %c0_46 = arith.constant 0 : index
    %c0_47 = arith.constant 0 : index
    %144 = vector.load %arg1[%c21, %c0_46, %c0_47] : memref<34x32x256xf32, #tpu.memory_space<vmem>>, vector<1x32x256xf32>
    %145 = vector.shape_cast %144 : vector<1x32x256xf32> to vector<32x256xf32>
    %146 = vector.shape_cast %145 : vector<32x256xf32> to vector<1x32x256xf32>
    %147 = vector.broadcast %146 : vector<1x32x256xf32> to vector<2x32x256xf32>
    %148 = arith.mulf %143, %147 : vector<2x32x256xf32>
    %149 = arith.addf %142, %148 : vector<2x32x256xf32>
    %c241_i32 = arith.constant 241 : i32
    %150 = tpu.dynamic_rotate %0 by %c241_i32 dim 2 : vector<2x32x256xf32>, i32 -> vector<2x32x256xf32>
    %c22 = arith.constant 22 : index
    %c0_48 = arith.constant 0 : index
    %c0_49 = arith.constant 0 : index
    %151 = vector.load %arg1[%c22, %c0_48, %c0_49] : memref<34x32x256xf32, #tpu.memory_space<vmem>>, vector<1x32x256xf32>
    %152 = vector.shape_cast %151 : vector<1x32x256xf32> to vector<32x256xf32>
    %153 = vector.shape_cast %152 : vector<32x256xf32> to vector<1x32x256xf32>
    %154 = vector.broadcast %153 : vector<1x32x256xf32> to vector<2x32x256xf32>
    %155 = arith.mulf %150, %154 : vector<2x32x256xf32>
    %156 = arith.addf %129, %155 : vector<2x32x256xf32>
    %c23 = arith.constant 23 : index
    %c0_50 = arith.constant 0 : index
    %c0_51 = arith.constant 0 : index
    %157 = vector.load %arg1[%c23, %c0_50, %c0_51] : memref<34x32x256xf32, #tpu.memory_space<vmem>>, vector<1x32x256xf32>
    %158 = vector.shape_cast %157 : vector<1x32x256xf32> to vector<32x256xf32>
    %159 = vector.shape_cast %158 : vector<32x256xf32> to vector<1x32x256xf32>
    %160 = vector.broadcast %159 : vector<1x32x256xf32> to vector<2x32x256xf32>
    %161 = arith.mulf %150, %160 : vector<2x32x256xf32>
    %162 = arith.addf %149, %161 : vector<2x32x256xf32>
    %c240_i32 = arith.constant 240 : i32
    %163 = tpu.dynamic_rotate %0 by %c240_i32 dim 2 : vector<2x32x256xf32>, i32 -> vector<2x32x256xf32>
    %c24 = arith.constant 24 : index
    %c0_52 = arith.constant 0 : index
    %c0_53 = arith.constant 0 : index
    %164 = vector.load %arg1[%c24, %c0_52, %c0_53] : memref<34x32x256xf32, #tpu.memory_space<vmem>>, vector<1x32x256xf32>
    %165 = vector.shape_cast %164 : vector<1x32x256xf32> to vector<32x256xf32>
    %166 = vector.shape_cast %165 : vector<32x256xf32> to vector<1x32x256xf32>
    %167 = vector.broadcast %166 : vector<1x32x256xf32> to vector<2x32x256xf32>
    %168 = arith.mulf %163, %167 : vector<2x32x256xf32>
    %169 = arith.addf %156, %168 : vector<2x32x256xf32>
    %c25 = arith.constant 25 : index
    %c0_54 = arith.constant 0 : index
    %c0_55 = arith.constant 0 : index
    %170 = vector.load %arg1[%c25, %c0_54, %c0_55] : memref<34x32x256xf32, #tpu.memory_space<vmem>>, vector<1x32x256xf32>
    %171 = vector.shape_cast %170 : vector<1x32x256xf32> to vector<32x256xf32>
    %172 = vector.shape_cast %171 : vector<32x256xf32> to vector<1x32x256xf32>
    %173 = vector.broadcast %172 : vector<1x32x256xf32> to vector<2x32x256xf32>
    %174 = arith.mulf %163, %173 : vector<2x32x256xf32>
    %175 = arith.addf %162, %174 : vector<2x32x256xf32>
    %c239_i32 = arith.constant 239 : i32
    %176 = tpu.dynamic_rotate %0 by %c239_i32 dim 2 : vector<2x32x256xf32>, i32 -> vector<2x32x256xf32>
    %c26 = arith.constant 26 : index
    %c0_56 = arith.constant 0 : index
    %c0_57 = arith.constant 0 : index
    %177 = vector.load %arg1[%c26, %c0_56, %c0_57] : memref<34x32x256xf32, #tpu.memory_space<vmem>>, vector<1x32x256xf32>
    %178 = vector.shape_cast %177 : vector<1x32x256xf32> to vector<32x256xf32>
    %179 = vector.shape_cast %178 : vector<32x256xf32> to vector<1x32x256xf32>
    %180 = vector.broadcast %179 : vector<1x32x256xf32> to vector<2x32x256xf32>
    %181 = arith.mulf %176, %180 : vector<2x32x256xf32>
    %182 = arith.addf %169, %181 : vector<2x32x256xf32>
    %c27 = arith.constant 27 : index
    %c0_58 = arith.constant 0 : index
    %c0_59 = arith.constant 0 : index
    %183 = vector.load %arg1[%c27, %c0_58, %c0_59] : memref<34x32x256xf32, #tpu.memory_space<vmem>>, vector<1x32x256xf32>
    %184 = vector.shape_cast %183 : vector<1x32x256xf32> to vector<32x256xf32>
    %185 = vector.shape_cast %184 : vector<32x256xf32> to vector<1x32x256xf32>
    %186 = vector.broadcast %185 : vector<1x32x256xf32> to vector<2x32x256xf32>
    %187 = arith.mulf %176, %186 : vector<2x32x256xf32>
    %188 = arith.addf %175, %187 : vector<2x32x256xf32>
    %c238_i32 = arith.constant 238 : i32
    %189 = tpu.dynamic_rotate %0 by %c238_i32 dim 2 : vector<2x32x256xf32>, i32 -> vector<2x32x256xf32>
    %c28 = arith.constant 28 : index
    %c0_60 = arith.constant 0 : index
    %c0_61 = arith.constant 0 : index
    %190 = vector.load %arg1[%c28, %c0_60, %c0_61] : memref<34x32x256xf32, #tpu.memory_space<vmem>>, vector<1x32x256xf32>
    %191 = vector.shape_cast %190 : vector<1x32x256xf32> to vector<32x256xf32>
    %192 = vector.shape_cast %191 : vector<32x256xf32> to vector<1x32x256xf32>
    %193 = vector.broadcast %192 : vector<1x32x256xf32> to vector<2x32x256xf32>
    %194 = arith.mulf %189, %193 : vector<2x32x256xf32>
    %195 = arith.addf %188, %194 : vector<2x32x256xf32>
    %c226_i32 = arith.constant 226 : i32
    %196 = tpu.dynamic_rotate %0 by %c226_i32 dim 2 : vector<2x32x256xf32>, i32 -> vector<2x32x256xf32>
    %c29 = arith.constant 29 : index
    %c0_62 = arith.constant 0 : index
    %c0_63 = arith.constant 0 : index
    %197 = vector.load %arg1[%c29, %c0_62, %c0_63] : memref<34x32x256xf32, #tpu.memory_space<vmem>>, vector<1x32x256xf32>
    %198 = vector.shape_cast %197 : vector<1x32x256xf32> to vector<32x256xf32>
    %199 = vector.shape_cast %198 : vector<32x256xf32> to vector<1x32x256xf32>
    %200 = vector.broadcast %199 : vector<1x32x256xf32> to vector<2x32x256xf32>
    %201 = arith.mulf %196, %200 : vector<2x32x256xf32>
    %202 = arith.addf %195, %201 : vector<2x32x256xf32>
    %c225_i32 = arith.constant 225 : i32
    %203 = tpu.dynamic_rotate %0 by %c225_i32 dim 2 : vector<2x32x256xf32>, i32 -> vector<2x32x256xf32>
    %c30 = arith.constant 30 : index
    %c0_64 = arith.constant 0 : index
    %c0_65 = arith.constant 0 : index
    %204 = vector.load %arg1[%c30, %c0_64, %c0_65] : memref<34x32x256xf32, #tpu.memory_space<vmem>>, vector<1x32x256xf32>
    %205 = vector.shape_cast %204 : vector<1x32x256xf32> to vector<32x256xf32>
    %206 = vector.shape_cast %205 : vector<32x256xf32> to vector<1x32x256xf32>
    %207 = vector.broadcast %206 : vector<1x32x256xf32> to vector<2x32x256xf32>
    %208 = arith.mulf %203, %207 : vector<2x32x256xf32>
    %209 = arith.addf %202, %208 : vector<2x32x256xf32>
    %c224_i32 = arith.constant 224 : i32
    %210 = tpu.dynamic_rotate %0 by %c224_i32 dim 2 : vector<2x32x256xf32>, i32 -> vector<2x32x256xf32>
    %c31 = arith.constant 31 : index
    %c0_66 = arith.constant 0 : index
    %c0_67 = arith.constant 0 : index
    %211 = vector.load %arg1[%c31, %c0_66, %c0_67] : memref<34x32x256xf32, #tpu.memory_space<vmem>>, vector<1x32x256xf32>
    %212 = vector.shape_cast %211 : vector<1x32x256xf32> to vector<32x256xf32>
    %213 = vector.shape_cast %212 : vector<32x256xf32> to vector<1x32x256xf32>
    %214 = vector.broadcast %213 : vector<1x32x256xf32> to vector<2x32x256xf32>
    %215 = arith.mulf %210, %214 : vector<2x32x256xf32>
    %216 = arith.addf %209, %215 : vector<2x32x256xf32>
    %c223_i32 = arith.constant 223 : i32
    %217 = tpu.dynamic_rotate %0 by %c223_i32 dim 2 : vector<2x32x256xf32>, i32 -> vector<2x32x256xf32>
    %c32 = arith.constant 32 : index
    %c0_68 = arith.constant 0 : index
    %c0_69 = arith.constant 0 : index
    %218 = vector.load %arg1[%c32, %c0_68, %c0_69] : memref<34x32x256xf32, #tpu.memory_space<vmem>>, vector<1x32x256xf32>
    %219 = vector.shape_cast %218 : vector<1x32x256xf32> to vector<32x256xf32>
    %220 = vector.shape_cast %219 : vector<32x256xf32> to vector<1x32x256xf32>
    %221 = vector.broadcast %220 : vector<1x32x256xf32> to vector<2x32x256xf32>
    %222 = arith.mulf %217, %221 : vector<2x32x256xf32>
    %223 = arith.addf %216, %222 : vector<2x32x256xf32>
    %c222_i32 = arith.constant 222 : i32
    %224 = tpu.dynamic_rotate %0 by %c222_i32 dim 2 : vector<2x32x256xf32>, i32 -> vector<2x32x256xf32>
    %c33 = arith.constant 33 : index
    %c0_70 = arith.constant 0 : index
    %c0_71 = arith.constant 0 : index
    %225 = vector.load %arg1[%c33, %c0_70, %c0_71] : memref<34x32x256xf32, #tpu.memory_space<vmem>>, vector<1x32x256xf32>
    %226 = vector.shape_cast %225 : vector<1x32x256xf32> to vector<32x256xf32>
    %227 = vector.shape_cast %226 : vector<32x256xf32> to vector<1x32x256xf32>
    %228 = vector.broadcast %227 : vector<1x32x256xf32> to vector<2x32x256xf32>
    %229 = arith.mulf %224, %228 : vector<2x32x256xf32>
    %230 = arith.addf %223, %229 : vector<2x32x256xf32>
    %c0_72 = arith.constant 0 : index
    %c0_73 = arith.constant 0 : index
    %c0_74 = arith.constant 0 : index
    %231 = vector.load %arg2[%c0_72, %c0_73, %c0_74] : memref<2x32x1xf32, #tpu.memory_space<vmem>>, vector<1x32x1xf32>
    %232 = vector.shape_cast %231 : vector<1x32x1xf32> to vector<32x1xf32>
    %233 = vector.shape_cast %232 : vector<32x1xf32> to vector<1x32x1xf32>
    %234 = vector.broadcast %233 : vector<1x32x1xf32> to vector<2x32x256xf32>
    %235 = arith.addf %182, %234 : vector<2x32x256xf32>
    %cst_75 = arith.constant 0.000000e+00 : f32
    %236 = vector.broadcast %cst_75 : f32 to vector<2x32x256xf32>
    %237 = arith.maximumf %235, %236 : vector<2x32x256xf32>
    %c1_76 = arith.constant 1 : index
    %c0_77 = arith.constant 0 : index
    %c0_78 = arith.constant 0 : index
    %238 = vector.load %arg2[%c1_76, %c0_77, %c0_78] : memref<2x32x1xf32, #tpu.memory_space<vmem>>, vector<1x32x1xf32>
    %239 = vector.shape_cast %238 : vector<1x32x1xf32> to vector<32x1xf32>
    %240 = vector.shape_cast %239 : vector<32x1xf32> to vector<1x32x1xf32>
    %241 = vector.broadcast %240 : vector<1x32x1xf32> to vector<2x32x256xf32>
    %242 = arith.addf %230, %241 : vector<2x32x256xf32>
    %cst_79 = arith.constant 0.000000e+00 : f32
    %243 = vector.broadcast %cst_79 : f32 to vector<2x32x256xf32>
    %244 = arith.maximumf %242, %243 : vector<2x32x256xf32>
    %245 = arith.addf %237, %244 : vector<2x32x256xf32>
    %cst_80 = arith.constant dense<0.000000e+00> : vector<2x32xf32>
    %246 = vector.multi_reduction <add>, %245, %cst_80 [2] : vector<2x32x256xf32> to vector<2x32xf32>
    %cst_81 = arith.constant 2.560000e+02 : f32
    %247 = vector.broadcast %cst_81 : f32 to vector<2x32xf32>
    %248 = arith.divf %246, %247 : vector<2x32xf32>
    %c0_82 = arith.constant 0 : index
    %c0_83 = arith.constant 0 : index
    %249 = vector.load %arg3[%c0_82, %c0_83] : memref<32x32xf32, #tpu.memory_space<vmem>>, vector<32x32xf32>
    %cst_84 = arith.constant dense<0.000000e+00> : vector<2x32xf32>
    %250 = tpu.matmul %248, %249, %cst_84 {dimension_numbers = #tpu.dot_dimension_numbers<[1], [0], [0], [1], [0, 0, 1, 1], [], []>} : vector<2x32xf32>, vector<32x32xf32>, vector<2x32xf32> -> vector<2x32xf32>
    %c0_85 = arith.constant 0 : index
    %c0_86 = arith.constant 0 : index
    %251 = vector.load %arg4[%c0_85, %c0_86] : memref<1x32xf32, #tpu.memory_space<vmem>>, vector<1x32xf32>
    %252 = vector.broadcast %251 : vector<1x32xf32> to vector<2x32xf32>
    %253 = arith.addf %250, %252 : vector<2x32xf32>
    %c0_87 = arith.constant 0 : index
    %c0_88 = arith.constant 0 : index
    %254 = vector.load %arg5[%c0_87, %c0_88] : memref<32x64xf32, #tpu.memory_space<vmem>>, vector<32x64xf32>
    %cst_89 = arith.constant dense<0.000000e+00> : vector<2x64xf32>
    %255 = tpu.matmul %253, %254, %cst_89 {dimension_numbers = #tpu.dot_dimension_numbers<[1], [0], [0], [1], [0, 0, 1, 1], [], []>} : vector<2x32xf32>, vector<32x64xf32>, vector<2x64xf32> -> vector<2x64xf32>
    %c0_90 = arith.constant 0 : index
    %c0_91 = arith.constant 0 : index
    %256 = vector.load %arg6[%c0_90, %c0_91] : memref<1x64xf32, #tpu.memory_space<vmem>>, vector<1x64xf32>
    %257 = vector.broadcast %256 : vector<1x64xf32> to vector<2x64xf32>
    %258 = arith.addf %255, %257 : vector<2x64xf32>
    %259 = vector.extract_strided_slice %258 {offsets = [0, 0], sizes = [2, 32], strides = [1, 1]} : vector<2x64xf32> to vector<2x32xf32>
    %260 = vector.extract_strided_slice %258 {offsets = [0, 32], sizes = [2, 32], strides = [1, 1]} : vector<2x64xf32> to vector<2x32xf32>
    %261 = arith.maximumf %259, %260 : vector<2x32xf32>
    %262 = arith.subf %259, %261 : vector<2x32xf32>
    %263 = math.exp %262 : vector<2x32xf32>
    %264 = arith.subf %260, %261 : vector<2x32xf32>
    %265 = math.exp %264 : vector<2x32xf32>
    %266 = arith.addf %263, %265 : vector<2x32xf32>
    %cst_92 = arith.constant 1.000000e+00 : f32
    %267 = vector.broadcast %cst_92 : f32 to vector<2x32xf32>
    %268 = arith.divf %267, %266 : vector<2x32xf32>
    %269 = arith.mulf %263, %268 : vector<2x32xf32>
    %270 = vector.shape_cast %269 : vector<2x32xf32> to vector<2x32x1xf32>
    %271 = vector.broadcast %270 : vector<2x32x1xf32> to vector<2x32x256xf32>
    %272 = arith.mulf %237, %271 : vector<2x32x256xf32>
    %273 = arith.mulf %265, %268 : vector<2x32xf32>
    %274 = vector.shape_cast %273 : vector<2x32xf32> to vector<2x32x1xf32>
    %275 = vector.broadcast %274 : vector<2x32x1xf32> to vector<2x32x256xf32>
    %276 = arith.mulf %244, %275 : vector<2x32x256xf32>
    %277 = arith.addf %272, %276 : vector<2x32x256xf32>
    %c0_93 = arith.constant 0 : index
    %c0_94 = arith.constant 0 : index
    %c0_95 = arith.constant 0 : index
    %278 = vector.load %arg8[%c0_93, %c0_94, %c0_95] : memref<2x32x256xf32, #tpu.memory_space<vmem>>, vector<2x32x256xf32>
    tpu.vector_store %arg8[%c0_93, %c0_94, %c0_95], %277 {strides = array<i32>} : memref<2x32x256xf32, #tpu.memory_space<vmem>>, vector<2x32x256xf32>,
    return
  }
  func.func @transform_0(%arg0: i32) -> (i32, i32, i32) {
    %c0_i32 = arith.constant 0 : i32
    %c0_i32_0 = arith.constant 0 : i32
    %c0_i32_1 = arith.constant 0 : i32
    %c0_i32_2 = arith.constant 0 : i32
    return %c0_i32, %c0_i32_0, %c0_i32_1 : i32, i32, i32
  }
  func.func @transform_1(%arg0: i32) -> (i32, i32, i32) {
    %c0_i32 = arith.constant 0 : i32
    %c0_i32_0 = arith.constant 0 : i32
    %c0_i32_1 = arith.constant 0 : i32
    %c0_i32_2 = arith.constant 0 : i32
    return %c0_i32, %c0_i32_0, %c0_i32_1 : i32, i32, i32
  }
  func.func @transform_2(%arg0: i32) -> (i32, i32) {
    %c0_i32 = arith.constant 0 : i32
    %c0_i32_0 = arith.constant 0 : i32
    %c0_i32_1 = arith.constant 0 : i32
    return %c0_i32, %c0_i32_0 : i32, i32
  }
  func.func @transform_3(%arg0: i32) -> (i32, i32) {
    %c0_i32 = arith.constant 0 : i32
    %c0_i32_0 = arith.constant 0 : i32
    %c0_i32_1 = arith.constant 0 : i32
    return %c0_i32, %c0_i32_0 : i32, i32
  }
  func.func @transform_4(%arg0: i32) -> (i32, i32) {
    %c0_i32 = arith.constant 0 : i32
    %c0_i32_0 = arith.constant 0 : i32
    %c0_i32_1 = arith.constant 0 : i32
    return %c0_i32, %c0_i32_0 : i32, i32
  }
  func.func @transform_5(%arg0: i32) -> (i32, i32) {
    %c0_i32 = arith.constant 0 : i32
    %c0_i32_0 = arith.constant 0 : i32
    %c0_i32_1 = arith.constant 0 : i32
    return %c0_i32, %c0_i32_0 : i32, i32
  }
  func.func @transform_6(%arg0: i32) -> (i32, i32, i32) {
    %c0_i32 = arith.constant 0 : i32
    %c0_i32_0 = arith.constant 0 : i32
    %c0_i32_1 = arith.constant 0 : i32
    return %arg0, %c0_i32, %c0_i32_0 : i32, i32, i32
  }
  func.func @transform_7(%arg0: i32) -> (i32, i32, i32) {
    %c0_i32 = arith.constant 0 : i32
    %c0_i32_0 = arith.constant 0 : i32
    %c0_i32_1 = arith.constant 0 : i32
    return %arg0, %c0_i32, %c0_i32_0 : i32, i32, i32
  }
}

</mosaic_0001>

<llo_original>
// kernel: tpu_custom_call.1
$region0: #{tpu_custom_call.1}
  #allocation0 [shape = 'u32[]', space=smem, size = 0x4, offset = 0x4, fixed_abs, tag = 'smem constant byte address 0x4 - core index']
  #allocation1 [shape = 'u32[144,128]{1,0:T(1,128)}', space=vmem, size = 0x12000, scoped, tag = 'internal scratch']
  %s0 = inlined_call_operand.hbm [shape: f32[34,32,256], index: 0, kind: input, shape index: {}]
  %s1 = inlined_call_operand.vmem [shape: f32[2,32,1], index: 1, kind: input, shape index: {}]
  %s2 = inlined_call_operand.hbm [shape: f32[32,32], index: 2, kind: input, shape index: {}]
  %s3 = inlined_call_operand.hbm [shape: f32[1,32], index: 3, kind: input, shape index: {}]
  %s4 = inlined_call_operand.hbm [shape: f32[32,64], index: 4, kind: input, shape index: {}]
  %s5 = inlined_call_operand.hbm [shape: f32[1,64], index: 5, kind: input, shape index: {}]
  %s6 = inlined_call_operand.hbm [shape: f32[2,32,256], index: 6, kind: input, shape index: {}]
  %s7 = inlined_call_operand.hbm [shape: f32[2,32,256], index: 7, kind: output, shape index: {}]
  %s8 = sld [smem:[#allocation0]]
  $region62: #{tpu_custom_call.1} parent=0
    _
  %s10 = ssub.s32 1, %s8
  %s11 = scalar_select 0, %s10, %s8
  $region1: #{tpu_custom_call.1} parent=0
    #allocation2 [shape = 'u8[1114112]{0}', space=vmem, size = 0x110000, scoped, tag = 'input window, operand 0, single buffered']
    #allocation3 [shape = 's32[1]{0}', space=sflag, size = 0x4, scoped, tag = 'scoped memory for tpu_custom_call.1']
    #allocation4 [shape = 's32[1]{0}', space=sflag, size = 0x4, scoped, tag = 'scoped memory for tpu_custom_call.1']
    #allocation5 [shape = 'u8[16384]{0}', space=vmem, size = 0x4000, scoped, tag = 'input window, operand 2, single buffered']
    #allocation6 [shape = 's32[1]{0}', space=sflag, size = 0x4, scoped, tag = 'scoped memory for tpu_custom_call.1']
    #allocation7 [shape = 'u8[512]{0}', space=vmem, size = 0x400, scoped, tag = 'input window, operand 3, single buffered']
    #allocation8 [shape = 'u8[16384]{0}', space=vmem, size = 0x4000, scoped, tag = 'input window, operand 4, single buffered']
    #allocation9 [shape = 's32[1]{0}', space=sflag, size = 0x4, scoped, tag = 'scoped memory for tpu_custom_call.1']
    #allocation10 [shape = 'u8[512]{0}', space=vmem, size = 0x400, scoped, tag = 'input window, operand 5, single buffered']
    #allocation11 [shape = 'u8[65536]{0}', space=vmem, size = 0x10000, scoped, tag = 'input window, operand 6, single buffered']
    #allocation12 [shape = 's32[1]{0}', space=sflag, size = 0x4, scoped, tag = 'scoped memory for tpu_custom_call.1']
    #allocation13 [shape = 'u8[65536]{0}', space=vmem, size = 0x10000, scoped, tag = 'output window, operand 0, single buffered']
    %12 = vsyncpa [#allocation3], 0
    %13 = vsyncpa [#allocation6], 0
    %14 = vsyncpa [#allocation9], 0
    %15 = vsyncpa [#allocation12], 0
    %16 = vsyncpa [#allocation4], 0
    // Predicated region
    $region2: #{tpu_custom_call.1} parent=1 // pred_check
      _
    $region3: #{tpu_custom_call.1} parent=1 // pred_check_branch
      %18 = sbr.rel (0) target = $region5
    $region4: #{tpu_custom_call.1} parent=1 // pred_region
      %s20 = ssub.s32 34816, 34816
      %21 = vsyncadd [#allocation3], %s20
      %s22 = sshll.u32 [#allocation2], 4
      %s23 = int_to_ptr.vmem [resolvable:$true] %s22
      %28 = dma.hbm_to_vmem [thread:$0]  %s0, 34816, %s23, [#allocation3], 256, 256, 16
    $region5: #{tpu_custom_call.1} parent=1 // pred_fallthru
      _
    // Predicated region
    $region6: #{tpu_custom_call.1} parent=1 // pred_check
      _
    $region7: #{tpu_custom_call.1} parent=1 // pred_check_branch
      %30 = sbr.rel (0) target = $region9
    $region8: #{tpu_custom_call.1} parent=1 // pred_region
      _
    $region9: #{tpu_custom_call.1} parent=1 // pred_fallthru
      _
    // Predicated region
    $region10: #{tpu_custom_call.1} parent=1 // pred_check
      _
    $region11: #{tpu_custom_call.1} parent=1 // pred_check_branch
      %32 = sbr.rel (0) target = $region13
    $region12: #{tpu_custom_call.1} parent=1 // pred_region
      %s34 = ssub.s32 512, 512
      %35 = vsyncadd [#allocation6], %s34
      %s36 = sshll.u32 [#allocation5], 4
      %s37 = int_to_ptr.vmem [resolvable:$true] %s36
      %42 = dma.hbm_to_vmem [thread:$0]  %s2, 512, %s37, [#allocation6], 128, 128, 8
    $region13: #{tpu_custom_call.1} parent=1 // pred_fallthru
      _
    // Predicated region
    $region14: #{tpu_custom_call.1} parent=1 // pred_check
      _
    $region15: #{tpu_custom_call.1} parent=1 // pred_check_branch
      %44 = sbr.rel (0) target = $region17
    $region16: #{tpu_custom_call.1} parent=1 // pred_region
      %s46 = ssub.s32 16, 16
      %47 = vsyncadd [#allocation6], %s46
      %s49 = sshll.u32 [#allocation7], 4
      %s50 = int_to_ptr.vmem [resolvable:$true] %s49
      %52 = dma.hbm_to_vmem [thread:$0]  %s3, 16, %s50, [#allocation6]
    $region17: #{tpu_custom_call.1} parent=1 // pred_fallthru
      _
    // Predicated region
    $region18: #{tpu_custom_call.1} parent=1 // pred_check
      _
    $region19: #{tpu_custom_call.1} parent=1 // pred_check_branch
      %54 = sbr.rel (0) target = $region21
    $region20: #{tpu_custom_call.1} parent=1 // pred_region
      %s56 = ssub.s32 512, 512
      %57 = vsyncadd [#allocation9], %s56
      %s58 = sshll.u32 [#allocation8], 4
      %s59 = int_to_ptr.vmem [resolvable:$true] %s58
      %64 = dma.hbm_to_vmem [thread:$0]  %s4, 512, %s59, [#allocation9], 128, 128, 8
    $region21: #{tpu_custom_call.1} parent=1 // pred_fallthru
      _
    // Predicated region
    $region22: #{tpu_custom_call.1} parent=1 // pred_check
      _
    $region23: #{tpu_custom_call.1} parent=1 // pred_check_branch
      %66 = sbr.rel (0) target = $region25
    $region24: #{tpu_custom_call.1} parent=1 // pred_region
      %s68 = ssub.s32 16, 16
      %69 = vsyncadd [#allocation9], %s68
      %s71 = sshll.u32 [#allocation10], 4
      %s72 = int_to_ptr.vmem [resolvable:$true] %s71
      %74 = dma.hbm_to_vmem [thread:$0]  %s5, 16, %s72, [#allocation9]
    $region25: #{tpu_custom_call.1} parent=1 // pred_fallthru
      _
    // Predicated region
    $region26: #{tpu_custom_call.1} parent=1 // pred_check
      _
    $region27: #{tpu_custom_call.1} parent=1 // pred_check_branch
      %76 = sbr.rel (0) target = $region29
    $region28: #{tpu_custom_call.1} parent=1 // pred_region
      %s78 = ssub.s32 2048, 2048
      %79 = vsyncadd [#allocation12], %s78
      %s80 = sshll.u32 [#allocation11], 4
      %s81 = int_to_ptr.vmem [resolvable:$true] %s80
      %86 = dma.hbm_to_vmem [thread:$0]  %s6, 2048, %s81, [#allocation12], 256, 256, 16
    $region29: #{tpu_custom_call.1} parent=1 // pred_fallthru
      _
    // Predicated region
    $region30: #{tpu_custom_call.1} parent=1 // pred_check
      _
    $region31: #{tpu_custom_call.1} parent=1 // pred_check_branch
      %88 = sbr.rel (0) target = $region33
    $region32: #{tpu_custom_call.1} parent=1 // pred_region
      %89 = dma.done [#allocation3], 34816
    $region33: #{tpu_custom_call.1} parent=1 // pred_fallthru
      _
    // Predicated region
    $region34: #{tpu_custom_call.1} parent=1 // pred_check
      _
    $region35: #{tpu_custom_call.1} parent=1 // pred_check_branch
      %91 = sbr.rel (0) target = $region37
    $region36: #{tpu_custom_call.1} parent=1 // pred_region
      %92 = dma.done [#allocation6], 512
    $region37: #{tpu_custom_call.1} parent=1 // pred_fallthru
      _
    // Predicated region
    $region38: #{tpu_custom_call.1} parent=1 // pred_check
      _
    $region39: #{tpu_custom_call.1} parent=1 // pred_check_branch
      %94 = sbr.rel (0) target = $region41
    $region40: #{tpu_custom_call.1} parent=1 // pred_region
      %95 = dma.done [#allocation6], 16
    $region41: #{tpu_custom_call.1} parent=1 // pred_fallthru
      _
    // Predicated region
    $region42: #{tpu_custom_call.1} parent=1 // pred_check
      _
    $region43: #{tpu_custom_call.1} parent=1 // pred_check_branch
      %97 = sbr.rel (0) target = $region45
    $region44: #{tpu_custom_call.1} parent=1 // pred_region
      %98 = dma.done [#allocation9], 512
    $region45: #{tpu_custom_call.1} parent=1 // pred_fallthru
      _
    // Predicated region
    $region46: #{tpu_custom_call.1} parent=1 // pred_check
      _
    $region47: #{tpu_custom_call.1} parent=1 // pred_check_branch
      %100 = sbr.rel (0) target = $region49
    $region48: #{tpu_custom_call.1} parent=1 // pred_region
      %101 = dma.done [#allocation9], 16
    $region49: #{tpu_custom_call.1} parent=1 // pred_fallthru
      _
    // Predicated region
    $region50: #{tpu_custom_call.1} parent=1 // pred_check
      _
    $region51: #{tpu_custom_call.1} parent=1 // pred_check_branch
      %103 = sbr.rel (0) target = $region53
    $region52: #{tpu_custom_call.1} parent=1 // pred_region
      %104 = dma.done [#allocation12], 2048
    $region53: #{tpu_custom_call.1} parent=1 // pred_fallthru
      _
    %v105 = vld [vmem:[#allocation11] sm:$0xff]
    %v106 = vld [vmem:[#allocation11 + $0x8] sm:$0xff]
    %v107 = vld [vmem:[#allocation11 + $0x10] sm:$0xff]
    %v108 = vld [vmem:[#allocation11 + $0x18] sm:$0xff]
    %v109 = vld [vmem:[#allocation11 + $0x20] sm:$0xff]
    %v110 = vld [vmem:[#allocation11 + $0x28] sm:$0xff]
    %v111 = vld [vmem:[#allocation11 + $0x30] sm:$0xff]
    %v112 = vld [vmem:[#allocation11 + $0x38] sm:$0xff]
    %v113 = vld [vmem:[#allocation11 + $0x40] sm:$0xff]
    %v114 = vld [vmem:[#allocation11 + $0x48] sm:$0xff]
    %v115 = vld [vmem:[#allocation11 + $0x50] sm:$0xff]
    %v116 = vld [vmem:[#allocation11 + $0x58] sm:$0xff]
    %v117 = vld [vmem:[#allocation11 + $0x60] sm:$0xff]
    %v118 = vld [vmem:[#allocation11 + $0x68] sm:$0xff]
    %v119 = vld [vmem:[#allocation11 + $0x70] sm:$0xff]
    %v120 = vld [vmem:[#allocation11 + $0x78] sm:$0xff]
    %121 = vrot.lane.b32.xlu0 %v105, 34
    %v122 = vpop.permute.xlu0 %121
    %123 = vrot.lane.b32.xlu0 %v107, 34
    %v124 = vpop.permute.xlu0 %123
    %125 = vrot.lane.b32.xlu0 %v109, 34
    %v126 = vpop.permute.xlu0 %125
    %127 = vrot.lane.b32.xlu0 %v111, 34
    %v128 = vpop.permute.xlu0 %127
    %129 = vrot.lane.b32.xlu0 %v113, 34
    %v130 = vpop.permute.xlu0 %129
    %131 = vrot.lane.b32.xlu0 %v115, 34
    %v132 = vpop.permute.xlu0 %131
    %133 = vrot.lane.b32.xlu0 %v117, 34
    %v134 = vpop.permute.xlu0 %133
    %135 = vrot.lane.b32.xlu0 %v119, 34
    %v136 = vpop.permute.xlu0 %135
    %137 = vrot.lane.b32.xlu0 %v106, 34
    %v138 = vpop.permute.xlu0 %137
    %139 = vrot.lane.b32.xlu0 %v108, 34
    %v140 = vpop.permute.xlu0 %139
    %141 = vrot.lane.b32.xlu0 %v110, 34
    %v142 = vpop.permute.xlu0 %141
    %143 = vrot.lane.b32.xlu0 %v112, 34
    %v144 = vpop.permute.xlu0 %143
    %145 = vrot.lane.b32.xlu0 %v114, 34
    %v146 = vpop.permute.xlu0 %145
    %147 = vrot.lane.b32.xlu0 %v116, 34
    %v148 = vpop.permute.xlu0 %147
    %149 = vrot.lane.b32.xlu0 %v118, 34
    %v150 = vpop.permute.xlu0 %149
    %151 = vrot.lane.b32.xlu0 %v120, 34
    %v152 = vpop.permute.xlu0 %151
    %v153 = vlaneseq
    %v154 = vand.u32 %v153, 127
    %vm155 = vcmp.lt.s32.totalorder %v154, 34
    %v156 = vsel %vm155, %v122, %v138
    %v157 = vsel %vm155, %v124, %v140
    %v158 = vsel %vm155, %v126, %v142
    %v159 = vsel %vm155, %v128, %v144
    %v160 = vsel %vm155, %v130, %v146
    %v161 = vsel %vm155, %v132, %v148
    %v162 = vsel %vm155, %v134, %v150
    %v163 = vsel %vm155, %v136, %v152
    %v164 = vsel %vm155, %v138, %v122
    %v165 = vsel %vm155, %v140, %v124
    %v166 = vsel %vm155, %v142, %v126
    %v167 = vsel %vm155, %v144, %v128
    %v168 = vsel %vm155, %v146, %v130
    %v169 = vsel %vm155, %v148, %v132
    %v170 = vsel %vm155, %v150, %v134
    %v171 = vsel %vm155, %v152, %v136
    %v172 = vld [vmem:[#allocation2] sm:$0xff]
    %v173 = vld [vmem:[#allocation2 + $0x8] sm:$0xff]
    %v174 = vld [vmem:[#allocation2 + $0x10] sm:$0xff]
    %v175 = vld [vmem:[#allocation2 + $0x18] sm:$0xff]
    %v176 = vld [vmem:[#allocation2 + $0x20] sm:$0xff]
    %v177 = vld [vmem:[#allocation2 + $0x28] sm:$0xff]
    %v178 = vld [vmem:[#allocation2 + $0x30] sm:$0xff]
    %v179 = vld [vmem:[#allocation2 + $0x38] sm:$0xff]
    %v180 = vmul.f32 %v164, %v172
    %v181 = vmul.f32 %v156, %v173
    %v182 = vmul.f32 %v165, %v174
    %v183 = vmul.f32 %v157, %v175
    %v184 = vmul.f32 %v166, %v176
    %v185 = vmul.f32 %v158, %v177
    %v186 = vmul.f32 %v167, %v178
    %v187 = vmul.f32 %v159, %v179
    %v188 = vmul.f32 %v168, %v172
    %v189 = vmul.f32 %v160, %v173
    %v190 = vmul.f32 %v169, %v174
    %v191 = vmul.f32 %v161, %v175
    %v192 = vmul.f32 %v170, %v176
    %v193 = vmul.f32 %v162, %v177
    %v194 = vmul.f32 %v171, %v178
    %v195 = vmul.f32 %v163, %v179
    %v196 = vadd.f32 %v180, 0.0
    %v197 = vadd.f32 %v181, 0.0
    %v198 = vadd.f32 %v182, 0.0
    %v199 = vadd.f32 %v183, 0.0
    %v200 = vadd.f32 %v184, 0.0
    %v201 = vadd.f32 %v185, 0.0
    %v202 = vadd.f32 %v186, 0.0
    %v203 = vadd.f32 %v187, 0.0
    %v204 = vadd.f32 %v188, 0.0
    %v205 = vadd.f32 %v189, 0.0
    %v206 = vadd.f32 %v190, 0.0
    %v207 = vadd.f32 %v191, 0.0
    %v208 = vadd.f32 %v192, 0.0
    %v209 = vadd.f32 %v193, 0.0
    %v210 = vadd.f32 %v194, 0.0
    %v211 = vadd.f32 %v195, 0.0
    %212 = vrot.lane.b32.xlu0 %v105, 33
    %v213 = vpop.permute.xlu0 %212
    %214 = vrot.lane.b32.xlu0 %v107, 33
    %v215 = vpop.permute.xlu0 %214
    %216 = vrot.lane.b32.xlu0 %v109, 33
    %v217 = vpop.permute.xlu0 %216
    %218 = vrot.lane.b32.xlu0 %v111, 33
    %v219 = vpop.permute.xlu0 %218
    %220 = vrot.lane.b32.xlu0 %v113, 33
    %v221 = vpop.permute.xlu0 %220
    %222 = vrot.lane.b32.xlu0 %v115, 33
    %v223 = vpop.permute.xlu0 %222
    %224 = vrot.lane.b32.xlu0 %v117, 33
    %v225 = vpop.permute.xlu0 %224
    %226 = vrot.lane.b32.xlu0 %v119, 33
    %v227 = vpop.permute.xlu0 %226
    %228 = vrot.lane.b32.xlu0 %v106, 33
    %v229 = vpop.permute.xlu0 %228
    %230 = vrot.lane.b32.xlu0 %v108, 33
    %v231 = vpop.permute.xlu0 %230
    %232 = vrot.lane.b32.xlu0 %v110, 33
    %v233 = vpop.permute.xlu0 %232
    %234 = vrot.lane.b32.xlu0 %v112, 33
    %v235 = vpop.permute.xlu0 %234
    %236 = vrot.lane.b32.xlu0 %v114, 33
    %v237 = vpop.permute.xlu0 %236
    %238 = vrot.lane.b32.xlu0 %v116, 33
    %v239 = vpop.permute.xlu0 %238
    %240 = vrot.lane.b32.xlu0 %v118, 33
    %v241 = vpop.permute.xlu0 %240
    %242 = vrot.lane.b32.xlu0 %v120, 33
    %v243 = vpop.permute.xlu0 %242
    %vm244 = vcmp.lt.s32.totalorder %v154, 33
    %v245 = vsel %vm244, %v213, %v229
    %v246 = vsel %vm244, %v215, %v231
    %v247 = vsel %vm244, %v217, %v233
    %v248 = vsel %vm244, %v219, %v235
    %v249 = vsel %vm244, %v221, %v237
    %v250 = vsel %vm244, %v223, %v239
    %v251 = vsel %vm244, %v225, %v241
    %v252 = vsel %vm244, %v227, %v243
    %v253 = vsel %vm244, %v229, %v213
    %v254 = vsel %vm244, %v231, %v215
    %v255 = vsel %vm244, %v233, %v217
    %v256 = vsel %vm244, %v235, %v219
    %v257 = vsel %vm244, %v237, %v221
    %v258 = vsel %vm244, %v239, %v223
    %v259 = vsel %vm244, %v241, %v225
    %v260 = vsel %vm244, %v243, %v227
    %s261 = scalar_lea.vmem [#allocation2], 64
    %v262 = vld [vmem:[%s261] sm:$0xff]
    %v263 = vld [vmem:[%s261 + $0x8] sm:$0xff]
    %v264 = vld [vmem:[%s261 + $0x10] sm:$0xff]
    %v265 = vld [vmem:[%s261 + $0x18] sm:$0xff]
    %v266 = vld [vmem:[%s261 + $0x20] sm:$0xff]
    %v267 = vld [vmem:[%s261 + $0x28] sm:$0xff]
    %v268 = vld [vmem:[%s261 + $0x30] sm:$0xff]
    %v269 = vld [vmem:[%s261 + $0x38] sm:$0xff]
    %v270 = vmul.f32 %v253, %v262
    %v271 = vmul.f32 %v245, %v263
    %v272 = vmul.f32 %v254, %v264
    %v273 = vmul.f32 %v246, %v265
    %v274 = vmul.f32 %v255, %v266
    %v275 = vmul.f32 %v247, %v267
    %v276 = vmul.f32 %v256, %v268
    %v277 = vmul.f32 %v248, %v269
    %v278 = vmul.f32 %v257, %v262
    %v279 = vmul.f32 %v249, %v263
    %v280 = vmul.f32 %v258, %v264
    %v281 = vmul.f32 %v250, %v265
    %v282 = vmul.f32 %v259, %v266
    %v283 = vmul.f32 %v251, %v267
    %v284 = vmul.f32 %v260, %v268
    %v285 = vmul.f32 %v252, %v269
    %v286 = vadd.f32 %v196, %v270
    %v287 = vadd.f32 %v197, %v271
    %v288 = vadd.f32 %v198, %v272
    %v289 = vadd.f32 %v199, %v273
    %v290 = vadd.f32 %v200, %v274
    %v291 = vadd.f32 %v201, %v275
    %v292 = vadd.f32 %v202, %v276
    %v293 = vadd.f32 %v203, %v277
    %v294 = vadd.f32 %v204, %v278
    %v295 = vadd.f32 %v205, %v279
    %v296 = vadd.f32 %v206, %v280
    %v297 = vadd.f32 %v207, %v281
    %v298 = vadd.f32 %v208, %v282
    %v299 = vadd.f32 %v209, %v283
    %v300 = vadd.f32 %v210, %v284
    %v301 = vadd.f32 %v211, %v285
    %302 = vrot.lane.b32.xlu0 %v105, 32
    %v303 = vpop.permute.xlu0 %302
    %304 = vrot.lane.b32.xlu0 %v107, 32
    %v305 = vpop.permute.xlu0 %304
    %306 = vrot.lane.b32.xlu0 %v109, 32
    %v307 = vpop.permute.xlu0 %306
    %308 = vrot.lane.b32.xlu0 %v111, 32
    %v309 = vpop.permute.xlu0 %308
    %310 = vrot.lane.b32.xlu0 %v113, 32
    %v311 = vpop.permute.xlu0 %310
    %312 = vrot.lane.b32.xlu0 %v115, 32
    %v313 = vpop.permute.xlu0 %312
    %314 = vrot.lane.b32.xlu0 %v117, 32
    %v315 = vpop.permute.xlu0 %314
    %316 = vrot.lane.b32.xlu0 %v119, 32
    %v317 = vpop.permute.xlu0 %316
    %318 = vrot.lane.b32.xlu0 %v106, 32
    %v319 = vpop.permute.xlu0 %318
    %320 = vrot.lane.b32.xlu0 %v108, 32
    %v321 = vpop.permute.xlu0 %320
    %322 = vrot.lane.b32.xlu0 %v110, 32
    %v323 = vpop.permute.xlu0 %322
    %324 = vrot.lane.b32.xlu0 %v112, 32
    %v325 = vpop.permute.xlu0 %324
    %326 = vrot.lane.b32.xlu0 %v114, 32
    %v327 = vpop.permute.xlu0 %326
    %328 = vrot.lane.b32.xlu0 %v116, 32
    %v329 = vpop.permute.xlu0 %328
    %330 = vrot.lane.b32.xlu0 %v118, 32
    %v331 = vpop.permute.xlu0 %330
    %332 = vrot.lane.b32.xlu0 %v120, 32
    %v333 = vpop.permute.xlu0 %332
    %vm334 = vcmp.lt.s32.totalorder %v154, 32
    %v335 = vsel %vm334, %v303, %v319
    %v336 = vsel %vm334, %v305, %v321
    %v337 = vsel %vm334, %v307, %v323
    %v338 = vsel %vm334, %v309, %v325
    %v339 = vsel %vm334, %v311, %v327
    %v340 = vsel %vm334, %v313, %v329
    %v341 = vsel %vm334, %v315, %v331
    %v342 = vsel %vm334, %v317, %v333
    %v343 = vsel %vm334, %v319, %v303
    %v344 = vsel %vm334, %v321, %v305
    %v345 = vsel %vm334, %v323, %v307
    %v346 = vsel %vm334, %v325, %v309
    %v347 = vsel %vm334, %v327, %v311
    %v348 = vsel %vm334, %v329, %v313
    %v349 = vsel %vm334, %v331, %v315
    %v350 = vsel %vm334, %v333, %v317
    %s351 = scalar_lea.vmem [#allocation2], 128
    %v352 = vld [vmem:[%s351] sm:$0xff]
    %v353 = vld [vmem:[%s351 + $0x8] sm:$0xff]
    %v354 = vld [vmem:[%s351 + $0x10] sm:$0xff]
    %v355 = vld [vmem:[%s351 + $0x18] sm:$0xff]
    %v356 = vld [vmem:[%s351 + $0x20] sm:$0xff]
    %v357 = vld [vmem:[%s351 + $0x28] sm:$0xff]
    %v358 = vld [vmem:[%s351 + $0x30] sm:$0xff]
    %v359 = vld [vmem:[%s351 + $0x38] sm:$0xff]
    %v360 = vmul.f32 %v343, %v352
    %v361 = vmul.f32 %v335, %v353
    %v362 = vmul.f32 %v344, %v354
    %v363 = vmul.f32 %v336, %v355
    %v364 = vmul.f32 %v345, %v356
    %v365 = vmul.f32 %v337, %v357
    %v366 = vmul.f32 %v346, %v358
    %v367 = vmul.f32 %v338, %v359
    %v368 = vmul.f32 %v347, %v352
    %v369 = vmul.f32 %v339, %v353
    %v370 = vmul.f32 %v348, %v354
    %v371 = vmul.f32 %v340, %v355
    %v372 = vmul.f32 %v349, %v356
    %v373 = vmul.f32 %v341, %v357
    %v374 = vmul.f32 %v350, %v358
    %v375 = vmul.f32 %v342, %v359
    %v376 = vadd.f32 %v286, %v360
    %v377 = vadd.f32 %v287, %v361
    %v378 = vadd.f32 %v288, %v362
    %v379 = vadd.f32 %v289, %v363
    %v380 = vadd.f32 %v290, %v364
    %v381 = vadd.f32 %v291, %v365
    %v382 = vadd.f32 %v292, %v366
    %v383 = vadd.f32 %v293, %v367
    %v384 = vadd.f32 %v294, %v368
    %v385 = vadd.f32 %v295, %v369
    %v386 = vadd.f32 %v296, %v370
    %v387 = vadd.f32 %v297, %v371
    %v388 = vadd.f32 %v298, %v372
    %v389 = vadd.f32 %v299, %v373
    %v390 = vadd.f32 %v300, %v374
    %v391 = vadd.f32 %v301, %v375
    %392 = vrot.lane.b32.xlu0 %v105, 31
    %v393 = vpop.permute.xlu0 %392
    %394 = vrot.lane.b32.xlu0 %v107, 31
    %v395 = vpop.permute.xlu0 %394
    %396 = vrot.lane.b32.xlu0 %v109, 31
    %v397 = vpop.permute.xlu0 %396
    %398 = vrot.lane.b32.xlu0 %v111, 31
    %v399 = vpop.permute.xlu0 %398
    %400 = vrot.lane.b32.xlu0 %v113, 31
    %v401 = vpop.permute.xlu0 %400
    %402 = vrot.lane.b32.xlu0 %v115, 31
    %v403 = vpop.permute.xlu0 %402
    %404 = vrot.lane.b32.xlu0 %v117, 31
    %v405 = vpop.permute.xlu0 %404
    %406 = vrot.lane.b32.xlu0 %v119, 31
    %v407 = vpop.permute.xlu0 %406
    %408 = vrot.lane.b32.xlu0 %v106, 31
    %v409 = vpop.permute.xlu0 %408
    %410 = vrot.lane.b32.xlu0 %v108, 31
    %v411 = vpop.permute.xlu0 %410
    %412 = vrot.lane.b32.xlu0 %v110, 31
    %v413 = vpop.permute.xlu0 %412
    %414 = vrot.lane.b32.xlu0 %v112, 31
    %v415 = vpop.permute.xlu0 %414
    %416 = vrot.lane.b32.xlu0 %v114, 31
    %v417 = vpop.permute.xlu0 %416
    %418 = vrot.lane.b32.xlu0 %v116, 31
    %v419 = vpop.permute.xlu0 %418
    %420 = vrot.lane.b32.xlu0 %v118, 31
    %v421 = vpop.permute.xlu0 %420
    %422 = vrot.lane.b32.xlu0 %v120, 31
    %v423 = vpop.permute.xlu0 %422
    %vm424 = vcmp.lt.s32.totalorder %v154, 31
    %v425 = vsel %vm424, %v393, %v409
    %v426 = vsel %vm424, %v395, %v411
    %v427 = vsel %vm424, %v397, %v413
    %v428 = vsel %vm424, %v399, %v415
    %v429 = vsel %vm424, %v401, %v417
    %v430 = vsel %vm424, %v403, %v419
    %v431 = vsel %vm424, %v405, %v421
    %v432 = vsel %vm424, %v407, %v423
    %v433 = vsel %vm424, %v409, %v393
    %v434 = vsel %vm424, %v411, %v395
    %v435 = vsel %vm424, %v413, %v397
    %v436 = vsel %vm424, %v415, %v399
    %v437 = vsel %vm424, %v417, %v401
    %v438 = vsel %vm424, %v419, %v403
    %v439 = vsel %vm424, %v421, %v405
    %v440 = vsel %vm424, %v423, %v407
    %s441 = scalar_lea.vmem [#allocation2], 192
    %v442 = vld [vmem:[%s441] sm:$0xff]
    %v443 = vld [vmem:[%s441 + $0x8] sm:$0xff]
    %v444 = vld [vmem:[%s441 + $0x10] sm:$0xff]
    %v445 = vld [vmem:[%s441 + $0x18] sm:$0xff]
    %v446 = vld [vmem:[%s441 + $0x20] sm:$0xff]
    %v447 = vld [vmem:[%s441 + $0x28] sm:$0xff]
    %v448 = vld [vmem:[%s441 + $0x30] sm:$0xff]
    %v449 = vld [vmem:[%s441 + $0x38] sm:$0xff]
    %v450 = vmul.f32 %v433, %v442
    %v451 = vmul.f32 %v425, %v443
    %v452 = vmul.f32 %v434, %v444
    %v453 = vmul.f32 %v426, %v445
    %v454 = vmul.f32 %v435, %v446
    %v455 = vmul.f32 %v427, %v447
    %v456 = vmul.f32 %v436, %v448
    %v457 = vmul.f32 %v428, %v449
    %v458 = vmul.f32 %v437, %v442
    %v459 = vmul.f32 %v429, %v443
    %v460 = vmul.f32 %v438, %v444
    %v461 = vmul.f32 %v430, %v445
    %v462 = vmul.f32 %v439, %v446
    %v463 = vmul.f32 %v431, %v447
    %v464 = vmul.f32 %v440, %v448
    %v465 = vmul.f32 %v432, %v449
    %v466 = vadd.f32 %v376, %v450
    %v467 = vadd.f32 %v377, %v451
    %v468 = vadd.f32 %v378, %v452
    %v469 = vadd.f32 %v379, %v453
    %v470 = vadd.f32 %v380, %v454
    %v471 = vadd.f32 %v381, %v455
    %v472 = vadd.f32 %v382, %v456
    %v473 = vadd.f32 %v383, %v457
    %v474 = vadd.f32 %v384, %v458
    %v475 = vadd.f32 %v385, %v459
    %v476 = vadd.f32 %v386, %v460
    %v477 = vadd.f32 %v387, %v461
    %v478 = vadd.f32 %v388, %v462
    %v479 = vadd.f32 %v389, %v463
    %v480 = vadd.f32 %v390, %v464
    %v481 = vadd.f32 %v391, %v465
    %482 = vrot.lane.b32.xlu0 %v105, 30
    %v483 = vpop.permute.xlu0 %482
    %484 = vrot.lane.b32.xlu0 %v107, 30
    %v485 = vpop.permute.xlu0 %484
    %486 = vrot.lane.b32.xlu0 %v109, 30
    %v487 = vpop.permute.xlu0 %486
    %488 = vrot.lane.b32.xlu0 %v111, 30
    %v489 = vpop.permute.xlu0 %488
    %490 = vrot.lane.b32.xlu0 %v113, 30
    %v491 = vpop.permute.xlu0 %490
    %492 = vrot.lane.b32.xlu0 %v115, 30
    %v493 = vpop.permute.xlu0 %492
    %494 = vrot.lane.b32.xlu0 %v117, 30
    %v495 = vpop.permute.xlu0 %494
    %496 = vrot.lane.b32.xlu0 %v119, 30
    %v497 = vpop.permute.xlu0 %496
    %498 = vrot.lane.b32.xlu0 %v106, 30
    %v499 = vpop.permute.xlu0 %498
    %500 = vrot.lane.b32.xlu0 %v108, 30
    %v501 = vpop.permute.xlu0 %500
    %502 = vrot.lane.b32.xlu0 %v110, 30
    %v503 = vpop.permute.xlu0 %502
    %504 = vrot.lane.b32.xlu0 %v112, 30
    %v505 = vpop.permute.xlu0 %504
    %506 = vrot.lane.b32.xlu0 %v114, 30
    %v507 = vpop.permute.xlu0 %506
    %508 = vrot.lane.b32.xlu0 %v116, 30
    %v509 = vpop.permute.xlu0 %508
    %510 = vrot.lane.b32.xlu0 %v118, 30
    %v511 = vpop.permute.xlu0 %510
    %512 = vrot.lane.b32.xlu0 %v120, 30
    %v513 = vpop.permute.xlu0 %512
    %vm514 = vcmp.lt.s32.totalorder %v154, 30
    %v515 = vsel %vm514, %v483, %v499
    %v516 = vsel %vm514, %v485, %v501
    %v517 = vsel %vm514, %v487, %v503
    %v518 = vsel %vm514, %v489, %v505
    %v519 = vsel %vm514, %v491, %v507
    %v520 = vsel %vm514, %v493, %v509
    %v521 = vsel %vm514, %v495, %v511
    %v522 = vsel %vm514, %v497, %v513
    %v523 = vsel %vm514, %v499, %v483
    %v524 = vsel %vm514, %v501, %v485
    %v525 = vsel %vm514, %v503, %v487
    %v526 = vsel %vm514, %v505, %v489
    %v527 = vsel %vm514, %v507, %v491
    %v528 = vsel %vm514, %v509, %v493
    %v529 = vsel %vm514, %v511, %v495
    %v530 = vsel %vm514, %v513, %v497
    %s531 = scalar_lea.vmem [#allocation2], 256
    %v532 = vld [vmem:[%s531] sm:$0xff]
    %v533 = vld [vmem:[%s531 + $0x8] sm:$0xff]
    %v534 = vld [vmem:[%s531 + $0x10] sm:$0xff]
    %v535 = vld [vmem:[%s531 + $0x18] sm:$0xff]
    %v536 = vld [vmem:[%s531 + $0x20] sm:$0xff]
    %v537 = vld [vmem:[%s531 + $0x28] sm:$0xff]
    %v538 = vld [vmem:[%s531 + $0x30] sm:$0xff]
    %v539 = vld [vmem:[%s531 + $0x38] sm:$0xff]
    %v540 = vmul.f32 %v523, %v532
    %v541 = vmul.f32 %v515, %v533
    %v542 = vmul.f32 %v524, %v534
    %v543 = vmul.f32 %v516, %v535
    %v544 = vmul.f32 %v525, %v536
    %v545 = vmul.f32 %v517, %v537
    %v546 = vmul.f32 %v526, %v538
    %v547 = vmul.f32 %v518, %v539
    %v548 = vmul.f32 %v527, %v532
    %v549 = vmul.f32 %v519, %v533
    %v550 = vmul.f32 %v528, %v534
    %v551 = vmul.f32 %v520, %v535
    %v552 = vmul.f32 %v529, %v536
    %v553 = vmul.f32 %v521, %v537
    %v554 = vmul.f32 %v530, %v538
    %v555 = vmul.f32 %v522, %v539
    %v556 = vadd.f32 %v466, %v540
    %v557 = vadd.f32 %v467, %v541
    %v558 = vadd.f32 %v468, %v542
    %v559 = vadd.f32 %v469, %v543
    %v560 = vadd.f32 %v470, %v544
    %v561 = vadd.f32 %v471, %v545
    %v562 = vadd.f32 %v472, %v546
    %v563 = vadd.f32 %v473, %v547
    %v564 = vadd.f32 %v474, %v548
    %v565 = vadd.f32 %v475, %v549
    %v566 = vadd.f32 %v476, %v550
    %v567 = vadd.f32 %v477, %v551
    %v568 = vadd.f32 %v478, %v552
    %v569 = vadd.f32 %v479, %v553
    %v570 = vadd.f32 %v480, %v554
    %v571 = vadd.f32 %v481, %v555
    %572 = vrot.lane.b32.xlu0 %v105, 18
    %v573 = vpop.permute.xlu0 %572
    %574 = vrot.lane.b32.xlu0 %v107, 18
    %v575 = vpop.permute.xlu0 %574
    %576 = vrot.lane.b32.xlu0 %v109, 18
    %v577 = vpop.permute.xlu0 %576
    %578 = vrot.lane.b32.xlu0 %v111, 18
    %v579 = vpop.permute.xlu0 %578
    %580 = vrot.lane.b32.xlu0 %v113, 18
    %v581 = vpop.permute.xlu0 %580
    %582 = vrot.lane.b32.xlu0 %v115, 18
    %v583 = vpop.permute.xlu0 %582
    %584 = vrot.lane.b32.xlu0 %v117, 18
    %v585 = vpop.permute.xlu0 %584
    %586 = vrot.lane.b32.xlu0 %v119, 18
    %v587 = vpop.permute.xlu0 %586
    %588 = vrot.lane.b32.xlu0 %v106, 18
    %v589 = vpop.permute.xlu0 %588
    %590 = vrot.lane.b32.xlu0 %v108, 18
    %v591 = vpop.permute.xlu0 %590
    %592 = vrot.lane.b32.xlu0 %v110, 18
    %v593 = vpop.permute.xlu0 %592
    %594 = vrot.lane.b32.xlu0 %v112, 18
    %v595 = vpop.permute.xlu0 %594
    %596 = vrot.lane.b32.xlu0 %v114, 18
    %v597 = vpop.permute.xlu0 %596
    %598 = vrot.lane.b32.xlu0 %v116, 18
    %v599 = vpop.permute.xlu0 %598
    %600 = vrot.lane.b32.xlu0 %v118, 18
    %v601 = vpop.permute.xlu0 %600
    %602 = vrot.lane.b32.xlu0 %v120, 18
    %v603 = vpop.permute.xlu0 %602
    %vm604 = vcmp.lt.s32.totalorder %v154, 18
    %v605 = vsel %vm604, %v573, %v589
    %v606 = vsel %vm604, %v575, %v591
    %v607 = vsel %vm604, %v577, %v593
    %v608 = vsel %vm604, %v579, %v595
    %v609 = vsel %vm604, %v581, %v597
    %v610 = vsel %vm604, %v583, %v599
    %v611 = vsel %vm604, %v585, %v601
    %v612 = vsel %vm604, %v587, %v603
    %v613 = vsel %vm604, %v589, %v573
    %v614 = vsel %vm604, %v591, %v575
    %v615 = vsel %vm604, %v593, %v577
    %v616 = vsel %vm604, %v595, %v579
    %v617 = vsel %vm604, %v597, %v581
    %v618 = vsel %vm604, %v599, %v583
    %v619 = vsel %vm604, %v601, %v585
    %v620 = vsel %vm604, %v603, %v587
    %s621 = scalar_lea.vmem [#allocation2], 320
    %v622 = vld [vmem:[%s621] sm:$0xff]
    %v623 = vld [vmem:[%s621 + $0x8] sm:$0xff]
    %v624 = vld [vmem:[%s621 + $0x10] sm:$0xff]
    %v625 = vld [vmem:[%s621 + $0x18] sm:$0xff]
    %v626 = vld [vmem:[%s621 + $0x20] sm:$0xff]
    %v627 = vld [vmem:[%s621 + $0x28] sm:$0xff]
    %v628 = vld [vmem:[%s621 + $0x30] sm:$0xff]
    %v629 = vld [vmem:[%s621 + $0x38] sm:$0xff]
    %v630 = vmul.f32 %v613, %v622
    %v631 = vmul.f32 %v605, %v623
    %v632 = vmul.f32 %v614, %v624
    %v633 = vmul.f32 %v606, %v625
    %v634 = vmul.f32 %v615, %v626
    %v635 = vmul.f32 %v607, %v627
    %v636 = vmul.f32 %v616, %v628
    %v637 = vmul.f32 %v608, %v629
    %v638 = vmul.f32 %v617, %v622
    %v639 = vmul.f32 %v609, %v623
    %v640 = vmul.f32 %v618, %v624
    %v641 = vmul.f32 %v610, %v625
    %v642 = vmul.f32 %v619, %v626
    %v643 = vmul.f32 %v611, %v627
    %v644 = vmul.f32 %v620, %v628
    %v645 = vmul.f32 %v612, %v629
    %v646 = vadd.f32 %v556, %v630
    %v647 = vadd.f32 %v557, %v631
    %v648 = vadd.f32 %v558, %v632
    %v649 = vadd.f32 %v559, %v633
    %v650 = vadd.f32 %v560, %v634
    %v651 = vadd.f32 %v561, %v635
    %v652 = vadd.f32 %v562, %v636
    %v653 = vadd.f32 %v563, %v637
    %v654 = vadd.f32 %v564, %v638
    %v655 = vadd.f32 %v565, %v639
    %v656 = vadd.f32 %v566, %v640
    %v657 = vadd.f32 %v567, %v641
    %v658 = vadd.f32 %v568, %v642
    %v659 = vadd.f32 %v569, %v643
    %v660 = vadd.f32 %v570, %v644
    %v661 = vadd.f32 %v571, %v645
    %662 = vrot.lane.b32.xlu0 %v105, 17
    %v663 = vpop.permute.xlu0 %662
    %664 = vrot.lane.b32.xlu0 %v107, 17
    %v665 = vpop.permute.xlu0 %664
    %666 = vrot.lane.b32.xlu0 %v109, 17
    %v667 = vpop.permute.xlu0 %666
    %668 = vrot.lane.b32.xlu0 %v111, 17
    %v669 = vpop.permute.xlu0 %668
    %670 = vrot.lane.b32.xlu0 %v113, 17
    %v671 = vpop.permute.xlu0 %670
    %672 = vrot.lane.b32.xlu0 %v115, 17
    %v673 = vpop.permute.xlu0 %672
    %674 = vrot.lane.b32.xlu0 %v117, 17
    %v675 = vpop.permute.xlu0 %674
    %676 = vrot.lane.b32.xlu0 %v119, 17
    %v677 = vpop.permute.xlu0 %676
    %678 = vrot.lane.b32.xlu0 %v106, 17
    %v679 = vpop.permute.xlu0 %678
    %680 = vrot.lane.b32.xlu0 %v108, 17
    %v681 = vpop.permute.xlu0 %680
    %682 = vrot.lane.b32.xlu0 %v110, 17
    %v683 = vpop.permute.xlu0 %682
    %684 = vrot.lane.b32.xlu0 %v112, 17
    %v685 = vpop.permute.xlu0 %684
    %686 = vrot.lane.b32.xlu0 %v114, 17
    %v687 = vpop.permute.xlu0 %686
    %688 = vrot.lane.b32.xlu0 %v116, 17
    %v689 = vpop.permute.xlu0 %688
    %690 = vrot.lane.b32.xlu0 %v118, 17
    %v691 = vpop.permute.xlu0 %690
    %692 = vrot.lane.b32.xlu0 %v120, 17
    %v693 = vpop.permute.xlu0 %692
    %vm694 = vcmp.lt.s32.totalorder %v154, 17
    %v695 = vsel %vm694, %v663, %v679
    %v696 = vsel %vm694, %v665, %v681
    %v697 = vsel %vm694, %v667, %v683
    %v698 = vsel %vm694, %v669, %v685
    %v699 = vsel %vm694, %v671, %v687
    %v700 = vsel %vm694, %v673, %v689
    %v701 = vsel %vm694, %v675, %v691
    %v702 = vsel %vm694, %v677, %v693
    %v703 = vsel %vm694, %v679, %v663
    %v704 = vsel %vm694, %v681, %v665
    %v705 = vsel %vm694, %v683, %v667
    %v706 = vsel %vm694, %v685, %v669
    %v707 = vsel %vm694, %v687, %v671
    %v708 = vsel %vm694, %v689, %v673
    %v709 = vsel %vm694, %v691, %v675
    %v710 = vsel %vm694, %v693, %v677
    %s711 = scalar_lea.vmem [#allocation2], 384
    %v712 = vld [vmem:[%s711] sm:$0xff]
    %v713 = vld [vmem:[%s711 + $0x8] sm:$0xff]
    %v714 = vld [vmem:[%s711 + $0x10] sm:$0xff]
    %v715 = vld [vmem:[%s711 + $0x18] sm:$0xff]
    %v716 = vld [vmem:[%s711 + $0x20] sm:$0xff]
    %v717 = vld [vmem:[%s711 + $0x28] sm:$0xff]
    %v718 = vld [vmem:[%s711 + $0x30] sm:$0xff]
    %v719 = vld [vmem:[%s711 + $0x38] sm:$0xff]
    %v720 = vmul.f32 %v703, %v712
    %v721 = vmul.f32 %v695, %v713
    %v722 = vmul.f32 %v704, %v714
    %v723 = vmul.f32 %v696, %v715
    %v724 = vmul.f32 %v705, %v716
    %v725 = vmul.f32 %v697, %v717
    %v726 = vmul.f32 %v706, %v718
    %v727 = vmul.f32 %v698, %v719
    %v728 = vmul.f32 %v707, %v712
    %v729 = vmul.f32 %v699, %v713
    %v730 = vmul.f32 %v708, %v714
    %v731 = vmul.f32 %v700, %v715
    %v732 = vmul.f32 %v709, %v716
    %v733 = vmul.f32 %v701, %v717
    %v734 = vmul.f32 %v710, %v718
    %v735 = vmul.f32 %v702, %v719
    %v736 = vadd.f32 %v720, 0.0
    %v737 = vadd.f32 %v721, 0.0
    %v738 = vadd.f32 %v722, 0.0
    %v739 = vadd.f32 %v723, 0.0
    %v740 = vadd.f32 %v724, 0.0
    %v741 = vadd.f32 %v725, 0.0
    %v742 = vadd.f32 %v726, 0.0
    %v743 = vadd.f32 %v727, 0.0
    %v744 = vadd.f32 %v728, 0.0
    %v745 = vadd.f32 %v729, 0.0
    %v746 = vadd.f32 %v730, 0.0
    %v747 = vadd.f32 %v731, 0.0
    %v748 = vadd.f32 %v732, 0.0
    %v749 = vadd.f32 %v733, 0.0
    %v750 = vadd.f32 %v734, 0.0
    %v751 = vadd.f32 %v735, 0.0
    %s752 = scalar_lea.vmem [#allocation2], 448
    %v753 = vld [vmem:[%s752] sm:$0xff]
    %v754 = vld [vmem:[%s752 + $0x8] sm:$0xff]
    %v755 = vld [vmem:[%s752 + $0x10] sm:$0xff]
    %v756 = vld [vmem:[%s752 + $0x18] sm:$0xff]
    %v757 = vld [vmem:[%s752 + $0x20] sm:$0xff]
    %v758 = vld [vmem:[%s752 + $0x28] sm:$0xff]
    %v759 = vld [vmem:[%s752 + $0x30] sm:$0xff]
    %v760 = vld [vmem:[%s752 + $0x38] sm:$0xff]
    %v761 = vmul.f32 %v703, %v753
    %v762 = vmul.f32 %v695, %v754
    %v763 = vmul.f32 %v704, %v755
    %v764 = vmul.f32 %v696, %v756
    %v765 = vmul.f32 %v705, %v757
    %v766 = vmul.f32 %v697, %v758
    %v767 = vmul.f32 %v706, %v759
    %v768 = vmul.f32 %v698, %v760
    %v769 = vmul.f32 %v707, %v753
    %v770 = vmul.f32 %v699, %v754
    %v771 = vmul.f32 %v708, %v755
    %v772 = vmul.f32 %v700, %v756
    %v773 = vmul.f32 %v709, %v757
    %v774 = vmul.f32 %v701, %v758
    %v775 = vmul.f32 %v710, %v759
    %v776 = vmul.f32 %v702, %v760
    %v777 = vadd.f32 %v646, %v761
    %v778 = vadd.f32 %v647, %v762
    %v779 = vadd.f32 %v648, %v763
    %v780 = vadd.f32 %v649, %v764
    %v781 = vadd.f32 %v650, %v765
    %v782 = vadd.f32 %v651, %v766
    %v783 = vadd.f32 %v652, %v767
    %v784 = vadd.f32 %v653, %v768
    %v785 = vadd.f32 %v654, %v769
    %v786 = vadd.f32 %v655, %v770
    %v787 = vadd.f32 %v656, %v771
    %v788 = vadd.f32 %v657, %v772
    %v789 = vadd.f32 %v658, %v773
    %v790 = vadd.f32 %v659, %v774
    %v791 = vadd.f32 %v660, %v775
    %v792 = vadd.f32 %v661, %v776
    %793 = vrot.lane.b32.xlu0 %v105, 16
    %v794 = vpop.permute.xlu0 %793
    %795 = vrot.lane.b32.xlu0 %v107, 16
    %v796 = vpop.permute.xlu0 %795
    %797 = vrot.lane.b32.xlu0 %v109, 16
    %v798 = vpop.permute.xlu0 %797
    %799 = vrot.lane.b32.xlu0 %v111, 16
    %v800 = vpop.permute.xlu0 %799
    %801 = vrot.lane.b32.xlu0 %v113, 16
    %v802 = vpop.permute.xlu0 %801
    %803 = vrot.lane.b32.xlu0 %v115, 16
    %v804 = vpop.permute.xlu0 %803
    %805 = vrot.lane.b32.xlu0 %v117, 16
    %v806 = vpop.permute.xlu0 %805
    %807 = vrot.lane.b32.xlu0 %v119, 16
    %v808 = vpop.permute.xlu0 %807
    %809 = vrot.lane.b32.xlu0 %v106, 16
    %v810 = vpop.permute.xlu0 %809
    %811 = vrot.lane.b32.xlu0 %v108, 16
    %v812 = vpop.permute.xlu0 %811
    %813 = vrot.lane.b32.xlu0 %v110, 16
    %v814 = vpop.permute.xlu0 %813
    %815 = vrot.lane.b32.xlu0 %v112, 16
    %v816 = vpop.permute.xlu0 %815
    %817 = vrot.lane.b32.xlu0 %v114, 16
    %v818 = vpop.permute.xlu0 %817
    %819 = vrot.lane.b32.xlu0 %v116, 16
    %v820 = vpop.permute.xlu0 %819
    %821 = vrot.lane.b32.xlu0 %v118, 16
    %v822 = vpop.permute.xlu0 %821
    %823 = vrot.lane.b32.xlu0 %v120, 16
    %v824 = vpop.permute.xlu0 %823
    %vm825 = vcmp.lt.s32.totalorder %v154, 16
    %v826 = vsel %vm825, %v794, %v810
    %v827 = vsel %vm825, %v796, %v812
    %v828 = vsel %vm825, %v798, %v814
    %v829 = vsel %vm825, %v800, %v816
    %v830 = vsel %vm825, %v802, %v818
    %v831 = vsel %vm825, %v804, %v820
    %v832 = vsel %vm825, %v806, %v822
    %v833 = vsel %vm825, %v808, %v824
    %v834 = vsel %vm825, %v810, %v794
    %v835 = vsel %vm825, %v812, %v796
    %v836 = vsel %vm825, %v814, %v798
    %v837 = vsel %vm825, %v816, %v800
    %v838 = vsel %vm825, %v818, %v802
    %v839 = vsel %vm825, %v820, %v804
    %v840 = vsel %vm825, %v822, %v806
    %v841 = vsel %vm825, %v824, %v808
    %s842 = scalar_lea.vmem [#allocation2], 512
    %v843 = vld [vmem:[%s842] sm:$0xff]
    %v844 = vld [vmem:[%s842 + $0x8] sm:$0xff]
    %v845 = vld [vmem:[%s842 + $0x10] sm:$0xff]
    %v846 = vld [vmem:[%s842 + $0x18] sm:$0xff]
    %v847 = vld [vmem:[%s842 + $0x20] sm:$0xff]
    %v848 = vld [vmem:[%s842 + $0x28] sm:$0xff]
    %v849 = vld [vmem:[%s842 + $0x30] sm:$0xff]
    %v850 = vld [vmem:[%s842 + $0x38] sm:$0xff]
    %v851 = vmul.f32 %v834, %v843
    %v852 = vmul.f32 %v826, %v844
    %v853 = vmul.f32 %v835, %v845
    %v854 = vmul.f32 %v827, %v846
    %v855 = vmul.f32 %v836, %v847
    %v856 = vmul.f32 %v828, %v848
    %v857 = vmul.f32 %v837, %v849
    %v858 = vmul.f32 %v829, %v850
    %v859 = vmul.f32 %v838, %v843
    %v860 = vmul.f32 %v830, %v844
    %v861 = vmul.f32 %v839, %v845
    %v862 = vmul.f32 %v831, %v846
    %v863 = vmul.f32 %v840, %v847
    %v864 = vmul.f32 %v832, %v848
    %v865 = vmul.f32 %v841, %v849
    %v866 = vmul.f32 %v833, %v850
    %v867 = vadd.f32 %v736, %v851
    %v868 = vadd.f32 %v737, %v852
    %v869 = vadd.f32 %v738, %v853
    %v870 = vadd.f32 %v739, %v854
    %v871 = vadd.f32 %v740, %v855
    %v872 = vadd.f32 %v741, %v856
    %v873 = vadd.f32 %v742, %v857
    %v874 = vadd.f32 %v743, %v858
    %v875 = vadd.f32 %v744, %v859
    %v876 = vadd.f32 %v745, %v860
    %v877 = vadd.f32 %v746, %v861
    %v878 = vadd.f32 %v747, %v862
    %v879 = vadd.f32 %v748, %v863
    %v880 = vadd.f32 %v749, %v864
    %v881 = vadd.f32 %v750, %v865
    %v882 = vadd.f32 %v751, %v866
    %s883 = scalar_lea.vmem [#allocation2], 576
    %v884 = vld [vmem:[%s883] sm:$0xff]
    %v885 = vld [vmem:[%s883 + $0x8] sm:$0xff]
    %v886 = vld [vmem:[%s883 + $0x10] sm:$0xff]
    %v887 = vld [vmem:[%s883 + $0x18] sm:$0xff]
    %v888 = vld [vmem:[%s883 + $0x20] sm:$0xff]
    %v889 = vld [vmem:[%s883 + $0x28] sm:$0xff]
    %v890 = vld [vmem:[%s883 + $0x30] sm:$0xff]
    %v891 = vld [vmem:[%s883 + $0x38] sm:$0xff]
    %v892 = vmul.f32 %v834, %v884
    %v893 = vmul.f32 %v826, %v885
    %v894 = vmul.f32 %v835, %v886
    %v895 = vmul.f32 %v827, %v887
    %v896 = vmul.f32 %v836, %v888
    %v897 = vmul.f32 %v828, %v889
    %v898 = vmul.f32 %v837, %v890
    %v899 = vmul.f32 %v829, %v891
    %v900 = vmul.f32 %v838, %v884
    %v901 = vmul.f32 %v830, %v885
    %v902 = vmul.f32 %v839, %v886
    %v903 = vmul.f32 %v831, %v887
    %v904 = vmul.f32 %v840, %v888
    %v905 = vmul.f32 %v832, %v889
    %v906 = vmul.f32 %v841, %v890
    %v907 = vmul.f32 %v833, %v891
    %v908 = vadd.f32 %v777, %v892
    %v909 = vadd.f32 %v778, %v893
    %v910 = vadd.f32 %v779, %v894
    %v911 = vadd.f32 %v780, %v895
    %v912 = vadd.f32 %v781, %v896
    %v913 = vadd.f32 %v782, %v897
    %v914 = vadd.f32 %v783, %v898
    %v915 = vadd.f32 %v784, %v899
    %v916 = vadd.f32 %v785, %v900
    %v917 = vadd.f32 %v786, %v901
    %v918 = vadd.f32 %v787, %v902
    %v919 = vadd.f32 %v788, %v903
    %v920 = vadd.f32 %v789, %v904
    %v921 = vadd.f32 %v790, %v905
    %v922 = vadd.f32 %v791, %v906
    %v923 = vadd.f32 %v792, %v907
    %924 = vrot.lane.b32.xlu0 %v105, 15
    %v925 = vpop.permute.xlu0 %924
    %926 = vrot.lane.b32.xlu0 %v107, 15
    %v927 = vpop.permute.xlu0 %926
    %928 = vrot.lane.b32.xlu0 %v109, 15
    %v929 = vpop.permute.xlu0 %928
    %930 = vrot.lane.b32.xlu0 %v111, 15
    %v931 = vpop.permute.xlu0 %930
    %932 = vrot.lane.b32.xlu0 %v113, 15
    %v933 = vpop.permute.xlu0 %932
    %934 = vrot.lane.b32.xlu0 %v115, 15
    %v935 = vpop.permute.xlu0 %934
    %936 = vrot.lane.b32.xlu0 %v117, 15
    %v937 = vpop.permute.xlu0 %936
    %938 = vrot.lane.b32.xlu0 %v119, 15
    %v939 = vpop.permute.xlu0 %938
    %940 = vrot.lane.b32.xlu0 %v106, 15
    %v941 = vpop.permute.xlu0 %940
    %942 = vrot.lane.b32.xlu0 %v108, 15
    %v943 = vpop.permute.xlu0 %942
    %944 = vrot.lane.b32.xlu0 %v110, 15
    %v945 = vpop.permute.xlu0 %944
    %946 = vrot.lane.b32.xlu0 %v112, 15
    %v947 = vpop.permute.xlu0 %946
    %948 = vrot.lane.b32.xlu0 %v114, 15
    %v949 = vpop.permute.xlu0 %948
    %950 = vrot.lane.b32.xlu0 %v116, 15
    %v951 = vpop.permute.xlu0 %950
    %952 = vrot.lane.b32.xlu0 %v118, 15
    %v953 = vpop.permute.xlu0 %952
    %954 = vrot.lane.b32.xlu0 %v120, 15
    %v955 = vpop.permute.xlu0 %954
    %vm956 = vcmp.lt.s32.totalorder %v154, 15
    %v957 = vsel %vm956, %v925, %v941
    %v958 = vsel %vm956, %v927, %v943
    %v959 = vsel %vm956, %v929, %v945
    %v960 = vsel %vm956, %v931, %v947
    %v961 = vsel %vm956, %v933, %v949
    %v962 = vsel %vm956, %v935, %v951
    %v963 = vsel %vm956, %v937, %v953
    %v964 = vsel %vm956, %v939, %v955
    %v965 = vsel %vm956, %v941, %v925
    %v966 = vsel %vm956, %v943, %v927
    %v967 = vsel %vm956, %v945, %v929
    %v968 = vsel %vm956, %v947, %v931
    %v969 = vsel %vm956, %v949, %v933
    %v970 = vsel %vm956, %v951, %v935
    %v971 = vsel %vm956, %v953, %v937
    %v972 = vsel %vm956, %v955, %v939
    %s973 = scalar_lea.vmem [#allocation2], 640
    %v974 = vld [vmem:[%s973] sm:$0xff]
    %v975 = vld [vmem:[%s973 + $0x8] sm:$0xff]
    %v976 = vld [vmem:[%s973 + $0x10] sm:$0xff]
    %v977 = vld [vmem:[%s973 + $0x18] sm:$0xff]
    %v978 = vld [vmem:[%s973 + $0x20] sm:$0xff]
    %v979 = vld [vmem:[%s973 + $0x28] sm:$0xff]
    %v980 = vld [vmem:[%s973 + $0x30] sm:$0xff]
    %v981 = vld [vmem:[%s973 + $0x38] sm:$0xff]
    %v982 = vmul.f32 %v965, %v974
    %v983 = vmul.f32 %v957, %v975
    %v984 = vmul.f32 %v966, %v976
    %v985 = vmul.f32 %v958, %v977
    %v986 = vmul.f32 %v967, %v978
    %v987 = vmul.f32 %v959, %v979
    %v988 = vmul.f32 %v968, %v980
    %v989 = vmul.f32 %v960, %v981
    %v990 = vmul.f32 %v969, %v974
    %v991 = vmul.f32 %v961, %v975
    %v992 = vmul.f32 %v970, %v976
    %v993 = vmul.f32 %v962, %v977
    %v994 = vmul.f32 %v971, %v978
    %v995 = vmul.f32 %v963, %v979
    %v996 = vmul.f32 %v972, %v980
    %v997 = vmul.f32 %v964, %v981
    %v998 = vadd.f32 %v867, %v982
    %v999 = vadd.f32 %v868, %v983
    %v1000 = vadd.f32 %v869, %v984
    %v1001 = vadd.f32 %v870, %v985
    %v1002 = vadd.f32 %v871, %v986
    %v1003 = vadd.f32 %v872, %v987
    %v1004 = vadd.f32 %v873, %v988
    %v1005 = vadd.f32 %v874, %v989
    %v1006 = vadd.f32 %v875, %v990
    %v1007 = vadd.f32 %v876, %v991
    %v1008 = vadd.f32 %v877, %v992
    %v1009 = vadd.f32 %v878, %v993
    %v1010 = vadd.f32 %v879, %v994
    %v1011 = vadd.f32 %v880, %v995
    %v1012 = vadd.f32 %v881, %v996
    %v1013 = vadd.f32 %v882, %v997
    %s1014 = scalar_lea.vmem [#allocation2], 704
    %v1015 = vld [vmem:[%s1014] sm:$0xff]
    %v1016 = vld [vmem:[%s1014 + $0x8] sm:$0xff]
    %v1017 = vld [vmem:[%s1014 + $0x10] sm:$0xff]
    %v1018 = vld [vmem:[%s1014 + $0x18] sm:$0xff]
    %v1019 = vld [vmem:[%s1014 + $0x20] sm:$0xff]
    %v1020 = vld [vmem:[%s1014 + $0x28] sm:$0xff]
    %v1021 = vld [vmem:[%s1014 + $0x30] sm:$0xff]
    %v1022 = vld [vmem:[%s1014 + $0x38] sm:$0xff]
    %v1023 = vmul.f32 %v965, %v1015
    %v1024 = vmul.f32 %v957, %v1016
    %v1025 = vmul.f32 %v966, %v1017
    %v1026 = vmul.f32 %v958, %v1018
    %v1027 = vmul.f32 %v967, %v1019
    %v1028 = vmul.f32 %v959, %v1020
    %v1029 = vmul.f32 %v968, %v1021
    %v1030 = vmul.f32 %v960, %v1022
    %v1031 = vmul.f32 %v969, %v1015
    %v1032 = vmul.f32 %v961, %v1016
    %v1033 = vmul.f32 %v970, %v1017
    %v1034 = vmul.f32 %v962, %v1018
    %v1035 = vmul.f32 %v971, %v1019
    %v1036 = vmul.f32 %v963, %v1020
    %v1037 = vmul.f32 %v972, %v1021
    %v1038 = vmul.f32 %v964, %v1022
    %v1039 = vadd.f32 %v908, %v1023
    %v1040 = vadd.f32 %v909, %v1024
    %v1041 = vadd.f32 %v910, %v1025
    %v1042 = vadd.f32 %v911, %v1026
    %v1043 = vadd.f32 %v912, %v1027
    %v1044 = vadd.f32 %v913, %v1028
    %v1045 = vadd.f32 %v914, %v1029
    %v1046 = vadd.f32 %v915, %v1030
    %v1047 = vadd.f32 %v916, %v1031
    %v1048 = vadd.f32 %v917, %v1032
    %v1049 = vadd.f32 %v918, %v1033
    %v1050 = vadd.f32 %v919, %v1034
    %v1051 = vadd.f32 %v920, %v1035
    %v1052 = vadd.f32 %v921, %v1036
    %v1053 = vadd.f32 %v922, %v1037
    %v1054 = vadd.f32 %v923, %v1038
    %1055 = vrot.lane.b32.xlu0 %v105, 14
    %v1056 = vpop.permute.xlu0 %1055
    %1057 = vrot.lane.b32.xlu0 %v107, 14
    %v1058 = vpop.permute.xlu0 %1057
    %1059 = vrot.lane.b32.xlu0 %v109, 14
    %v1060 = vpop.permute.xlu0 %1059
    %1061 = vrot.lane.b32.xlu0 %v111, 14
    %v1062 = vpop.permute.xlu0 %1061
    %1063 = vrot.lane.b32.xlu0 %v113, 14
    %v1064 = vpop.permute.xlu0 %1063
    %1065 = vrot.lane.b32.xlu0 %v115, 14
    %v1066 = vpop.permute.xlu0 %1065
    %1067 = vrot.lane.b32.xlu0 %v117, 14
    %v1068 = vpop.permute.xlu0 %1067
    %1069 = vrot.lane.b32.xlu0 %v119, 14
    %v1070 = vpop.permute.xlu0 %1069
    %1071 = vrot.lane.b32.xlu0 %v106, 14
    %v1072 = vpop.permute.xlu0 %1071
    %1073 = vrot.lane.b32.xlu0 %v108, 14
    %v1074 = vpop.permute.xlu0 %1073
    %1075 = vrot.lane.b32.xlu0 %v110, 14
    %v1076 = vpop.permute.xlu0 %1075
    %1077 = vrot.lane.b32.xlu0 %v112, 14
    %v1078 = vpop.permute.xlu0 %1077
    %1079 = vrot.lane.b32.xlu0 %v114, 14
    %v1080 = vpop.permute.xlu0 %1079
    %1081 = vrot.lane.b32.xlu0 %v116, 14
    %v1082 = vpop.permute.xlu0 %1081
    %1083 = vrot.lane.b32.xlu0 %v118, 14
    %v1084 = vpop.permute.xlu0 %1083
    %1085 = vrot.lane.b32.xlu0 %v120, 14
    %v1086 = vpop.permute.xlu0 %1085
    %vm1087 = vcmp.lt.s32.totalorder %v154, 14
    %v1088 = vsel %vm1087, %v1056, %v1072
    %v1089 = vsel %vm1087, %v1058, %v1074
    %v1090 = vsel %vm1087, %v1060, %v1076
    %v1091 = vsel %vm1087, %v1062, %v1078
    %v1092 = vsel %vm1087, %v1064, %v1080
    %v1093 = vsel %vm1087, %v1066, %v1082
    %v1094 = vsel %vm1087, %v1068, %v1084
    %v1095 = vsel %vm1087, %v1070, %v1086
    %v1096 = vsel %vm1087, %v1072, %v1056
    %v1097 = vsel %vm1087, %v1074, %v1058
    %v1098 = vsel %vm1087, %v1076, %v1060
    %v1099 = vsel %vm1087, %v1078, %v1062
    %v1100 = vsel %vm1087, %v1080, %v1064
    %v1101 = vsel %vm1087, %v1082, %v1066
    %v1102 = vsel %vm1087, %v1084, %v1068
    %v1103 = vsel %vm1087, %v1086, %v1070
    %s1104 = scalar_lea.vmem [#allocation2], 768
    %v1105 = vld [vmem:[%s1104] sm:$0xff]
    %v1106 = vld [vmem:[%s1104 + $0x8] sm:$0xff]
    %v1107 = vld [vmem:[%s1104 + $0x10] sm:$0xff]
    %v1108 = vld [vmem:[%s1104 + $0x18] sm:$0xff]
    %v1109 = vld [vmem:[%s1104 + $0x20] sm:$0xff]
    %v1110 = vld [vmem:[%s1104 + $0x28] sm:$0xff]
    %v1111 = vld [vmem:[%s1104 + $0x30] sm:$0xff]
    %v1112 = vld [vmem:[%s1104 + $0x38] sm:$0xff]
    %v1113 = vmul.f32 %v1096, %v1105
    %v1114 = vmul.f32 %v1088, %v1106
    %v1115 = vmul.f32 %v1097, %v1107
    %v1116 = vmul.f32 %v1089, %v1108
    %v1117 = vmul.f32 %v1098, %v1109
    %v1118 = vmul.f32 %v1090, %v1110
    %v1119 = vmul.f32 %v1099, %v1111
    %v1120 = vmul.f32 %v1091, %v1112
    %v1121 = vmul.f32 %v1100, %v1105
    %v1122 = vmul.f32 %v1092, %v1106
    %v1123 = vmul.f32 %v1101, %v1107
    %v1124 = vmul.f32 %v1093, %v1108
    %v1125 = vmul.f32 %v1102, %v1109
    %v1126 = vmul.f32 %v1094, %v1110
    %v1127 = vmul.f32 %v1103, %v1111
    %v1128 = vmul.f32 %v1095, %v1112
    %v1129 = vadd.f32 %v1039, %v1113
    %v1130 = vadd.f32 %v1040, %v1114
    %v1131 = vadd.f32 %v1041, %v1115
    %v1132 = vadd.f32 %v1042, %v1116
    %v1133 = vadd.f32 %v1043, %v1117
    %v1134 = vadd.f32 %v1044, %v1118
    %v1135 = vadd.f32 %v1045, %v1119
    %v1136 = vadd.f32 %v1046, %v1120
    %v1137 = vadd.f32 %v1047, %v1121
    %v1138 = vadd.f32 %v1048, %v1122
    %v1139 = vadd.f32 %v1049, %v1123
    %v1140 = vadd.f32 %v1050, %v1124
    %v1141 = vadd.f32 %v1051, %v1125
    %v1142 = vadd.f32 %v1052, %v1126
    %v1143 = vadd.f32 %v1053, %v1127
    %v1144 = vadd.f32 %v1054, %v1128
    %1145 = vrot.lane.b32.xlu0 %v105, 2
    %v1146 = vpop.permute.xlu0 %1145
    %1147 = vrot.lane.b32.xlu0 %v107, 2
    %v1148 = vpop.permute.xlu0 %1147
    %1149 = vrot.lane.b32.xlu0 %v109, 2
    %v1150 = vpop.permute.xlu0 %1149
    %1151 = vrot.lane.b32.xlu0 %v111, 2
    %v1152 = vpop.permute.xlu0 %1151
    %1153 = vrot.lane.b32.xlu0 %v113, 2
    %v1154 = vpop.permute.xlu0 %1153
    %1155 = vrot.lane.b32.xlu0 %v115, 2
    %v1156 = vpop.permute.xlu0 %1155
    %1157 = vrot.lane.b32.xlu0 %v117, 2
    %v1158 = vpop.permute.xlu0 %1157
    %1159 = vrot.lane.b32.xlu0 %v119, 2
    %v1160 = vpop.permute.xlu0 %1159
    %1161 = vrot.lane.b32.xlu0 %v106, 2
    %v1162 = vpop.permute.xlu0 %1161
    %1163 = vrot.lane.b32.xlu0 %v108, 2
    %v1164 = vpop.permute.xlu0 %1163
    %1165 = vrot.lane.b32.xlu0 %v110, 2
    %v1166 = vpop.permute.xlu0 %1165
    %1167 = vrot.lane.b32.xlu0 %v112, 2
    %v1168 = vpop.permute.xlu0 %1167
    %1169 = vrot.lane.b32.xlu0 %v114, 2
    %v1170 = vpop.permute.xlu0 %1169
    %1171 = vrot.lane.b32.xlu0 %v116, 2
    %v1172 = vpop.permute.xlu0 %1171
    %1173 = vrot.lane.b32.xlu0 %v118, 2
    %v1174 = vpop.permute.xlu0 %1173
    %1175 = vrot.lane.b32.xlu0 %v120, 2
    %v1176 = vpop.permute.xlu0 %1175
    %vm1177 = vcmp.lt.s32.totalorder %v154, 2
    %v1178 = vsel %vm1177, %v1146, %v1162
    %v1179 = vsel %vm1177, %v1148, %v1164
    %v1180 = vsel %vm1177, %v1150, %v1166
    %v1181 = vsel %vm1177, %v1152, %v1168
    %v1182 = vsel %vm1177, %v1154, %v1170
    %v1183 = vsel %vm1177, %v1156, %v1172
    %v1184 = vsel %vm1177, %v1158, %v1174
    %v1185 = vsel %vm1177, %v1160, %v1176
    %v1186 = vsel %vm1177, %v1162, %v1146
    %v1187 = vsel %vm1177, %v1164, %v1148
    %v1188 = vsel %vm1177, %v1166, %v1150
    %v1189 = vsel %vm1177, %v1168, %v1152
    %v1190 = vsel %vm1177, %v1170, %v1154
    %v1191 = vsel %vm1177, %v1172, %v1156
    %v1192 = vsel %vm1177, %v1174, %v1158
    %v1193 = vsel %vm1177, %v1176, %v1160
    %s1194 = scalar_lea.vmem [#allocation2], 832
    %v1195 = vld [vmem:[%s1194] sm:$0xff]
    %v1196 = vld [vmem:[%s1194 + $0x8] sm:$0xff]
    %v1197 = vld [vmem:[%s1194 + $0x10] sm:$0xff]
    %v1198 = vld [vmem:[%s1194 + $0x18] sm:$0xff]
    %v1199 = vld [vmem:[%s1194 + $0x20] sm:$0xff]
    %v1200 = vld [vmem:[%s1194 + $0x28] sm:$0xff]
    %v1201 = vld [vmem:[%s1194 + $0x30] sm:$0xff]
    %v1202 = vld [vmem:[%s1194 + $0x38] sm:$0xff]
    %v1203 = vmul.f32 %v1186, %v1195
    %v1204 = vmul.f32 %v1178, %v1196
    %v1205 = vmul.f32 %v1187, %v1197
    %v1206 = vmul.f32 %v1179, %v1198
    %v1207 = vmul.f32 %v1188, %v1199
    %v1208 = vmul.f32 %v1180, %v1200
    %v1209 = vmul.f32 %v1189, %v1201
    %v1210 = vmul.f32 %v1181, %v1202
    %v1211 = vmul.f32 %v1190, %v1195
    %v1212 = vmul.f32 %v1182, %v1196
    %v1213 = vmul.f32 %v1191, %v1197
    %v1214 = vmul.f32 %v1183, %v1198
    %v1215 = vmul.f32 %v1192, %v1199
    %v1216 = vmul.f32 %v1184, %v1200
    %v1217 = vmul.f32 %v1193, %v1201
    %v1218 = vmul.f32 %v1185, %v1202
    %v1219 = vadd.f32 %v1129, %v1203
    %v1220 = vadd.f32 %v1130, %v1204
    %v1221 = vadd.f32 %v1131, %v1205
    %v1222 = vadd.f32 %v1132, %v1206
    %v1223 = vadd.f32 %v1133, %v1207
    %v1224 = vadd.f32 %v1134, %v1208
    %v1225 = vadd.f32 %v1135, %v1209
    %v1226 = vadd.f32 %v1136, %v1210
    %v1227 = vadd.f32 %v1137, %v1211
    %v1228 = vadd.f32 %v1138, %v1212
    %v1229 = vadd.f32 %v1139, %v1213
    %v1230 = vadd.f32 %v1140, %v1214
    %v1231 = vadd.f32 %v1141, %v1215
    %v1232 = vadd.f32 %v1142, %v1216
    %v1233 = vadd.f32 %v1143, %v1217
    %v1234 = vadd.f32 %v1144, %v1218
    %1235 = vrot.lane.b32.xlu0 %v105, 1
    %v1236 = vpop.permute.xlu0 %1235
    %1237 = vrot.lane.b32.xlu0 %v107, 1
    %v1238 = vpop.permute.xlu0 %1237
    %1239 = vrot.lane.b32.xlu0 %v109, 1
    %v1240 = vpop.permute.xlu0 %1239
    %1241 = vrot.lane.b32.xlu0 %v111, 1
    %v1242 = vpop.permute.xlu0 %1241
    %1243 = vrot.lane.b32.xlu0 %v113, 1
    %v1244 = vpop.permute.xlu0 %1243
    %1245 = vrot.lane.b32.xlu0 %v115, 1
    %v1246 = vpop.permute.xlu0 %1245
    %1247 = vrot.lane.b32.xlu0 %v117, 1
    %v1248 = vpop.permute.xlu0 %1247
    %1249 = vrot.lane.b32.xlu0 %v119, 1
    %v1250 = vpop.permute.xlu0 %1249
    %1251 = vrot.lane.b32.xlu0 %v106, 1
    %v1252 = vpop.permute.xlu0 %1251
    %1253 = vrot.lane.b32.xlu0 %v108, 1
    %v1254 = vpop.permute.xlu0 %1253
    %1255 = vrot.lane.b32.xlu0 %v110, 1
    %v1256 = vpop.permute.xlu0 %1255
    %1257 = vrot.lane.b32.xlu0 %v112, 1
    %v1258 = vpop.permute.xlu0 %1257
    %1259 = vrot.lane.b32.xlu0 %v114, 1
    %v1260 = vpop.permute.xlu0 %1259
    %1261 = vrot.lane.b32.xlu0 %v116, 1
    %v1262 = vpop.permute.xlu0 %1261
    %1263 = vrot.lane.b32.xlu0 %v118, 1
    %v1264 = vpop.permute.xlu0 %1263
    %1265 = vrot.lane.b32.xlu0 %v120, 1
    %v1266 = vpop.permute.xlu0 %1265
    %vm1267 = vcmp.lt.s32.totalorder %v154, 1
    %v1268 = vsel %vm1267, %v1236, %v1252
    %v1269 = vsel %vm1267, %v1238, %v1254
    %v1270 = vsel %vm1267, %v1240, %v1256
    %v1271 = vsel %vm1267, %v1242, %v1258
    %v1272 = vsel %vm1267, %v1244, %v1260
    %v1273 = vsel %vm1267, %v1246, %v1262
    %v1274 = vsel %vm1267, %v1248, %v1264
    %v1275 = vsel %vm1267, %v1250, %v1266
    %v1276 = vsel %vm1267, %v1252, %v1236
    %v1277 = vsel %vm1267, %v1254, %v1238
    %v1278 = vsel %vm1267, %v1256, %v1240
    %v1279 = vsel %vm1267, %v1258, %v1242
    %v1280 = vsel %vm1267, %v1260, %v1244
    %v1281 = vsel %vm1267, %v1262, %v1246
    %v1282 = vsel %vm1267, %v1264, %v1248
    %v1283 = vsel %vm1267, %v1266, %v1250
    %s1284 = scalar_lea.vmem [#allocation2], 896
    %v1285 = vld [vmem:[%s1284] sm:$0xff]
    %v1286 = vld [vmem:[%s1284 + $0x8] sm:$0xff]
    %v1287 = vld [vmem:[%s1284 + $0x10] sm:$0xff]
    %v1288 = vld [vmem:[%s1284 + $0x18] sm:$0xff]
    %v1289 = vld [vmem:[%s1284 + $0x20] sm:$0xff]
    %v1290 = vld [vmem:[%s1284 + $0x28] sm:$0xff]
    %v1291 = vld [vmem:[%s1284 + $0x30] sm:$0xff]
    %v1292 = vld [vmem:[%s1284 + $0x38] sm:$0xff]
    %v1293 = vmul.f32 %v1276, %v1285
    %v1294 = vmul.f32 %v1268, %v1286
    %v1295 = vmul.f32 %v1277, %v1287
    %v1296 = vmul.f32 %v1269, %v1288
    %v1297 = vmul.f32 %v1278, %v1289
    %v1298 = vmul.f32 %v1270, %v1290
    %v1299 = vmul.f32 %v1279, %v1291
    %v1300 = vmul.f32 %v1271, %v1292
    %v1301 = vmul.f32 %v1280, %v1285
    %v1302 = vmul.f32 %v1272, %v1286
    %v1303 = vmul.f32 %v1281, %v1287
    %v1304 = vmul.f32 %v1273, %v1288
    %v1305 = vmul.f32 %v1282, %v1289
    %v1306 = vmul.f32 %v1274, %v1290
    %v1307 = vmul.f32 %v1283, %v1291
    %v1308 = vmul.f32 %v1275, %v1292
    %v1309 = vadd.f32 %v998, %v1293
    %v1310 = vadd.f32 %v999, %v1294
    %v1311 = vadd.f32 %v1000, %v1295
    %v1312 = vadd.f32 %v1001, %v1296
    %v1313 = vadd.f32 %v1002, %v1297
    %v1314 = vadd.f32 %v1003, %v1298
    %v1315 = vadd.f32 %v1004, %v1299
    %v1316 = vadd.f32 %v1005, %v1300
    %v1317 = vadd.f32 %v1006, %v1301
    %v1318 = vadd.f32 %v1007, %v1302
    %v1319 = vadd.f32 %v1008, %v1303
    %v1320 = vadd.f32 %v1009, %v1304
    %v1321 = vadd.f32 %v1010, %v1305
    %v1322 = vadd.f32 %v1011, %v1306
    %v1323 = vadd.f32 %v1012, %v1307
    %v1324 = vadd.f32 %v1013, %v1308
    %s1325 = scalar_lea.vmem [#allocation2], 960
    %v1326 = vld [vmem:[%s1325] sm:$0xff]
    %v1327 = vld [vmem:[%s1325 + $0x8] sm:$0xff]
    %v1328 = vld [vmem:[%s1325 + $0x10] sm:$0xff]
    %v1329 = vld [vmem:[%s1325 + $0x18] sm:$0xff]
    %v1330 = vld [vmem:[%s1325 + $0x20] sm:$0xff]
    %v1331 = vld [vmem:[%s1325 + $0x28] sm:$0xff]
    %v1332 = vld [vmem:[%s1325 + $0x30] sm:$0xff]
    %v1333 = vld [vmem:[%s1325 + $0x38] sm:$0xff]
    %v1334 = vmul.f32 %v1276, %v1326
    %v1335 = vmul.f32 %v1268, %v1327
    %v1336 = vmul.f32 %v1277, %v1328
    %v1337 = vmul.f32 %v1269, %v1329
    %v1338 = vmul.f32 %v1278, %v1330
    %v1339 = vmul.f32 %v1270, %v1331
    %v1340 = vmul.f32 %v1279, %v1332
    %v1341 = vmul.f32 %v1271, %v1333
    %v1342 = vmul.f32 %v1280, %v1326
    %v1343 = vmul.f32 %v1272, %v1327
    %v1344 = vmul.f32 %v1281, %v1328
    %v1345 = vmul.f32 %v1273, %v1329
    %v1346 = vmul.f32 %v1282, %v1330
    %v1347 = vmul.f32 %v1274, %v1331
    %v1348 = vmul.f32 %v1283, %v1332
    %v1349 = vmul.f32 %v1275, %v1333
    %v1350 = vadd.f32 %v1219, %v1334
    %v1351 = vadd.f32 %v1220, %v1335
    %v1352 = vadd.f32 %v1221, %v1336
    %v1353 = vadd.f32 %v1222, %v1337
    %v1354 = vadd.f32 %v1223, %v1338
    %v1355 = vadd.f32 %v1224, %v1339
    %v1356 = vadd.f32 %v1225, %v1340
    %v1357 = vadd.f32 %v1226, %v1341
    %v1358 = vadd.f32 %v1227, %v1342
    %v1359 = vadd.f32 %v1228, %v1343
    %v1360 = vadd.f32 %v1229, %v1344
    %v1361 = vadd.f32 %v1230, %v1345
    %v1362 = vadd.f32 %v1231, %v1346
    %v1363 = vadd.f32 %v1232, %v1347
    %v1364 = vadd.f32 %v1233, %v1348
    %v1365 = vadd.f32 %v1234, %v1349
    %s1366 = scalar_lea.vmem [#allocation2], 1024
    %v1367 = vld [vmem:[%s1366] sm:$0xff]
    %v1368 = vld [vmem:[%s1366 + $0x8] sm:$0xff]
    %v1369 = vld [vmem:[%s1366 + $0x10] sm:$0xff]
    %v1370 = vld [vmem:[%s1366 + $0x18] sm:$0xff]
    %v1371 = vld [vmem:[%s1366 + $0x20] sm:$0xff]
    %v1372 = vld [vmem:[%s1366 + $0x28] sm:$0xff]
    %v1373 = vld [vmem:[%s1366 + $0x30] sm:$0xff]
    %v1374 = vld [vmem:[%s1366 + $0x38] sm:$0xff]
    %v1375 = vmul.f32 %v105, %v1367
    %v1376 = vmul.f32 %v106, %v1368
    %v1377 = vmul.f32 %v107, %v1369
    %v1378 = vmul.f32 %v108, %v1370
    %v1379 = vmul.f32 %v109, %v1371
    %v1380 = vmul.f32 %v110, %v1372
    %v1381 = vmul.f32 %v111, %v1373
    %v1382 = vmul.f32 %v112, %v1374
    %v1383 = vmul.f32 %v113, %v1367
    %v1384 = vmul.f32 %v114, %v1368
    %v1385 = vmul.f32 %v115, %v1369
    %v1386 = vmul.f32 %v116, %v1370
    %v1387 = vmul.f32 %v117, %v1371
    %v1388 = vmul.f32 %v118, %v1372
    %v1389 = vmul.f32 %v119, %v1373
    %v1390 = vmul.f32 %v120, %v1374
    %v1391 = vadd.f32 %v1309, %v1375
    %v1392 = vadd.f32 %v1310, %v1376
    %v1393 = vadd.f32 %v1311, %v1377
    %v1394 = vadd.f32 %v1312, %v1378
    %v1395 = vadd.f32 %v1313, %v1379
    %v1396 = vadd.f32 %v1314, %v1380
    %v1397 = vadd.f32 %v1315, %v1381
    %v1398 = vadd.f32 %v1316, %v1382
    %v1399 = vadd.f32 %v1317, %v1383
    %v1400 = vadd.f32 %v1318, %v1384
    %v1401 = vadd.f32 %v1319, %v1385
    %v1402 = vadd.f32 %v1320, %v1386
    %v1403 = vadd.f32 %v1321, %v1387
    %v1404 = vadd.f32 %v1322, %v1388
    %v1405 = vadd.f32 %v1323, %v1389
    %v1406 = vadd.f32 %v1324, %v1390
    %s1407 = scalar_lea.vmem [#allocation2], 1088
    %v1408 = vld [vmem:[%s1407] sm:$0xff]
    %v1409 = vld [vmem:[%s1407 + $0x8] sm:$0xff]
    %v1410 = vld [vmem:[%s1407 + $0x10] sm:$0xff]
    %v1411 = vld [vmem:[%s1407 + $0x18] sm:$0xff]
    %v1412 = vld [vmem:[%s1407 + $0x20] sm:$0xff]
    %v1413 = vld [vmem:[%s1407 + $0x28] sm:$0xff]
    %v1414 = vld [vmem:[%s1407 + $0x30] sm:$0xff]
    %v1415 = vld [vmem:[%s1407 + $0x38] sm:$0xff]
    %v1416 = vmul.f32 %v105, %v1408
    %v1417 = vmul.f32 %v106, %v1409
    %v1418 = vmul.f32 %v107, %v1410
    %v1419 = vmul.f32 %v108, %v1411
    %v1420 = vmul.f32 %v109, %v1412
    %v1421 = vmul.f32 %v110, %v1413
    %v1422 = vmul.f32 %v111, %v1414
    %v1423 = vmul.f32 %v112, %v1415
    %v1424 = vmul.f32 %v113, %v1408
    %v1425 = vmul.f32 %v114, %v1409
    %v1426 = vmul.f32 %v115, %v1410
    %v1427 = vmul.f32 %v116, %v1411
    %v1428 = vmul.f32 %v117, %v1412
    %v1429 = vmul.f32 %v118, %v1413
    %v1430 = vmul.f32 %v119, %v1414
    %v1431 = vmul.f32 %v120, %v1415
    %v1432 = vadd.f32 %v1350, %v1416
    %v1433 = vadd.f32 %v1351, %v1417
    %v1434 = vadd.f32 %v1352, %v1418
    %v1435 = vadd.f32 %v1353, %v1419
    %v1436 = vadd.f32 %v1354, %v1420
    %v1437 = vadd.f32 %v1355, %v1421
    %v1438 = vadd.f32 %v1356, %v1422
    %v1439 = vadd.f32 %v1357, %v1423
    %v1440 = vadd.f32 %v1358, %v1424
    %v1441 = vadd.f32 %v1359, %v1425
    %v1442 = vadd.f32 %v1360, %v1426
    %v1443 = vadd.f32 %v1361, %v1427
    %v1444 = vadd.f32 %v1362, %v1428
    %v1445 = vadd.f32 %v1363, %v1429
    %v1446 = vadd.f32 %v1364, %v1430
    %v1447 = vadd.f32 %v1365, %v1431
    %1448 = vrot.lane.b32.xlu0 %v105, 127
    %v1449 = vpop.permute.xlu0 %1448
    %1450 = vrot.lane.b32.xlu0 %v107, 127
    %v1451 = vpop.permute.xlu0 %1450
    %1452 = vrot.lane.b32.xlu0 %v109, 127
    %v1453 = vpop.permute.xlu0 %1452
    %1454 = vrot.lane.b32.xlu0 %v111, 127
    %v1455 = vpop.permute.xlu0 %1454
    %1456 = vrot.lane.b32.xlu0 %v113, 127
    %v1457 = vpop.permute.xlu0 %1456
    %1458 = vrot.lane.b32.xlu0 %v115, 127
    %v1459 = vpop.permute.xlu0 %1458
    %1460 = vrot.lane.b32.xlu0 %v117, 127
    %v1461 = vpop.permute.xlu0 %1460
    %1462 = vrot.lane.b32.xlu0 %v119, 127
    %v1463 = vpop.permute.xlu0 %1462
    %1464 = vrot.lane.b32.xlu0 %v106, 127
    %v1465 = vpop.permute.xlu0 %1464
    %1466 = vrot.lane.b32.xlu0 %v108, 127
    %v1467 = vpop.permute.xlu0 %1466
    %1468 = vrot.lane.b32.xlu0 %v110, 127
    %v1469 = vpop.permute.xlu0 %1468
    %1470 = vrot.lane.b32.xlu0 %v112, 127
    %v1471 = vpop.permute.xlu0 %1470
    %1472 = vrot.lane.b32.xlu0 %v114, 127
    %v1473 = vpop.permute.xlu0 %1472
    %1474 = vrot.lane.b32.xlu0 %v116, 127
    %v1475 = vpop.permute.xlu0 %1474
    %1476 = vrot.lane.b32.xlu0 %v118, 127
    %v1477 = vpop.permute.xlu0 %1476
    %1478 = vrot.lane.b32.xlu0 %v120, 127
    %v1479 = vpop.permute.xlu0 %1478
    %vm1480 = vcmp.lt.s32.totalorder %v154, 127
    %v1481 = vsel %vm1480, %v1449, %v1465
    %v1482 = vsel %vm1480, %v1451, %v1467
    %v1483 = vsel %vm1480, %v1453, %v1469
    %v1484 = vsel %vm1480, %v1455, %v1471
    %v1485 = vsel %vm1480, %v1457, %v1473
    %v1486 = vsel %vm1480, %v1459, %v1475
    %v1487 = vsel %vm1480, %v1461, %v1477
    %v1488 = vsel %vm1480, %v1463, %v1479
    %v1489 = vsel %vm1480, %v1465, %v1449
    %v1490 = vsel %vm1480, %v1467, %v1451
    %v1491 = vsel %vm1480, %v1469, %v1453
    %v1492 = vsel %vm1480, %v1471, %v1455
    %v1493 = vsel %vm1480, %v1473, %v1457
    %v1494 = vsel %vm1480, %v1475, %v1459
    %v1495 = vsel %vm1480, %v1477, %v1461
    %v1496 = vsel %vm1480, %v1479, %v1463
    %s1497 = scalar_lea.vmem [#allocation2], 1152
    %v1498 = vld [vmem:[%s1497] sm:$0xff]
    %v1499 = vld [vmem:[%s1497 + $0x8] sm:$0xff]
    %v1500 = vld [vmem:[%s1497 + $0x10] sm:$0xff]
    %v1501 = vld [vmem:[%s1497 + $0x18] sm:$0xff]
    %v1502 = vld [vmem:[%s1497 + $0x20] sm:$0xff]
    %v1503 = vld [vmem:[%s1497 + $0x28] sm:$0xff]
    %v1504 = vld [vmem:[%s1497 + $0x30] sm:$0xff]
    %v1505 = vld [vmem:[%s1497 + $0x38] sm:$0xff]
    %v1506 = vmul.f32 %v1481, %v1498
    %v1507 = vmul.f32 %v1489, %v1499
    %v1508 = vmul.f32 %v1482, %v1500
    %v1509 = vmul.f32 %v1490, %v1501
    %v1510 = vmul.f32 %v1483, %v1502
    %v1511 = vmul.f32 %v1491, %v1503
    %v1512 = vmul.f32 %v1484, %v1504
    %v1513 = vmul.f32 %v1492, %v1505
    %v1514 = vmul.f32 %v1485, %v1498
    %v1515 = vmul.f32 %v1493, %v1499
    %v1516 = vmul.f32 %v1486, %v1500
    %v1517 = vmul.f32 %v1494, %v1501
    %v1518 = vmul.f32 %v1487, %v1502
    %v1519 = vmul.f32 %v1495, %v1503
    %v1520 = vmul.f32 %v1488, %v1504
    %v1521 = vmul.f32 %v1496, %v1505
    %v1522 = vadd.f32 %v1391, %v1506
    %v1523 = vadd.f32 %v1392, %v1507
    %v1524 = vadd.f32 %v1393, %v1508
    %v1525 = vadd.f32 %v1394, %v1509
    %v1526 = vadd.f32 %v1395, %v1510
    %v1527 = vadd.f32 %v1396, %v1511
    %v1528 = vadd.f32 %v1397, %v1512
    %v1529 = vadd.f32 %v1398, %v1513
    %v1530 = vadd.f32 %v1399, %v1514
    %v1531 = vadd.f32 %v1400, %v1515
    %v1532 = vadd.f32 %v1401, %v1516
    %v1533 = vadd.f32 %v1402, %v1517
    %v1534 = vadd.f32 %v1403, %v1518
    %v1535 = vadd.f32 %v1404, %v1519
    %v1536 = vadd.f32 %v1405, %v1520
    %v1537 = vadd.f32 %v1406, %v1521
    %s1538 = scalar_lea.vmem [#allocation2], 1216
    %v1539 = vld [vmem:[%s1538] sm:$0xff]
    %v1540 = vld [vmem:[%s1538 + $0x8] sm:$0xff]
    %v1541 = vld [vmem:[%s1538 + $0x10] sm:$0xff]
    %v1542 = vld [vmem:[%s1538 + $0x18] sm:$0xff]
    %v1543 = vld [vmem:[%s1538 + $0x20] sm:$0xff]
    %v1544 = vld [vmem:[%s1538 + $0x28] sm:$0xff]
    %v1545 = vld [vmem:[%s1538 + $0x30] sm:$0xff]
    %v1546 = vld [vmem:[%s1538 + $0x38] sm:$0xff]
    %v1547 = vmul.f32 %v1481, %v1539
    %v1548 = vmul.f32 %v1489, %v1540
    %v1549 = vmul.f32 %v1482, %v1541
    %v1550 = vmul.f32 %v1490, %v1542
    %v1551 = vmul.f32 %v1483, %v1543
    %v1552 = vmul.f32 %v1491, %v1544
    %v1553 = vmul.f32 %v1484, %v1545
    %v1554 = vmul.f32 %v1492, %v1546
    %v1555 = vmul.f32 %v1485, %v1539
    %v1556 = vmul.f32 %v1493, %v1540
    %v1557 = vmul.f32 %v1486, %v1541
    %v1558 = vmul.f32 %v1494, %v1542
    %v1559 = vmul.f32 %v1487, %v1543
    %v1560 = vmul.f32 %v1495, %v1544
    %v1561 = vmul.f32 %v1488, %v1545
    %v1562 = vmul.f32 %v1496, %v1546
    %v1563 = vadd.f32 %v1432, %v1547
    %v1564 = vadd.f32 %v1433, %v1548
    %v1565 = vadd.f32 %v1434, %v1549
    %v1566 = vadd.f32 %v1435, %v1550
    %v1567 = vadd.f32 %v1436, %v1551
    %v1568 = vadd.f32 %v1437, %v1552
    %v1569 = vadd.f32 %v1438, %v1553
    %v1570 = vadd.f32 %v1439, %v1554
    %v1571 = vadd.f32 %v1440, %v1555
    %v1572 = vadd.f32 %v1441, %v1556
    %v1573 = vadd.f32 %v1442, %v1557
    %v1574 = vadd.f32 %v1443, %v1558
    %v1575 = vadd.f32 %v1444, %v1559
    %v1576 = vadd.f32 %v1445, %v1560
    %v1577 = vadd.f32 %v1446, %v1561
    %v1578 = vadd.f32 %v1447, %v1562
    %1579 = vrot.lane.b32.xlu0 %v105, 126
    %v1580 = vpop.permute.xlu0 %1579
    %1581 = vrot.lane.b32.xlu0 %v107, 126
    %v1582 = vpop.permute.xlu0 %1581
    %1583 = vrot.lane.b32.xlu0 %v109, 126
    %v1584 = vpop.permute.xlu0 %1583
    %1585 = vrot.lane.b32.xlu0 %v111, 126
    %v1586 = vpop.permute.xlu0 %1585
    %1587 = vrot.lane.b32.xlu0 %v113, 126
    %v1588 = vpop.permute.xlu0 %1587
    %1589 = vrot.lane.b32.xlu0 %v115, 126
    %v1590 = vpop.permute.xlu0 %1589
    %1591 = vrot.lane.b32.xlu0 %v117, 126
    %v1592 = vpop.permute.xlu0 %1591
    %1593 = vrot.lane.b32.xlu0 %v119, 126
    %v1594 = vpop.permute.xlu0 %1593
    %1595 = vrot.lane.b32.xlu0 %v106, 126
    %v1596 = vpop.permute.xlu0 %1595
    %1597 = vrot.lane.b32.xlu0 %v108, 126
    %v1598 = vpop.permute.xlu0 %1597
    %1599 = vrot.lane.b32.xlu0 %v110, 126
    %v1600 = vpop.permute.xlu0 %1599
    %1601 = vrot.lane.b32.xlu0 %v112, 126
    %v1602 = vpop.permute.xlu0 %1601
    %1603 = vrot.lane.b32.xlu0 %v114, 126
    %v1604 = vpop.permute.xlu0 %1603
    %1605 = vrot.lane.b32.xlu0 %v116, 126
    %v1606 = vpop.permute.xlu0 %1605
    %1607 = vrot.lane.b32.xlu0 %v118, 126
    %v1608 = vpop.permute.xlu0 %1607
    %1609 = vrot.lane.b32.xlu0 %v120, 126
    %v1610 = vpop.permute.xlu0 %1609
    %vm1611 = vcmp.lt.s32.totalorder %v154, 126
    %v1612 = vsel %vm1611, %v1580, %v1596
    %v1613 = vsel %vm1611, %v1582, %v1598
    %v1614 = vsel %vm1611, %v1584, %v1600
    %v1615 = vsel %vm1611, %v1586, %v1602
    %v1616 = vsel %vm1611, %v1588, %v1604
    %v1617 = vsel %vm1611, %v1590, %v1606
    %v1618 = vsel %vm1611, %v1592, %v1608
    %v1619 = vsel %vm1611, %v1594, %v1610
    %v1620 = vsel %vm1611, %v1596, %v1580
    %v1621 = vsel %vm1611, %v1598, %v1582
    %v1622 = vsel %vm1611, %v1600, %v1584
    %v1623 = vsel %vm1611, %v1602, %v1586
    %v1624 = vsel %vm1611, %v1604, %v1588
    %v1625 = vsel %vm1611, %v1606, %v1590
    %v1626 = vsel %vm1611, %v1608, %v1592
    %v1627 = vsel %vm1611, %v1610, %v1594
    %s1628 = scalar_lea.vmem [#allocation2], 1280
    %v1629 = vld [vmem:[%s1628] sm:$0xff]
    %v1630 = vld [vmem:[%s1628 + $0x8] sm:$0xff]
    %v1631 = vld [vmem:[%s1628 + $0x10] sm:$0xff]
    %v1632 = vld [vmem:[%s1628 + $0x18] sm:$0xff]
    %v1633 = vld [vmem:[%s1628 + $0x20] sm:$0xff]
    %v1634 = vld [vmem:[%s1628 + $0x28] sm:$0xff]
    %v1635 = vld [vmem:[%s1628 + $0x30] sm:$0xff]
    %v1636 = vld [vmem:[%s1628 + $0x38] sm:$0xff]
    %v1637 = vmul.f32 %v1612, %v1629
    %v1638 = vmul.f32 %v1620, %v1630
    %v1639 = vmul.f32 %v1613, %v1631
    %v1640 = vmul.f32 %v1621, %v1632
    %v1641 = vmul.f32 %v1614, %v1633
    %v1642 = vmul.f32 %v1622, %v1634
    %v1643 = vmul.f32 %v1615, %v1635
    %v1644 = vmul.f32 %v1623, %v1636
    %v1645 = vmul.f32 %v1616, %v1629
    %v1646 = vmul.f32 %v1624, %v1630
    %v1647 = vmul.f32 %v1617, %v1631
    %v1648 = vmul.f32 %v1625, %v1632
    %v1649 = vmul.f32 %v1618, %v1633
    %v1650 = vmul.f32 %v1626, %v1634
    %v1651 = vmul.f32 %v1619, %v1635
    %v1652 = vmul.f32 %v1627, %v1636
    %v1653 = vadd.f32 %v1563, %v1637
    %v1654 = vadd.f32 %v1564, %v1638
    %v1655 = vadd.f32 %v1565, %v1639
    %v1656 = vadd.f32 %v1566, %v1640
    %v1657 = vadd.f32 %v1567, %v1641
    %v1658 = vadd.f32 %v1568, %v1642
    %v1659 = vadd.f32 %v1569, %v1643
    %v1660 = vadd.f32 %v1570, %v1644
    %v1661 = vadd.f32 %v1571, %v1645
    %v1662 = vadd.f32 %v1572, %v1646
    %v1663 = vadd.f32 %v1573, %v1647
    %v1664 = vadd.f32 %v1574, %v1648
    %v1665 = vadd.f32 %v1575, %v1649
    %v1666 = vadd.f32 %v1576, %v1650
    %v1667 = vadd.f32 %v1577, %v1651
    %v1668 = vadd.f32 %v1578, %v1652
    %1669 = vrot.lane.b32.xlu0 %v105, 114
    %v1670 = vpop.permute.xlu0 %1669
    %1671 = vrot.lane.b32.xlu0 %v107, 114
    %v1672 = vpop.permute.xlu0 %1671
    %1673 = vrot.lane.b32.xlu0 %v109, 114
    %v1674 = vpop.permute.xlu0 %1673
    %1675 = vrot.lane.b32.xlu0 %v111, 114
    %v1676 = vpop.permute.xlu0 %1675
    %1677 = vrot.lane.b32.xlu0 %v113, 114
    %v1678 = vpop.permute.xlu0 %1677
    %1679 = vrot.lane.b32.xlu0 %v115, 114
    %v1680 = vpop.permute.xlu0 %1679
    %1681 = vrot.lane.b32.xlu0 %v117, 114
    %v1682 = vpop.permute.xlu0 %1681
    %1683 = vrot.lane.b32.xlu0 %v119, 114
    %v1684 = vpop.permute.xlu0 %1683
    %1685 = vrot.lane.b32.xlu0 %v106, 114
    %v1686 = vpop.permute.xlu0 %1685
    %1687 = vrot.lane.b32.xlu0 %v108, 114
    %v1688 = vpop.permute.xlu0 %1687
    %1689 = vrot.lane.b32.xlu0 %v110, 114
    %v1690 = vpop.permute.xlu0 %1689
    %1691 = vrot.lane.b32.xlu0 %v112, 114
    %v1692 = vpop.permute.xlu0 %1691
    %1693 = vrot.lane.b32.xlu0 %v114, 114
    %v1694 = vpop.permute.xlu0 %1693
    %1695 = vrot.lane.b32.xlu0 %v116, 114
    %v1696 = vpop.permute.xlu0 %1695
    %1697 = vrot.lane.b32.xlu0 %v118, 114
    %v1698 = vpop.permute.xlu0 %1697
    %1699 = vrot.lane.b32.xlu0 %v120, 114
    %v1700 = vpop.permute.xlu0 %1699
    %vm1701 = vcmp.lt.s32.totalorder %v154, 114
    %v1702 = vsel %vm1701, %v1670, %v1686
    %v1703 = vsel %vm1701, %v1672, %v1688
    %v1704 = vsel %vm1701, %v1674, %v1690
    %v1705 = vsel %vm1701, %v1676, %v1692
    %v1706 = vsel %vm1701, %v1678, %v1694
    %v1707 = vsel %vm1701, %v1680, %v1696
    %v1708 = vsel %vm1701, %v1682, %v1698
    %v1709 = vsel %vm1701, %v1684, %v1700
    %v1710 = vsel %vm1701, %v1686, %v1670
    %v1711 = vsel %vm1701, %v1688, %v1672
    %v1712 = vsel %vm1701, %v1690, %v1674
    %v1713 = vsel %vm1701, %v1692, %v1676
    %v1714 = vsel %vm1701, %v1694, %v1678
    %v1715 = vsel %vm1701, %v1696, %v1680
    %v1716 = vsel %vm1701, %v1698, %v1682
    %v1717 = vsel %vm1701, %v1700, %v1684
    %s1718 = scalar_lea.vmem [#allocation2], 1344
    %v1719 = vld [vmem:[%s1718] sm:$0xff]
    %v1720 = vld [vmem:[%s1718 + $0x8] sm:$0xff]
    %v1721 = vld [vmem:[%s1718 + $0x10] sm:$0xff]
    %v1722 = vld [vmem:[%s1718 + $0x18] sm:$0xff]
    %v1723 = vld [vmem:[%s1718 + $0x20] sm:$0xff]
    %v1724 = vld [vmem:[%s1718 + $0x28] sm:$0xff]
    %v1725 = vld [vmem:[%s1718 + $0x30] sm:$0xff]
    %v1726 = vld [vmem:[%s1718 + $0x38] sm:$0xff]
    %v1727 = vmul.f32 %v1702, %v1719
    %v1728 = vmul.f32 %v1710, %v1720
    %v1729 = vmul.f32 %v1703, %v1721
    %v1730 = vmul.f32 %v1711, %v1722
    %v1731 = vmul.f32 %v1704, %v1723
    %v1732 = vmul.f32 %v1712, %v1724
    %v1733 = vmul.f32 %v1705, %v1725
    %v1734 = vmul.f32 %v1713, %v1726
    %v1735 = vmul.f32 %v1706, %v1719
    %v1736 = vmul.f32 %v1714, %v1720
    %v1737 = vmul.f32 %v1707, %v1721
    %v1738 = vmul.f32 %v1715, %v1722
    %v1739 = vmul.f32 %v1708, %v1723
    %v1740 = vmul.f32 %v1716, %v1724
    %v1741 = vmul.f32 %v1709, %v1725
    %v1742 = vmul.f32 %v1717, %v1726
    %v1743 = vadd.f32 %v1653, %v1727
    %v1744 = vadd.f32 %v1654, %v1728
    %v1745 = vadd.f32 %v1655, %v1729
    %v1746 = vadd.f32 %v1656, %v1730
    %v1747 = vadd.f32 %v1657, %v1731
    %v1748 = vadd.f32 %v1658, %v1732
    %v1749 = vadd.f32 %v1659, %v1733
    %v1750 = vadd.f32 %v1660, %v1734
    %v1751 = vadd.f32 %v1661, %v1735
    %v1752 = vadd.f32 %v1662, %v1736
    %v1753 = vadd.f32 %v1663, %v1737
    %v1754 = vadd.f32 %v1664, %v1738
    %v1755 = vadd.f32 %v1665, %v1739
    %v1756 = vadd.f32 %v1666, %v1740
    %v1757 = vadd.f32 %v1667, %v1741
    %v1758 = vadd.f32 %v1668, %v1742
    %1759 = vrot.lane.b32.xlu0 %v105, 113
    %v1760 = vpop.permute.xlu0 %1759
    %1761 = vrot.lane.b32.xlu0 %v107, 113
    %v1762 = vpop.permute.xlu0 %1761
    %1763 = vrot.lane.b32.xlu0 %v109, 113
    %v1764 = vpop.permute.xlu0 %1763
    %1765 = vrot.lane.b32.xlu0 %v111, 113
    %v1766 = vpop.permute.xlu0 %1765
    %1767 = vrot.lane.b32.xlu0 %v113, 113
    %v1768 = vpop.permute.xlu0 %1767
    %1769 = vrot.lane.b32.xlu0 %v115, 113
    %v1770 = vpop.permute.xlu0 %1769
    %1771 = vrot.lane.b32.xlu0 %v117, 113
    %v1772 = vpop.permute.xlu0 %1771
    %1773 = vrot.lane.b32.xlu0 %v119, 113
    %v1774 = vpop.permute.xlu0 %1773
    %1775 = vrot.lane.b32.xlu0 %v106, 113
    %v1776 = vpop.permute.xlu0 %1775
    %1777 = vrot.lane.b32.xlu0 %v108, 113
    %v1778 = vpop.permute.xlu0 %1777
    %1779 = vrot.lane.b32.xlu0 %v110, 113
    %v1780 = vpop.permute.xlu0 %1779
    %1781 = vrot.lane.b32.xlu0 %v112, 113
    %v1782 = vpop.permute.xlu0 %1781
    %1783 = vrot.lane.b32.xlu0 %v114, 113
    %v1784 = vpop.permute.xlu0 %1783
    %1785 = vrot.lane.b32.xlu0 %v116, 113
    %v1786 = vpop.permute.xlu0 %1785
    %1787 = vrot.lane.b32.xlu0 %v118, 113
    %v1788 = vpop.permute.xlu0 %1787
    %1789 = vrot.lane.b32.xlu0 %v120, 113
    %v1790 = vpop.permute.xlu0 %1789
    %vm1791 = vcmp.lt.s32.totalorder %v154, 113
    %v1792 = vsel %vm1791, %v1760, %v1776
    %v1793 = vsel %vm1791, %v1762, %v1778
    %v1794 = vsel %vm1791, %v1764, %v1780
    %v1795 = vsel %vm1791, %v1766, %v1782
    %v1796 = vsel %vm1791, %v1768, %v1784
    %v1797 = vsel %vm1791, %v1770, %v1786
    %v1798 = vsel %vm1791, %v1772, %v1788
    %v1799 = vsel %vm1791, %v1774, %v1790
    %v1800 = vsel %vm1791, %v1776, %v1760
    %v1801 = vsel %vm1791, %v1778, %v1762
    %v1802 = vsel %vm1791, %v1780, %v1764
    %v1803 = vsel %vm1791, %v1782, %v1766
    %v1804 = vsel %vm1791, %v1784, %v1768
    %v1805 = vsel %vm1791, %v1786, %v1770
    %v1806 = vsel %vm1791, %v1788, %v1772
    %v1807 = vsel %vm1791, %v1790, %v1774
    %s1808 = scalar_lea.vmem [#allocation2], 1408
    %v1809 = vld [vmem:[%s1808] sm:$0xff]
    %v1810 = vld [vmem:[%s1808 + $0x8] sm:$0xff]
    %v1811 = vld [vmem:[%s1808 + $0x10] sm:$0xff]
    %v1812 = vld [vmem:[%s1808 + $0x18] sm:$0xff]
    %v1813 = vld [vmem:[%s1808 + $0x20] sm:$0xff]
    %v1814 = vld [vmem:[%s1808 + $0x28] sm:$0xff]
    %v1815 = vld [vmem:[%s1808 + $0x30] sm:$0xff]
    %v1816 = vld [vmem:[%s1808 + $0x38] sm:$0xff]
    %v1817 = vmul.f32 %v1792, %v1809
    %v1818 = vmul.f32 %v1800, %v1810
    %v1819 = vmul.f32 %v1793, %v1811
    %v1820 = vmul.f32 %v1801, %v1812
    %v1821 = vmul.f32 %v1794, %v1813
    %v1822 = vmul.f32 %v1802, %v1814
    %v1823 = vmul.f32 %v1795, %v1815
    %v1824 = vmul.f32 %v1803, %v1816
    %v1825 = vmul.f32 %v1796, %v1809
    %v1826 = vmul.f32 %v1804, %v1810
    %v1827 = vmul.f32 %v1797, %v1811
    %v1828 = vmul.f32 %v1805, %v1812
    %v1829 = vmul.f32 %v1798, %v1813
    %v1830 = vmul.f32 %v1806, %v1814
    %v1831 = vmul.f32 %v1799, %v1815
    %v1832 = vmul.f32 %v1807, %v1816
    %v1833 = vadd.f32 %v1522, %v1817
    %v1834 = vadd.f32 %v1523, %v1818
    %v1835 = vadd.f32 %v1524, %v1819
    %v1836 = vadd.f32 %v1525, %v1820
    %v1837 = vadd.f32 %v1526, %v1821
    %v1838 = vadd.f32 %v1527, %v1822
    %v1839 = vadd.f32 %v1528, %v1823
    %v1840 = vadd.f32 %v1529, %v1824
    %v1841 = vadd.f32 %v1530, %v1825
    %v1842 = vadd.f32 %v1531, %v1826
    %v1843 = vadd.f32 %v1532, %v1827
    %v1844 = vadd.f32 %v1533, %v1828
    %v1845 = vadd.f32 %v1534, %v1829
    %v1846 = vadd.f32 %v1535, %v1830
    %v1847 = vadd.f32 %v1536, %v1831
    %v1848 = vadd.f32 %v1537, %v1832
    %s1849 = scalar_lea.vmem [#allocation2], 1472
    %v1850 = vld [vmem:[%s1849] sm:$0xff]
    %v1851 = vld [vmem:[%s1849 + $0x8] sm:$0xff]
    %v1852 = vld [vmem:[%s1849 + $0x10] sm:$0xff]
    %v1853 = vld [vmem:[%s1849 + $0x18] sm:$0xff]
    %v1854 = vld [vmem:[%s1849 + $0x20] sm:$0xff]
    %v1855 = vld [vmem:[%s1849 + $0x28] sm:$0xff]
    %v1856 = vld [vmem:[%s1849 + $0x30] sm:$0xff]
    %v1857 = vld [vmem:[%s1849 + $0x38] sm:$0xff]
    %v1858 = vmul.f32 %v1792, %v1850
    %v1859 = vmul.f32 %v1800, %v1851
    %v1860 = vmul.f32 %v1793, %v1852
    %v1861 = vmul.f32 %v1801, %v1853
    %v1862 = vmul.f32 %v1794, %v1854
    %v1863 = vmul.f32 %v1802, %v1855
    %v1864 = vmul.f32 %v1795, %v1856
    %v1865 = vmul.f32 %v1803, %v1857
    %v1866 = vmul.f32 %v1796, %v1850
    %v1867 = vmul.f32 %v1804, %v1851
    %v1868 = vmul.f32 %v1797, %v1852
    %v1869 = vmul.f32 %v1805, %v1853
    %v1870 = vmul.f32 %v1798, %v1854
    %v1871 = vmul.f32 %v1806, %v1855
    %v1872 = vmul.f32 %v1799, %v1856
    %v1873 = vmul.f32 %v1807, %v1857
    %v1874 = vadd.f32 %v1743, %v1858
    %v1875 = vadd.f32 %v1744, %v1859
    %v1876 = vadd.f32 %v1745, %v1860
    %v1877 = vadd.f32 %v1746, %v1861
    %v1878 = vadd.f32 %v1747, %v1862
    %v1879 = vadd.f32 %v1748, %v1863
    %v1880 = vadd.f32 %v1749, %v1864
    %v1881 = vadd.f32 %v1750, %v1865
    %v1882 = vadd.f32 %v1751, %v1866
    %v1883 = vadd.f32 %v1752, %v1867
    %v1884 = vadd.f32 %v1753, %v1868
    %v1885 = vadd.f32 %v1754, %v1869
    %v1886 = vadd.f32 %v1755, %v1870
    %v1887 = vadd.f32 %v1756, %v1871
    %v1888 = vadd.f32 %v1757, %v1872
    %v1889 = vadd.f32 %v1758, %v1873
    %1890 = vrot.lane.b32.xlu0 %v105, 112
    %v1891 = vpop.permute.xlu0 %1890
    %1892 = vrot.lane.b32.xlu0 %v107, 112
    %v1893 = vpop.permute.xlu0 %1892
    %1894 = vrot.lane.b32.xlu0 %v109, 112
    %v1895 = vpop.permute.xlu0 %1894
    %1896 = vrot.lane.b32.xlu0 %v111, 112
    %v1897 = vpop.permute.xlu0 %1896
    %1898 = vrot.lane.b32.xlu0 %v113, 112
    %v1899 = vpop.permute.xlu0 %1898
    %1900 = vrot.lane.b32.xlu0 %v115, 112
    %v1901 = vpop.permute.xlu0 %1900
    %1902 = vrot.lane.b32.xlu0 %v117, 112
    %v1903 = vpop.permute.xlu0 %1902
    %1904 = vrot.lane.b32.xlu0 %v119, 112
    %v1905 = vpop.permute.xlu0 %1904
    %1906 = vrot.lane.b32.xlu0 %v106, 112
    %v1907 = vpop.permute.xlu0 %1906
    %1908 = vrot.lane.b32.xlu0 %v108, 112
    %v1909 = vpop.permute.xlu0 %1908
    %1910 = vrot.lane.b32.xlu0 %v110, 112
    %v1911 = vpop.permute.xlu0 %1910
    %1912 = vrot.lane.b32.xlu0 %v112, 112
    %v1913 = vpop.permute.xlu0 %1912
    %1914 = vrot.lane.b32.xlu0 %v114, 112
    %v1915 = vpop.permute.xlu0 %1914
    %1916 = vrot.lane.b32.xlu0 %v116, 112
    %v1917 = vpop.permute.xlu0 %1916
    %1918 = vrot.lane.b32.xlu0 %v118, 112
    %v1919 = vpop.permute.xlu0 %1918
    %1920 = vrot.lane.b32.xlu0 %v120, 112
    %v1921 = vpop.permute.xlu0 %1920
    %vm1922 = vcmp.lt.s32.totalorder %v154, 112
    %v1923 = vsel %vm1922, %v1891, %v1907
    %v1924 = vsel %vm1922, %v1893, %v1909
    %v1925 = vsel %vm1922, %v1895, %v1911
    %v1926 = vsel %vm1922, %v1897, %v1913
    %v1927 = vsel %vm1922, %v1899, %v1915
    %v1928 = vsel %vm1922, %v1901, %v1917
    %v1929 = vsel %vm1922, %v1903, %v1919
    %v1930 = vsel %vm1922, %v1905, %v1921
    %v1931 = vsel %vm1922, %v1907, %v1891
    %v1932 = vsel %vm1922, %v1909, %v1893
    %v1933 = vsel %vm1922, %v1911, %v1895
    %v1934 = vsel %vm1922, %v1913, %v1897
    %v1935 = vsel %vm1922, %v1915, %v1899
    %v1936 = vsel %vm1922, %v1917, %v1901
    %v1937 = vsel %vm1922, %v1919, %v1903
    %v1938 = vsel %vm1922, %v1921, %v1905
    %s1939 = scalar_lea.vmem [#allocation2], 1536
    %v1940 = vld [vmem:[%s1939] sm:$0xff]
    %v1941 = vld [vmem:[%s1939 + $0x8] sm:$0xff]
    %v1942 = vld [vmem:[%s1939 + $0x10] sm:$0xff]
    %v1943 = vld [vmem:[%s1939 + $0x18] sm:$0xff]
    %v1944 = vld [vmem:[%s1939 + $0x20] sm:$0xff]
    %v1945 = vld [vmem:[%s1939 + $0x28] sm:$0xff]
    %v1946 = vld [vmem:[%s1939 + $0x30] sm:$0xff]
    %v1947 = vld [vmem:[%s1939 + $0x38] sm:$0xff]
    %v1948 = vmul.f32 %v1923, %v1940
    %v1949 = vmul.f32 %v1931, %v1941
    %v1950 = vmul.f32 %v1924, %v1942
    %v1951 = vmul.f32 %v1932, %v1943
    %v1952 = vmul.f32 %v1925, %v1944
    %v1953 = vmul.f32 %v1933, %v1945
    %v1954 = vmul.f32 %v1926, %v1946
    %v1955 = vmul.f32 %v1934, %v1947
    %v1956 = vmul.f32 %v1927, %v1940
    %v1957 = vmul.f32 %v1935, %v1941
    %v1958 = vmul.f32 %v1928, %v1942
    %v1959 = vmul.f32 %v1936, %v1943
    %v1960 = vmul.f32 %v1929, %v1944
    %v1961 = vmul.f32 %v1937, %v1945
    %v1962 = vmul.f32 %v1930, %v1946
    %v1963 = vmul.f32 %v1938, %v1947
    %v1964 = vadd.f32 %v1833, %v1948
    %v1965 = vadd.f32 %v1834, %v1949
    %v1966 = vadd.f32 %v1835, %v1950
    %v1967 = vadd.f32 %v1836, %v1951
    %v1968 = vadd.f32 %v1837, %v1952
    %v1969 = vadd.f32 %v1838, %v1953
    %v1970 = vadd.f32 %v1839, %v1954
    %v1971 = vadd.f32 %v1840, %v1955
    %v1972 = vadd.f32 %v1841, %v1956
    %v1973 = vadd.f32 %v1842, %v1957
    %v1974 = vadd.f32 %v1843, %v1958
    %v1975 = vadd.f32 %v1844, %v1959
    %v1976 = vadd.f32 %v1845, %v1960
    %v1977 = vadd.f32 %v1846, %v1961
    %v1978 = vadd.f32 %v1847, %v1962
    %v1979 = vadd.f32 %v1848, %v1963
    %s1980 = scalar_lea.vmem [#allocation2], 1600
    %v1981 = vld [vmem:[%s1980] sm:$0xff]
    %v1982 = vld [vmem:[%s1980 + $0x8] sm:$0xff]
    %v1983 = vld [vmem:[%s1980 + $0x10] sm:$0xff]
    %v1984 = vld [vmem:[%s1980 + $0x18] sm:$0xff]
    %v1985 = vld [vmem:[%s1980 + $0x20] sm:$0xff]
    %v1986 = vld [vmem:[%s1980 + $0x28] sm:$0xff]
    %v1987 = vld [vmem:[%s1980 + $0x30] sm:$0xff]
    %v1988 = vld [vmem:[%s1980 + $0x38] sm:$0xff]
    %v1989 = vmul.f32 %v1923, %v1981
    %v1990 = vmul.f32 %v1931, %v1982
    %v1991 = vmul.f32 %v1924, %v1983
    %v1992 = vmul.f32 %v1932, %v1984
    %v1993 = vmul.f32 %v1925, %v1985
    %v1994 = vmul.f32 %v1933, %v1986
    %v1995 = vmul.f32 %v1926, %v1987
    %v1996 = vmul.f32 %v1934, %v1988
    %v1997 = vmul.f32 %v1927, %v1981
    %v1998 = vmul.f32 %v1935, %v1982
    %v1999 = vmul.f32 %v1928, %v1983
    %v2000 = vmul.f32 %v1936, %v1984
    %v2001 = vmul.f32 %v1929, %v1985
    %v2002 = vmul.f32 %v1937, %v1986
    %v2003 = vmul.f32 %v1930, %v1987
    %v2004 = vmul.f32 %v1938, %v1988
    %v2005 = vadd.f32 %v1874, %v1989
    %v2006 = vadd.f32 %v1875, %v1990
    %v2007 = vadd.f32 %v1876, %v1991
    %v2008 = vadd.f32 %v1877, %v1992
    %v2009 = vadd.f32 %v1878, %v1993
    %v2010 = vadd.f32 %v1879, %v1994
    %v2011 = vadd.f32 %v1880, %v1995
    %v2012 = vadd.f32 %v1881, %v1996
    %v2013 = vadd.f32 %v1882, %v1997
    %v2014 = vadd.f32 %v1883, %v1998
    %v2015 = vadd.f32 %v1884, %v1999
    %v2016 = vadd.f32 %v1885, %v2000
    %v2017 = vadd.f32 %v1886, %v2001
    %v2018 = vadd.f32 %v1887, %v2002
    %v2019 = vadd.f32 %v1888, %v2003
    %v2020 = vadd.f32 %v1889, %v2004
    %2021 = vrot.lane.b32.xlu0 %v105, 111
    %v2022 = vpop.permute.xlu0 %2021
    %2023 = vrot.lane.b32.xlu0 %v107, 111
    %v2024 = vpop.permute.xlu0 %2023
    %2025 = vrot.lane.b32.xlu0 %v109, 111
    %v2026 = vpop.permute.xlu0 %2025
    %2027 = vrot.lane.b32.xlu0 %v111, 111
    %v2028 = vpop.permute.xlu0 %2027
    %2029 = vrot.lane.b32.xlu0 %v113, 111
    %v2030 = vpop.permute.xlu0 %2029
    %2031 = vrot.lane.b32.xlu0 %v115, 111
    %v2032 = vpop.permute.xlu0 %2031
    %2033 = vrot.lane.b32.xlu0 %v117, 111
    %v2034 = vpop.permute.xlu0 %2033
    %2035 = vrot.lane.b32.xlu0 %v119, 111
    %v2036 = vpop.permute.xlu0 %2035
    %2037 = vrot.lane.b32.xlu0 %v106, 111
    %v2038 = vpop.permute.xlu0 %2037
    %2039 = vrot.lane.b32.xlu0 %v108, 111
    %v2040 = vpop.permute.xlu0 %2039
    %2041 = vrot.lane.b32.xlu0 %v110, 111
    %v2042 = vpop.permute.xlu0 %2041
    %2043 = vrot.lane.b32.xlu0 %v112, 111
    %v2044 = vpop.permute.xlu0 %2043
    %2045 = vrot.lane.b32.xlu0 %v114, 111
    %v2046 = vpop.permute.xlu0 %2045
    %2047 = vrot.lane.b32.xlu0 %v116, 111
    %v2048 = vpop.permute.xlu0 %2047
    %2049 = vrot.lane.b32.xlu0 %v118, 111
    %v2050 = vpop.permute.xlu0 %2049
    %2051 = vrot.lane.b32.xlu0 %v120, 111
    %v2052 = vpop.permute.xlu0 %2051
    %vm2053 = vcmp.lt.s32.totalorder %v154, 111
    %v2054 = vsel %vm2053, %v2022, %v2038
    %v2055 = vsel %vm2053, %v2024, %v2040
    %v2056 = vsel %vm2053, %v2026, %v2042
    %v2057 = vsel %vm2053, %v2028, %v2044
    %v2058 = vsel %vm2053, %v2030, %v2046
    %v2059 = vsel %vm2053, %v2032, %v2048
    %v2060 = vsel %vm2053, %v2034, %v2050
    %v2061 = vsel %vm2053, %v2036, %v2052
    %v2062 = vsel %vm2053, %v2038, %v2022
    %v2063 = vsel %vm2053, %v2040, %v2024
    %v2064 = vsel %vm2053, %v2042, %v2026
    %v2065 = vsel %vm2053, %v2044, %v2028
    %v2066 = vsel %vm2053, %v2046, %v2030
    %v2067 = vsel %vm2053, %v2048, %v2032
    %v2068 = vsel %vm2053, %v2050, %v2034
    %v2069 = vsel %vm2053, %v2052, %v2036
    %s2070 = scalar_lea.vmem [#allocation2], 1664
    %v2071 = vld [vmem:[%s2070] sm:$0xff]
    %v2072 = vld [vmem:[%s2070 + $0x8] sm:$0xff]
    %v2073 = vld [vmem:[%s2070 + $0x10] sm:$0xff]
    %v2074 = vld [vmem:[%s2070 + $0x18] sm:$0xff]
    %v2075 = vld [vmem:[%s2070 + $0x20] sm:$0xff]
    %v2076 = vld [vmem:[%s2070 + $0x28] sm:$0xff]
    %v2077 = vld [vmem:[%s2070 + $0x30] sm:$0xff]
    %v2078 = vld [vmem:[%s2070 + $0x38] sm:$0xff]
    %v2079 = vmul.f32 %v2054, %v2071
    %v2080 = vmul.f32 %v2062, %v2072
    %v2081 = vmul.f32 %v2055, %v2073
    %v2082 = vmul.f32 %v2063, %v2074
    %v2083 = vmul.f32 %v2056, %v2075
    %v2084 = vmul.f32 %v2064, %v2076
    %v2085 = vmul.f32 %v2057, %v2077
    %v2086 = vmul.f32 %v2065, %v2078
    %v2087 = vmul.f32 %v2058, %v2071
    %v2088 = vmul.f32 %v2066, %v2072
    %v2089 = vmul.f32 %v2059, %v2073
    %v2090 = vmul.f32 %v2067, %v2074
    %v2091 = vmul.f32 %v2060, %v2075
    %v2092 = vmul.f32 %v2068, %v2076
    %v2093 = vmul.f32 %v2061, %v2077
    %v2094 = vmul.f32 %v2069, %v2078
    %v2095 = vadd.f32 %v1964, %v2079
    %v2096 = vadd.f32 %v1965, %v2080
    %v2097 = vadd.f32 %v1966, %v2081
    %v2098 = vadd.f32 %v1967, %v2082
    %v2099 = vadd.f32 %v1968, %v2083
    %v2100 = vadd.f32 %v1969, %v2084
    %v2101 = vadd.f32 %v1970, %v2085
    %v2102 = vadd.f32 %v1971, %v2086
    %v2103 = vadd.f32 %v1972, %v2087
    %v2104 = vadd.f32 %v1973, %v2088
    %v2105 = vadd.f32 %v1974, %v2089
    %v2106 = vadd.f32 %v1975, %v2090
    %v2107 = vadd.f32 %v1976, %v2091
    %v2108 = vadd.f32 %v1977, %v2092
    %v2109 = vadd.f32 %v1978, %v2093
    %v2110 = vadd.f32 %v1979, %v2094
    %s2111 = scalar_lea.vmem [#allocation2], 1728
    %v2112 = vld [vmem:[%s2111] sm:$0xff]
    %v2113 = vld [vmem:[%s2111 + $0x8] sm:$0xff]
    %v2114 = vld [vmem:[%s2111 + $0x10] sm:$0xff]
    %v2115 = vld [vmem:[%s2111 + $0x18] sm:$0xff]
    %v2116 = vld [vmem:[%s2111 + $0x20] sm:$0xff]
    %v2117 = vld [vmem:[%s2111 + $0x28] sm:$0xff]
    %v2118 = vld [vmem:[%s2111 + $0x30] sm:$0xff]
    %v2119 = vld [vmem:[%s2111 + $0x38] sm:$0xff]
    %v2120 = vmul.f32 %v2054, %v2112
    %v2121 = vmul.f32 %v2062, %v2113
    %v2122 = vmul.f32 %v2055, %v2114
    %v2123 = vmul.f32 %v2063, %v2115
    %v2124 = vmul.f32 %v2056, %v2116
    %v2125 = vmul.f32 %v2064, %v2117
    %v2126 = vmul.f32 %v2057, %v2118
    %v2127 = vmul.f32 %v2065, %v2119
    %v2128 = vmul.f32 %v2058, %v2112
    %v2129 = vmul.f32 %v2066, %v2113
    %v2130 = vmul.f32 %v2059, %v2114
    %v2131 = vmul.f32 %v2067, %v2115
    %v2132 = vmul.f32 %v2060, %v2116
    %v2133 = vmul.f32 %v2068, %v2117
    %v2134 = vmul.f32 %v2061, %v2118
    %v2135 = vmul.f32 %v2069, %v2119
    %v2136 = vadd.f32 %v2005, %v2120
    %v2137 = vadd.f32 %v2006, %v2121
    %v2138 = vadd.f32 %v2007, %v2122
    %v2139 = vadd.f32 %v2008, %v2123
    %v2140 = vadd.f32 %v2009, %v2124
    %v2141 = vadd.f32 %v2010, %v2125
    %v2142 = vadd.f32 %v2011, %v2126
    %v2143 = vadd.f32 %v2012, %v2127
    %v2144 = vadd.f32 %v2013, %v2128
    %v2145 = vadd.f32 %v2014, %v2129
    %v2146 = vadd.f32 %v2015, %v2130
    %v2147 = vadd.f32 %v2016, %v2131
    %v2148 = vadd.f32 %v2017, %v2132
    %v2149 = vadd.f32 %v2018, %v2133
    %v2150 = vadd.f32 %v2019, %v2134
    %v2151 = vadd.f32 %v2020, %v2135
    %2152 = vrot.lane.b32.xlu0 %v105, 110
    %v2153 = vpop.permute.xlu0 %2152
    %2154 = vrot.lane.b32.xlu0 %v107, 110
    %v2155 = vpop.permute.xlu0 %2154
    %2156 = vrot.lane.b32.xlu0 %v109, 110
    %v2157 = vpop.permute.xlu0 %2156
    %2158 = vrot.lane.b32.xlu0 %v111, 110
    %v2159 = vpop.permute.xlu0 %2158
    %2160 = vrot.lane.b32.xlu0 %v113, 110
    %v2161 = vpop.permute.xlu0 %2160
    %2162 = vrot.lane.b32.xlu0 %v115, 110
    %v2163 = vpop.permute.xlu0 %2162
    %2164 = vrot.lane.b32.xlu0 %v117, 110
    %v2165 = vpop.permute.xlu0 %2164
    %2166 = vrot.lane.b32.xlu0 %v119, 110
    %v2167 = vpop.permute.xlu0 %2166
    %2168 = vrot.lane.b32.xlu0 %v106, 110
    %v2169 = vpop.permute.xlu0 %2168
    %2170 = vrot.lane.b32.xlu0 %v108, 110
    %v2171 = vpop.permute.xlu0 %2170
    %2172 = vrot.lane.b32.xlu0 %v110, 110
    %v2173 = vpop.permute.xlu0 %2172
    %2174 = vrot.lane.b32.xlu0 %v112, 110
    %v2175 = vpop.permute.xlu0 %2174
    %2176 = vrot.lane.b32.xlu0 %v114, 110
    %v2177 = vpop.permute.xlu0 %2176
    %2178 = vrot.lane.b32.xlu0 %v116, 110
    %v2179 = vpop.permute.xlu0 %2178
    %2180 = vrot.lane.b32.xlu0 %v118, 110
    %v2181 = vpop.permute.xlu0 %2180
    %2182 = vrot.lane.b32.xlu0 %v120, 110
    %v2183 = vpop.permute.xlu0 %2182
    %vm2184 = vcmp.lt.s32.totalorder %v154, 110
    %v2185 = vsel %vm2184, %v2153, %v2169
    %v2186 = vsel %vm2184, %v2155, %v2171
    %v2187 = vsel %vm2184, %v2157, %v2173
    %v2188 = vsel %vm2184, %v2159, %v2175
    %v2189 = vsel %vm2184, %v2161, %v2177
    %v2190 = vsel %vm2184, %v2163, %v2179
    %v2191 = vsel %vm2184, %v2165, %v2181
    %v2192 = vsel %vm2184, %v2167, %v2183
    %v2193 = vsel %vm2184, %v2169, %v2153
    %v2194 = vsel %vm2184, %v2171, %v2155
    %v2195 = vsel %vm2184, %v2173, %v2157
    %v2196 = vsel %vm2184, %v2175, %v2159
    %v2197 = vsel %vm2184, %v2177, %v2161
    %v2198 = vsel %vm2184, %v2179, %v2163
    %v2199 = vsel %vm2184, %v2181, %v2165
    %v2200 = vsel %vm2184, %v2183, %v2167
    %s2201 = scalar_lea.vmem [#allocation2], 1792
    %v2202 = vld [vmem:[%s2201] sm:$0xff]
    %v2203 = vld [vmem:[%s2201 + $0x8] sm:$0xff]
    %v2204 = vld [vmem:[%s2201 + $0x10] sm:$0xff]
    %v2205 = vld [vmem:[%s2201 + $0x18] sm:$0xff]
    %v2206 = vld [vmem:[%s2201 + $0x20] sm:$0xff]
    %v2207 = vld [vmem:[%s2201 + $0x28] sm:$0xff]
    %v2208 = vld [vmem:[%s2201 + $0x30] sm:$0xff]
    %v2209 = vld [vmem:[%s2201 + $0x38] sm:$0xff]
    %v2210 = vmul.f32 %v2185, %v2202
    %v2211 = vmul.f32 %v2193, %v2203
    %v2212 = vmul.f32 %v2186, %v2204
    %v2213 = vmul.f32 %v2194, %v2205
    %v2214 = vmul.f32 %v2187, %v2206
    %v2215 = vmul.f32 %v2195, %v2207
    %v2216 = vmul.f32 %v2188, %v2208
    %v2217 = vmul.f32 %v2196, %v2209
    %v2218 = vmul.f32 %v2189, %v2202
    %v2219 = vmul.f32 %v2197, %v2203
    %v2220 = vmul.f32 %v2190, %v2204
    %v2221 = vmul.f32 %v2198, %v2205
    %v2222 = vmul.f32 %v2191, %v2206
    %v2223 = vmul.f32 %v2199, %v2207
    %v2224 = vmul.f32 %v2192, %v2208
    %v2225 = vmul.f32 %v2200, %v2209
    %v2226 = vadd.f32 %v2136, %v2210
    %v2227 = vadd.f32 %v2137, %v2211
    %v2228 = vadd.f32 %v2138, %v2212
    %v2229 = vadd.f32 %v2139, %v2213
    %v2230 = vadd.f32 %v2140, %v2214
    %v2231 = vadd.f32 %v2141, %v2215
    %v2232 = vadd.f32 %v2142, %v2216
    %v2233 = vadd.f32 %v2143, %v2217
    %v2234 = vadd.f32 %v2144, %v2218
    %v2235 = vadd.f32 %v2145, %v2219
    %v2236 = vadd.f32 %v2146, %v2220
    %v2237 = vadd.f32 %v2147, %v2221
    %v2238 = vadd.f32 %v2148, %v2222
    %v2239 = vadd.f32 %v2149, %v2223
    %v2240 = vadd.f32 %v2150, %v2224
    %v2241 = vadd.f32 %v2151, %v2225
    %2242 = vrot.lane.b32.xlu0 %v105, 98
    %v2243 = vpop.permute.xlu0 %2242
    %2244 = vrot.lane.b32.xlu0 %v107, 98
    %v2245 = vpop.permute.xlu0 %2244
    %2246 = vrot.lane.b32.xlu0 %v109, 98
    %v2247 = vpop.permute.xlu0 %2246
    %2248 = vrot.lane.b32.xlu0 %v111, 98
    %v2249 = vpop.permute.xlu0 %2248
    %2250 = vrot.lane.b32.xlu0 %v113, 98
    %v2251 = vpop.permute.xlu0 %2250
    %2252 = vrot.lane.b32.xlu0 %v115, 98
    %v2253 = vpop.permute.xlu0 %2252
    %2254 = vrot.lane.b32.xlu0 %v117, 98
    %v2255 = vpop.permute.xlu0 %2254
    %2256 = vrot.lane.b32.xlu0 %v119, 98
    %v2257 = vpop.permute.xlu0 %2256
    %2258 = vrot.lane.b32.xlu0 %v106, 98
    %v2259 = vpop.permute.xlu0 %2258
    %2260 = vrot.lane.b32.xlu0 %v108, 98
    %v2261 = vpop.permute.xlu0 %2260
    %2262 = vrot.lane.b32.xlu0 %v110, 98
    %v2263 = vpop.permute.xlu0 %2262
    %2264 = vrot.lane.b32.xlu0 %v112, 98
    %v2265 = vpop.permute.xlu0 %2264
    %2266 = vrot.lane.b32.xlu0 %v114, 98
    %v2267 = vpop.permute.xlu0 %2266
    %2268 = vrot.lane.b32.xlu0 %v116, 98
    %v2269 = vpop.permute.xlu0 %2268
    %2270 = vrot.lane.b32.xlu0 %v118, 98
    %v2271 = vpop.permute.xlu0 %2270
    %2272 = vrot.lane.b32.xlu0 %v120, 98
    %v2273 = vpop.permute.xlu0 %2272
    %vm2274 = vcmp.lt.s32.totalorder %v154, 98
    %v2275 = vsel %vm2274, %v2243, %v2259
    %v2276 = vsel %vm2274, %v2245, %v2261
    %v2277 = vsel %vm2274, %v2247, %v2263
    %v2278 = vsel %vm2274, %v2249, %v2265
    %v2279 = vsel %vm2274, %v2251, %v2267
    %v2280 = vsel %vm2274, %v2253, %v2269
    %v2281 = vsel %vm2274, %v2255, %v2271
    %v2282 = vsel %vm2274, %v2257, %v2273
    %v2283 = vsel %vm2274, %v2259, %v2243
    %v2284 = vsel %vm2274, %v2261, %v2245
    %v2285 = vsel %vm2274, %v2263, %v2247
    %v2286 = vsel %vm2274, %v2265, %v2249
    %v2287 = vsel %vm2274, %v2267, %v2251
    %v2288 = vsel %vm2274, %v2269, %v2253
    %v2289 = vsel %vm2274, %v2271, %v2255
    %v2290 = vsel %vm2274, %v2273, %v2257
    %s2291 = scalar_lea.vmem [#allocation2], 1856
    %v2292 = vld [vmem:[%s2291] sm:$0xff]
    %v2293 = vld [vmem:[%s2291 + $0x8] sm:$0xff]
    %v2294 = vld [vmem:[%s2291 + $0x10] sm:$0xff]
    %v2295 = vld [vmem:[%s2291 + $0x18] sm:$0xff]
    %v2296 = vld [vmem:[%s2291 + $0x20] sm:$0xff]
    %v2297 = vld [vmem:[%s2291 + $0x28] sm:$0xff]
    %v2298 = vld [vmem:[%s2291 + $0x30] sm:$0xff]
    %v2299 = vld [vmem:[%s2291 + $0x38] sm:$0xff]
    %v2300 = vmul.f32 %v2275, %v2292
    %v2301 = vmul.f32 %v2283, %v2293
    %v2302 = vmul.f32 %v2276, %v2294
    %v2303 = vmul.f32 %v2284, %v2295
    %v2304 = vmul.f32 %v2277, %v2296
    %v2305 = vmul.f32 %v2285, %v2297
    %v2306 = vmul.f32 %v2278, %v2298
    %v2307 = vmul.f32 %v2286, %v2299
    %v2308 = vmul.f32 %v2279, %v2292
    %v2309 = vmul.f32 %v2287, %v2293
    %v2310 = vmul.f32 %v2280, %v2294
    %v2311 = vmul.f32 %v2288, %v2295
    %v2312 = vmul.f32 %v2281, %v2296
    %v2313 = vmul.f32 %v2289, %v2297
    %v2314 = vmul.f32 %v2282, %v2298
    %v2315 = vmul.f32 %v2290, %v2299
    %v2316 = vadd.f32 %v2226, %v2300
    %v2317 = vadd.f32 %v2227, %v2301
    %v2318 = vadd.f32 %v2228, %v2302
    %v2319 = vadd.f32 %v2229, %v2303
    %v2320 = vadd.f32 %v2230, %v2304
    %v2321 = vadd.f32 %v2231, %v2305
    %v2322 = vadd.f32 %v2232, %v2306
    %v2323 = vadd.f32 %v2233, %v2307
    %v2324 = vadd.f32 %v2234, %v2308
    %v2325 = vadd.f32 %v2235, %v2309
    %v2326 = vadd.f32 %v2236, %v2310
    %v2327 = vadd.f32 %v2237, %v2311
    %v2328 = vadd.f32 %v2238, %v2312
    %v2329 = vadd.f32 %v2239, %v2313
    %v2330 = vadd.f32 %v2240, %v2314
    %v2331 = vadd.f32 %v2241, %v2315
    %2332 = vrot.lane.b32.xlu0 %v105, 97
    %v2333 = vpop.permute.xlu0 %2332
    %2334 = vrot.lane.b32.xlu0 %v107, 97
    %v2335 = vpop.permute.xlu0 %2334
    %2336 = vrot.lane.b32.xlu0 %v109, 97
    %v2337 = vpop.permute.xlu0 %2336
    %2338 = vrot.lane.b32.xlu0 %v111, 97
    %v2339 = vpop.permute.xlu0 %2338
    %2340 = vrot.lane.b32.xlu0 %v113, 97
    %v2341 = vpop.permute.xlu0 %2340
    %2342 = vrot.lane.b32.xlu0 %v115, 97
    %v2343 = vpop.permute.xlu0 %2342
    %2344 = vrot.lane.b32.xlu0 %v117, 97
    %v2345 = vpop.permute.xlu0 %2344
    %2346 = vrot.lane.b32.xlu0 %v119, 97
    %v2347 = vpop.permute.xlu0 %2346
    %2348 = vrot.lane.b32.xlu0 %v106, 97
    %v2349 = vpop.permute.xlu0 %2348
    %2350 = vrot.lane.b32.xlu0 %v108, 97
    %v2351 = vpop.permute.xlu0 %2350
    %2352 = vrot.lane.b32.xlu0 %v110, 97
    %v2353 = vpop.permute.xlu0 %2352
    %2354 = vrot.lane.b32.xlu0 %v112, 97
    %v2355 = vpop.permute.xlu0 %2354
    %2356 = vrot.lane.b32.xlu0 %v114, 97
    %v2357 = vpop.permute.xlu0 %2356
    %2358 = vrot.lane.b32.xlu0 %v116, 97
    %v2359 = vpop.permute.xlu0 %2358
    %2360 = vrot.lane.b32.xlu0 %v118, 97
    %v2361 = vpop.permute.xlu0 %2360
    %2362 = vrot.lane.b32.xlu0 %v120, 97
    %v2363 = vpop.permute.xlu0 %2362
    %vm2364 = vcmp.lt.s32.totalorder %v154, 97
    %v2365 = vsel %vm2364, %v2333, %v2349
    %v2366 = vsel %vm2364, %v2335, %v2351
    %v2367 = vsel %vm2364, %v2337, %v2353
    %v2368 = vsel %vm2364, %v2339, %v2355
    %v2369 = vsel %vm2364, %v2341, %v2357
    %v2370 = vsel %vm2364, %v2343, %v2359
    %v2371 = vsel %vm2364, %v2345, %v2361
    %v2372 = vsel %vm2364, %v2347, %v2363
    %v2373 = vsel %vm2364, %v2349, %v2333
    %v2374 = vsel %vm2364, %v2351, %v2335
    %v2375 = vsel %vm2364, %v2353, %v2337
    %v2376 = vsel %vm2364, %v2355, %v2339
    %v2377 = vsel %vm2364, %v2357, %v2341
    %v2378 = vsel %vm2364, %v2359, %v2343
    %v2379 = vsel %vm2364, %v2361, %v2345
    %v2380 = vsel %vm2364, %v2363, %v2347
    %s2381 = scalar_lea.vmem [#allocation2], 1920
    %v2382 = vld [vmem:[%s2381] sm:$0xff]
    %v2383 = vld [vmem:[%s2381 + $0x8] sm:$0xff]
    %v2384 = vld [vmem:[%s2381 + $0x10] sm:$0xff]
    %v2385 = vld [vmem:[%s2381 + $0x18] sm:$0xff]
    %v2386 = vld [vmem:[%s2381 + $0x20] sm:$0xff]
    %v2387 = vld [vmem:[%s2381 + $0x28] sm:$0xff]
    %v2388 = vld [vmem:[%s2381 + $0x30] sm:$0xff]
    %v2389 = vld [vmem:[%s2381 + $0x38] sm:$0xff]
    %v2390 = vmul.f32 %v2365, %v2382
    %v2391 = vmul.f32 %v2373, %v2383
    %v2392 = vmul.f32 %v2366, %v2384
    %v2393 = vmul.f32 %v2374, %v2385
    %v2394 = vmul.f32 %v2367, %v2386
    %v2395 = vmul.f32 %v2375, %v2387
    %v2396 = vmul.f32 %v2368, %v2388
    %v2397 = vmul.f32 %v2376, %v2389
    %v2398 = vmul.f32 %v2369, %v2382
    %v2399 = vmul.f32 %v2377, %v2383
    %v2400 = vmul.f32 %v2370, %v2384
    %v2401 = vmul.f32 %v2378, %v2385
    %v2402 = vmul.f32 %v2371, %v2386
    %v2403 = vmul.f32 %v2379, %v2387
    %v2404 = vmul.f32 %v2372, %v2388
    %v2405 = vmul.f32 %v2380, %v2389
    %v2406 = vadd.f32 %v2316, %v2390
    %v2407 = vadd.f32 %v2317, %v2391
    %v2408 = vadd.f32 %v2318, %v2392
    %v2409 = vadd.f32 %v2319, %v2393
    %v2410 = vadd.f32 %v2320, %v2394
    %v2411 = vadd.f32 %v2321, %v2395
    %v2412 = vadd.f32 %v2322, %v2396
    %v2413 = vadd.f32 %v2323, %v2397
    %v2414 = vadd.f32 %v2324, %v2398
    %v2415 = vadd.f32 %v2325, %v2399
    %v2416 = vadd.f32 %v2326, %v2400
    %v2417 = vadd.f32 %v2327, %v2401
    %v2418 = vadd.f32 %v2328, %v2402
    %v2419 = vadd.f32 %v2329, %v2403
    %v2420 = vadd.f32 %v2330, %v2404
    %v2421 = vadd.f32 %v2331, %v2405
    %2422 = vrot.lane.b32.xlu0 %v105, 96
    %v2423 = vpop.permute.xlu0 %2422
    %2424 = vrot.lane.b32.xlu0 %v107, 96
    %v2425 = vpop.permute.xlu0 %2424
    %2426 = vrot.lane.b32.xlu0 %v109, 96
    %v2427 = vpop.permute.xlu0 %2426
    %2428 = vrot.lane.b32.xlu0 %v111, 96
    %v2429 = vpop.permute.xlu0 %2428
    %2430 = vrot.lane.b32.xlu0 %v113, 96
    %v2431 = vpop.permute.xlu0 %2430
    %2432 = vrot.lane.b32.xlu0 %v115, 96
    %v2433 = vpop.permute.xlu0 %2432
    %2434 = vrot.lane.b32.xlu0 %v117, 96
    %v2435 = vpop.permute.xlu0 %2434
    %2436 = vrot.lane.b32.xlu0 %v119, 96
    %v2437 = vpop.permute.xlu0 %2436
    %2438 = vrot.lane.b32.xlu0 %v106, 96
    %v2439 = vpop.permute.xlu0 %2438
    %2440 = vrot.lane.b32.xlu0 %v108, 96
    %v2441 = vpop.permute.xlu0 %2440
    %2442 = vrot.lane.b32.xlu0 %v110, 96
    %v2443 = vpop.permute.xlu0 %2442
    %2444 = vrot.lane.b32.xlu0 %v112, 96
    %v2445 = vpop.permute.xlu0 %2444
    %2446 = vrot.lane.b32.xlu0 %v114, 96
    %v2447 = vpop.permute.xlu0 %2446
    %2448 = vrot.lane.b32.xlu0 %v116, 96
    %v2449 = vpop.permute.xlu0 %2448
    %2450 = vrot.lane.b32.xlu0 %v118, 96
    %v2451 = vpop.permute.xlu0 %2450
    %2452 = vrot.lane.b32.xlu0 %v120, 96
    %v2453 = vpop.permute.xlu0 %2452
    %vm2454 = vcmp.lt.s32.totalorder %v154, 96
    %v2455 = vsel %vm2454, %v2423, %v2439
    %v2456 = vsel %vm2454, %v2425, %v2441
    %v2457 = vsel %vm2454, %v2427, %v2443
    %v2458 = vsel %vm2454, %v2429, %v2445
    %v2459 = vsel %vm2454, %v2431, %v2447
    %v2460 = vsel %vm2454, %v2433, %v2449
    %v2461 = vsel %vm2454, %v2435, %v2451
    %v2462 = vsel %vm2454, %v2437, %v2453
    %v2463 = vsel %vm2454, %v2439, %v2423
    %v2464 = vsel %vm2454, %v2441, %v2425
    %v2465 = vsel %vm2454, %v2443, %v2427
    %v2466 = vsel %vm2454, %v2445, %v2429
    %v2467 = vsel %vm2454, %v2447, %v2431
    %v2468 = vsel %vm2454, %v2449, %v2433
    %v2469 = vsel %vm2454, %v2451, %v2435
    %v2470 = vsel %vm2454, %v2453, %v2437
    %s2471 = scalar_lea.vmem [#allocation2], 1984
    %v2472 = vld [vmem:[%s2471] sm:$0xff]
    %v2473 = vld [vmem:[%s2471 + $0x8] sm:$0xff]
    %v2474 = vld [vmem:[%s2471 + $0x10] sm:$0xff]
    %v2475 = vld [vmem:[%s2471 + $0x18] sm:$0xff]
    %v2476 = vld [vmem:[%s2471 + $0x20] sm:$0xff]
    %v2477 = vld [vmem:[%s2471 + $0x28] sm:$0xff]
    %v2478 = vld [vmem:[%s2471 + $0x30] sm:$0xff]
    %v2479 = vld [vmem:[%s2471 + $0x38] sm:$0xff]
    %v2480 = vmul.f32 %v2455, %v2472
    %v2481 = vmul.f32 %v2463, %v2473
    %v2482 = vmul.f32 %v2456, %v2474
    %v2483 = vmul.f32 %v2464, %v2475
    %v2484 = vmul.f32 %v2457, %v2476
    %v2485 = vmul.f32 %v2465, %v2477
    %v2486 = vmul.f32 %v2458, %v2478
    %v2487 = vmul.f32 %v2466, %v2479
    %v2488 = vmul.f32 %v2459, %v2472
    %v2489 = vmul.f32 %v2467, %v2473
    %v2490 = vmul.f32 %v2460, %v2474
    %v2491 = vmul.f32 %v2468, %v2475
    %v2492 = vmul.f32 %v2461, %v2476
    %v2493 = vmul.f32 %v2469, %v2477
    %v2494 = vmul.f32 %v2462, %v2478
    %v2495 = vmul.f32 %v2470, %v2479
    %v2496 = vadd.f32 %v2406, %v2480
    %v2497 = vadd.f32 %v2407, %v2481
    %v2498 = vadd.f32 %v2408, %v2482
    %v2499 = vadd.f32 %v2409, %v2483
    %v2500 = vadd.f32 %v2410, %v2484
    %v2501 = vadd.f32 %v2411, %v2485
    %v2502 = vadd.f32 %v2412, %v2486
    %v2503 = vadd.f32 %v2413, %v2487
    %v2504 = vadd.f32 %v2414, %v2488
    %v2505 = vadd.f32 %v2415, %v2489
    %v2506 = vadd.f32 %v2416, %v2490
    %v2507 = vadd.f32 %v2417, %v2491
    %v2508 = vadd.f32 %v2418, %v2492
    %v2509 = vadd.f32 %v2419, %v2493
    %v2510 = vadd.f32 %v2420, %v2494
    %v2511 = vadd.f32 %v2421, %v2495
    %2512 = vrot.lane.b32.xlu0 %v105, 95
    %v2513 = vpop.permute.xlu0 %2512
    %2514 = vrot.lane.b32.xlu0 %v107, 95
    %v2515 = vpop.permute.xlu0 %2514
    %2516 = vrot.lane.b32.xlu0 %v109, 95
    %v2517 = vpop.permute.xlu0 %2516
    %2518 = vrot.lane.b32.xlu0 %v111, 95
    %v2519 = vpop.permute.xlu0 %2518
    %2520 = vrot.lane.b32.xlu0 %v113, 95
    %v2521 = vpop.permute.xlu0 %2520
    %2522 = vrot.lane.b32.xlu0 %v115, 95
    %v2523 = vpop.permute.xlu0 %2522
    %2524 = vrot.lane.b32.xlu0 %v117, 95
    %v2525 = vpop.permute.xlu0 %2524
    %2526 = vrot.lane.b32.xlu0 %v119, 95
    %v2527 = vpop.permute.xlu0 %2526
    %2528 = vrot.lane.b32.xlu0 %v106, 95
    %v2529 = vpop.permute.xlu0 %2528
    %2530 = vrot.lane.b32.xlu0 %v108, 95
    %v2531 = vpop.permute.xlu0 %2530
    %2532 = vrot.lane.b32.xlu0 %v110, 95
    %v2533 = vpop.permute.xlu0 %2532
    %2534 = vrot.lane.b32.xlu0 %v112, 95
    %v2535 = vpop.permute.xlu0 %2534
    %2536 = vrot.lane.b32.xlu0 %v114, 95
    %v2537 = vpop.permute.xlu0 %2536
    %2538 = vrot.lane.b32.xlu0 %v116, 95
    %v2539 = vpop.permute.xlu0 %2538
    %2540 = vrot.lane.b32.xlu0 %v118, 95
    %v2541 = vpop.permute.xlu0 %2540
    %2542 = vrot.lane.b32.xlu0 %v120, 95
    %v2543 = vpop.permute.xlu0 %2542
    %vm2544 = vcmp.lt.s32.totalorder %v154, 95
    %v2545 = vsel %vm2544, %v2513, %v2529
    %v2546 = vsel %vm2544, %v2515, %v2531
    %v2547 = vsel %vm2544, %v2517, %v2533
    %v2548 = vsel %vm2544, %v2519, %v2535
    %v2549 = vsel %vm2544, %v2521, %v2537
    %v2550 = vsel %vm2544, %v2523, %v2539
    %v2551 = vsel %vm2544, %v2525, %v2541
    %v2552 = vsel %vm2544, %v2527, %v2543
    %v2553 = vsel %vm2544, %v2529, %v2513
    %v2554 = vsel %vm2544, %v2531, %v2515
    %v2555 = vsel %vm2544, %v2533, %v2517
    %v2556 = vsel %vm2544, %v2535, %v2519
    %v2557 = vsel %vm2544, %v2537, %v2521
    %v2558 = vsel %vm2544, %v2539, %v2523
    %v2559 = vsel %vm2544, %v2541, %v2525
    %v2560 = vsel %vm2544, %v2543, %v2527
    %s2561 = scalar_lea.vmem [#allocation2], 2048
    %v2562 = vld [vmem:[%s2561] sm:$0xff]
    %v2563 = vld [vmem:[%s2561 + $0x8] sm:$0xff]
    %v2564 = vld [vmem:[%s2561 + $0x10] sm:$0xff]
    %v2565 = vld [vmem:[%s2561 + $0x18] sm:$0xff]
    %v2566 = vld [vmem:[%s2561 + $0x20] sm:$0xff]
    %v2567 = vld [vmem:[%s2561 + $0x28] sm:$0xff]
    %v2568 = vld [vmem:[%s2561 + $0x30] sm:$0xff]
    %v2569 = vld [vmem:[%s2561 + $0x38] sm:$0xff]
    %v2570 = vmul.f32 %v2545, %v2562
    %v2571 = vmul.f32 %v2553, %v2563
    %v2572 = vmul.f32 %v2546, %v2564
    %v2573 = vmul.f32 %v2554, %v2565
    %v2574 = vmul.f32 %v2547, %v2566
    %v2575 = vmul.f32 %v2555, %v2567
    %v2576 = vmul.f32 %v2548, %v2568
    %v2577 = vmul.f32 %v2556, %v2569
    %v2578 = vmul.f32 %v2549, %v2562
    %v2579 = vmul.f32 %v2557, %v2563
    %v2580 = vmul.f32 %v2550, %v2564
    %v2581 = vmul.f32 %v2558, %v2565
    %v2582 = vmul.f32 %v2551, %v2566
    %v2583 = vmul.f32 %v2559, %v2567
    %v2584 = vmul.f32 %v2552, %v2568
    %v2585 = vmul.f32 %v2560, %v2569
    %v2586 = vadd.f32 %v2496, %v2570
    %v2587 = vadd.f32 %v2497, %v2571
    %v2588 = vadd.f32 %v2498, %v2572
    %v2589 = vadd.f32 %v2499, %v2573
    %v2590 = vadd.f32 %v2500, %v2574
    %v2591 = vadd.f32 %v2501, %v2575
    %v2592 = vadd.f32 %v2502, %v2576
    %v2593 = vadd.f32 %v2503, %v2577
    %v2594 = vadd.f32 %v2504, %v2578
    %v2595 = vadd.f32 %v2505, %v2579
    %v2596 = vadd.f32 %v2506, %v2580
    %v2597 = vadd.f32 %v2507, %v2581
    %v2598 = vadd.f32 %v2508, %v2582
    %v2599 = vadd.f32 %v2509, %v2583
    %v2600 = vadd.f32 %v2510, %v2584
    %v2601 = vadd.f32 %v2511, %v2585
    %2602 = vrot.lane.b32.xlu0 %v105, 94
    %v2603 = vpop.permute.xlu0 %2602
    %2604 = vrot.lane.b32.xlu0 %v107, 94
    %v2605 = vpop.permute.xlu0 %2604
    %2606 = vrot.lane.b32.xlu0 %v109, 94
    %v2607 = vpop.permute.xlu0 %2606
    %2608 = vrot.lane.b32.xlu0 %v111, 94
    %v2609 = vpop.permute.xlu0 %2608
    %2610 = vrot.lane.b32.xlu0 %v113, 94
    %v2611 = vpop.permute.xlu0 %2610
    %2612 = vrot.lane.b32.xlu0 %v115, 94
    %v2613 = vpop.permute.xlu0 %2612
    %2614 = vrot.lane.b32.xlu0 %v117, 94
    %v2615 = vpop.permute.xlu0 %2614
    %2616 = vrot.lane.b32.xlu0 %v119, 94
    %v2617 = vpop.permute.xlu0 %2616
    %2618 = vrot.lane.b32.xlu0 %v106, 94
    %v2619 = vpop.permute.xlu0 %2618
    %2620 = vrot.lane.b32.xlu0 %v108, 94
    %v2621 = vpop.permute.xlu0 %2620
    %2622 = vrot.lane.b32.xlu0 %v110, 94
    %v2623 = vpop.permute.xlu0 %2622
    %2624 = vrot.lane.b32.xlu0 %v112, 94
    %v2625 = vpop.permute.xlu0 %2624
    %2626 = vrot.lane.b32.xlu0 %v114, 94
    %v2627 = vpop.permute.xlu0 %2626
    %2628 = vrot.lane.b32.xlu0 %v116, 94
    %v2629 = vpop.permute.xlu0 %2628
    %2630 = vrot.lane.b32.xlu0 %v118, 94
    %v2631 = vpop.permute.xlu0 %2630
    %2632 = vrot.lane.b32.xlu0 %v120, 94
    %v2633 = vpop.permute.xlu0 %2632
    %vm2634 = vcmp.lt.s32.totalorder %v154, 94
    %v2635 = vsel %vm2634, %v2603, %v2619
    %v2636 = vsel %vm2634, %v2605, %v2621
    %v2637 = vsel %vm2634, %v2607, %v2623
    %v2638 = vsel %vm2634, %v2609, %v2625
    %v2639 = vsel %vm2634, %v2611, %v2627
    %v2640 = vsel %vm2634, %v2613, %v2629
    %v2641 = vsel %vm2634, %v2615, %v2631
    %v2642 = vsel %vm2634, %v2617, %v2633
    %v2643 = vsel %vm2634, %v2619, %v2603
    %v2644 = vsel %vm2634, %v2621, %v2605
    %v2645 = vsel %vm2634, %v2623, %v2607
    %v2646 = vsel %vm2634, %v2625, %v2609
    %v2647 = vsel %vm2634, %v2627, %v2611
    %v2648 = vsel %vm2634, %v2629, %v2613
    %v2649 = vsel %vm2634, %v2631, %v2615
    %v2650 = vsel %vm2634, %v2633, %v2617
    %s2651 = scalar_lea.vmem [#allocation2], 2112
    %v2652 = vld [vmem:[%s2651] sm:$0xff]
    %v2653 = vld [vmem:[%s2651 + $0x8] sm:$0xff]
    %v2654 = vld [vmem:[%s2651 + $0x10] sm:$0xff]
    %v2655 = vld [vmem:[%s2651 + $0x18] sm:$0xff]
    %v2656 = vld [vmem:[%s2651 + $0x20] sm:$0xff]
    %v2657 = vld [vmem:[%s2651 + $0x28] sm:$0xff]
    %v2658 = vld [vmem:[%s2651 + $0x30] sm:$0xff]
    %v2659 = vld [vmem:[%s2651 + $0x38] sm:$0xff]
    %v2660 = vmul.f32 %v2635, %v2652
    %v2661 = vmul.f32 %v2643, %v2653
    %v2662 = vmul.f32 %v2636, %v2654
    %v2663 = vmul.f32 %v2644, %v2655
    %v2664 = vmul.f32 %v2637, %v2656
    %v2665 = vmul.f32 %v2645, %v2657
    %v2666 = vmul.f32 %v2638, %v2658
    %v2667 = vmul.f32 %v2646, %v2659
    %v2668 = vmul.f32 %v2639, %v2652
    %v2669 = vmul.f32 %v2647, %v2653
    %v2670 = vmul.f32 %v2640, %v2654
    %v2671 = vmul.f32 %v2648, %v2655
    %v2672 = vmul.f32 %v2641, %v2656
    %v2673 = vmul.f32 %v2649, %v2657
    %v2674 = vmul.f32 %v2642, %v2658
    %v2675 = vmul.f32 %v2650, %v2659
    %v2676 = vadd.f32 %v2586, %v2660
    %v2677 = vadd.f32 %v2587, %v2661
    %v2678 = vadd.f32 %v2588, %v2662
    %v2679 = vadd.f32 %v2589, %v2663
    %v2680 = vadd.f32 %v2590, %v2664
    %v2681 = vadd.f32 %v2591, %v2665
    %v2682 = vadd.f32 %v2592, %v2666
    %v2683 = vadd.f32 %v2593, %v2667
    %v2684 = vadd.f32 %v2594, %v2668
    %v2685 = vadd.f32 %v2595, %v2669
    %v2686 = vadd.f32 %v2596, %v2670
    %v2687 = vadd.f32 %v2597, %v2671
    %v2688 = vadd.f32 %v2598, %v2672
    %v2689 = vadd.f32 %v2599, %v2673
    %v2690 = vadd.f32 %v2600, %v2674
    %v2691 = vadd.f32 %v2601, %v2675
    %v2692 = vld [vmem:[%s1] sm:$0xff]
    %v2693 = vld [vmem:[%s1 + $0x8] sm:$0xff]
    %v2694 = vld [vmem:[%s1 + $0x10] sm:$0xff]
    %v2695 = vld [vmem:[%s1 + $0x18] sm:$0xff]
    %2697 = vset.pattern.permute.xlu0 0
    %2698 = vperm.xlu0 %2697, %v2692
    %v2699 = vpop.permute.xlu0 %2698
    %2702 = vset.pattern.permute.xlu0 0
    %2703 = vperm.xlu0 %2702, %v2693
    %v2704 = vpop.permute.xlu0 %2703
    %2707 = vset.pattern.permute.xlu0 0
    %2708 = vperm.xlu0 %2707, %v2694
    %v2709 = vpop.permute.xlu0 %2708
    %2712 = vset.pattern.permute.xlu0 0
    %2713 = vperm.xlu0 %2712, %v2695
    %v2714 = vpop.permute.xlu0 %2713
    %v2716 = vadd.f32 %v2095, %v2699
    %v2717 = vadd.f32 %v2096, %v2699
    %v2718 = vadd.f32 %v2097, %v2704
    %v2719 = vadd.f32 %v2098, %v2704
    %v2720 = vadd.f32 %v2099, %v2709
    %v2721 = vadd.f32 %v2100, %v2709
    %v2722 = vadd.f32 %v2101, %v2714
    %v2723 = vadd.f32 %v2102, %v2714
    %v2724 = vadd.f32 %v2103, %v2699
    %v2725 = vadd.f32 %v2104, %v2699
    %v2726 = vadd.f32 %v2105, %v2704
    %v2727 = vadd.f32 %v2106, %v2704
    %v2728 = vadd.f32 %v2107, %v2709
    %v2729 = vadd.f32 %v2108, %v2709
    %v2730 = vadd.f32 %v2109, %v2714
    %v2731 = vadd.f32 %v2110, %v2714
    %v2732 = vmax.f32 %v2716, 0.0
    %v2733 = vmax.f32 %v2717, 0.0
    %v2734 = vmax.f32 %v2718, 0.0
    %v2735 = vmax.f32 %v2719, 0.0
    %v2736 = vmax.f32 %v2720, 0.0
    %v2737 = vmax.f32 %v2721, 0.0
    %v2738 = vmax.f32 %v2722, 0.0
    %v2739 = vmax.f32 %v2723, 0.0
    %v2740 = vmax.f32 %v2724, 0.0
    %v2741 = vmax.f32 %v2725, 0.0
    %v2742 = vmax.f32 %v2726, 0.0
    %v2743 = vmax.f32 %v2727, 0.0
    %v2744 = vmax.f32 %v2728, 0.0
    %v2745 = vmax.f32 %v2729, 0.0
    %v2746 = vmax.f32 %v2730, 0.0
    %v2747 = vmax.f32 %v2731, 0.0
    %s2748 = scalar_lea.vmem %s1, 32
    %v2749 = vld [vmem:[%s2748] sm:$0xff]
    %v2750 = vld [vmem:[%s2748 + $0x8] sm:$0xff]
    %v2751 = vld [vmem:[%s2748 + $0x10] sm:$0xff]
    %v2752 = vld [vmem:[%s2748 + $0x18] sm:$0xff]
    %2754 = vset.pattern.permute.xlu0 0
    %2755 = vperm.xlu0 %2754, %v2749
    %v2756 = vpop.permute.xlu0 %2755
    %2759 = vset.pattern.permute.xlu0 0
    %2760 = vperm.xlu0 %2759, %v2750
    %v2761 = vpop.permute.xlu0 %2760
    %2764 = vset.pattern.permute.xlu0 0
    %2765 = vperm.xlu0 %2764, %v2751
    %v2766 = vpop.permute.xlu0 %2765
    %2769 = vset.pattern.permute.xlu0 0
    %2770 = vperm.xlu0 %2769, %v2752
    %v2771 = vpop.permute.xlu0 %2770
    %v2773 = vadd.f32 %v2676, %v2756
    %v2774 = vadd.f32 %v2677, %v2756
    %v2775 = vadd.f32 %v2678, %v2761
    %v2776 = vadd.f32 %v2679, %v2761
    %v2777 = vadd.f32 %v2680, %v2766
    %v2778 = vadd.f32 %v2681, %v2766
    %v2779 = vadd.f32 %v2682, %v2771
    %v2780 = vadd.f32 %v2683, %v2771
    %v2781 = vadd.f32 %v2684, %v2756
    %v2782 = vadd.f32 %v2685, %v2756
    %v2783 = vadd.f32 %v2686, %v2761
    %v2784 = vadd.f32 %v2687, %v2761
    %v2785 = vadd.f32 %v2688, %v2766
    %v2786 = vadd.f32 %v2689, %v2766
    %v2787 = vadd.f32 %v2690, %v2771
    %v2788 = vadd.f32 %v2691, %v2771
    %v2789 = vmax.f32 %v2773, 0.0
    %v2790 = vmax.f32 %v2774, 0.0
    %v2791 = vmax.f32 %v2775, 0.0
    %v2792 = vmax.f32 %v2776, 0.0
    %v2793 = vmax.f32 %v2777, 0.0
    %v2794 = vmax.f32 %v2778, 0.0
    %v2795 = vmax.f32 %v2779, 0.0
    %v2796 = vmax.f32 %v2780, 0.0
    %v2797 = vmax.f32 %v2781, 0.0
    %v2798 = vmax.f32 %v2782, 0.0
    %v2799 = vmax.f32 %v2783, 0.0
    %v2800 = vmax.f32 %v2784, 0.0
    %v2801 = vmax.f32 %v2785, 0.0
    %v2802 = vmax.f32 %v2786, 0.0
    %v2803 = vmax.f32 %v2787, 0.0
    %v2804 = vmax.f32 %v2788, 0.0
    %v2805 = vadd.f32 %v2732, %v2789
    %v2806 = vadd.f32 %v2733, %v2790
    %v2807 = vadd.f32 %v2734, %v2791
    %v2808 = vadd.f32 %v2735, %v2792
    %v2809 = vadd.f32 %v2736, %v2793
    %v2810 = vadd.f32 %v2737, %v2794
    %v2811 = vadd.f32 %v2738, %v2795
    %v2812 = vadd.f32 %v2739, %v2796
    %v2813 = vadd.f32 %v2740, %v2797
    %v2814 = vadd.f32 %v2741, %v2798
    %v2815 = vadd.f32 %v2742, %v2799
    %v2816 = vadd.f32 %v2743, %v2800
    %v2817 = vadd.f32 %v2744, %v2801
    %v2818 = vadd.f32 %v2745, %v2802
    %v2819 = vadd.f32 %v2746, %v2803
    %v2820 = vadd.f32 %v2747, %v2804
    %v2821 = vadd.f32 %v2805, %v2806
    %2822 = vadd.xlane.f32.xlu0 %v2821
    %v2823 = vpop.xlane.xlu0 %2822
    %v2824 = vadd.f32 %v2807, %v2808
    %2825 = vadd.xlane.f32.xlu0 %v2824
    %v2826 = vpop.xlane.xlu0 %2825
    %v2827 = vadd.f32 %v2809, %v2810
    %2828 = vadd.xlane.f32.xlu0 %v2827
    %v2829 = vpop.xlane.xlu0 %2828
    %v2830 = vadd.f32 %v2811, %v2812
    %2831 = vadd.xlane.f32.xlu0 %v2830
    %v2832 = vpop.xlane.xlu0 %2831
    %v2833 = vadd.f32 %v2813, %v2814
    %2834 = vadd.xlane.f32.xlu0 %v2833
    %v2835 = vpop.xlane.xlu0 %2834
    %v2836 = vadd.f32 %v2815, %v2816
    %2837 = vadd.xlane.f32.xlu0 %v2836
    %v2838 = vpop.xlane.xlu0 %2837
    %v2839 = vadd.f32 %v2817, %v2818
    %2840 = vadd.xlane.f32.xlu0 %v2839
    %v2841 = vpop.xlane.xlu0 %2840
    %v2842 = vadd.f32 %v2819, %v2820
    %2843 = vadd.xlane.f32.xlu0 %v2842
    %v2844 = vpop.xlane.xlu0 %2843
    %v2845 = vrcp.pop 256.0
    %v2846 = vmul.f32 %v2823, %v2845
    %v2847 = vmul.f32 %v2826, %v2845
    %v2848 = vmul.f32 %v2829, %v2845
    %v2849 = vmul.f32 %v2832, %v2845
    %v2850 = vmul.f32 %v2835, %v2845
    %v2851 = vmul.f32 %v2838, %v2845
    %v2852 = vmul.f32 %v2841, %v2845
    %v2853 = vmul.f32 %v2844, %v2845
    %v2854 = vld [vmem:[#allocation5] sm:$0xff]
    %v2855 = vld [vmem:[#allocation5 + $0x8] sm:$0xff]
    %v2856 = vld [vmem:[#allocation5 + $0x10] sm:$0xff]
    %v2857 = vld [vmem:[#allocation5 + $0x18] sm:$0xff]
    %v2858 = vld [vmem:[#allocation7] sm:$0x1]
    %v2860 = vlaneseq
    %v2861 = vshrl.u32 %v2860, 7
    %v2862 = vsub.s32 0, %v2861
    %v2863 = vrot.slane %v2858, %v2862
    %v2873 = vlaneseq
    %v2874 = vshrl.u32 %v2873, 7
    %v2875 = vsub.s32 %v154, %v2874
    %v2876 = vrot.slane %v2846, %v2875
    %v2877 = vadd.s32 %v154, 4294967288
    %v2878 = vlaneseq
    %v2879 = vshrl.u32 %v2878, 7
    %v2880 = vsub.s32 %v2877, %v2879
    %v2881 = vrot.slane %v2847, %v2880
    %vm2882 = vcmask 130112
    %v2883 = vsel %vm2882, %v2881, %v2876
    %v2884 = vadd.s32 %v154, 4294967280
    %v2885 = vlaneseq
    %v2886 = vshrl.u32 %v2885, 7
    %v2887 = vsub.s32 %v2884, %v2886
    %v2888 = vrot.slane %v2848, %v2887
    %vm2889 = vcmask 195712
    %v2890 = vsel %vm2889, %v2888, %v2883
    %v2891 = vadd.s32 %v154, 4294967272
    %v2892 = vlaneseq
    %v2893 = vshrl.u32 %v2892, 7
    %v2894 = vsub.s32 %v2891, %v2893
    %v2895 = vrot.slane %v2849, %v2894
    %vm2896 = vcmask 261312
    %v2897 = vsel %vm2896, %v2895, %v2890
    %v2898 = vlaneseq
    %v2899 = vshrl.u32 %v2898, 7
    %v2900 = vsub.s32 %v154, %v2899
    %v2901 = vrot.slane %v2850, %v2900
    %v2902 = vlaneseq
    %v2903 = vshrl.u32 %v2902, 7
    %v2904 = vsub.s32 %v2877, %v2903
    %v2905 = vrot.slane %v2851, %v2904
    %v2906 = vsel %vm2882, %v2905, %v2901
    %v2907 = vlaneseq
    %v2908 = vshrl.u32 %v2907, 7
    %v2909 = vsub.s32 %v2884, %v2908
    %v2910 = vrot.slane %v2852, %v2909
    %v2911 = vsel %vm2889, %v2910, %v2906
    %v2912 = vlaneseq
    %v2913 = vshrl.u32 %v2912, 7
    %v2914 = vsub.s32 %v2891, %v2913
    %v2915 = vrot.slane %v2853, %v2914
    %v2916 = vsel %vm2896, %v2915, %v2911
    %vm2917 = vcmask 1041409
    %v2918 = vsel %vm2917, %v2916, %v2897
    %vm2919 = vcmask 261120
    %v2920 = vsel %vm2919, %v2918, 0
    %2922 = vmatprep.subr.mxu0 0.0
    %2923 = vmatpush1.msra.mxu0 %v2854
    %2924 = vmatprep.subr.mxu0 0.0
    %2925 = vmatpush1.msra.mxu0 %v2855
    %2926 = vmatprep.subr.mxu0 0.0
    %2927 = vmatpush1.msra.mxu0 %v2856
    %2928 = vmatprep.subr.mxu0 0.0
    %2929 = vmatpush1.msra.mxu0 %v2857
    %2930 = vmatprep.subr.mxu0 0.0
    %2931 = vmatpush1.msra.mxu0 0.0
    %2932 = vmatprep.subr.mxu0 0.0
    %2933 = vmatpush1.msra.mxu0 0.0
    %2934 = vmatprep.subr.mxu0 0.0
    %2935 = vmatpush1.msra.mxu0 0.0
    %2936 = vmatprep.subr.mxu0 0.0
    %2937 = vmatpush1.msra.mxu0 0.0
    %2938 = vmatprep.subr.mxu0 0.0
    %2939 = vmatpush1.msra.mxu0 0.0
    %2940 = vmatprep.subr.mxu0 0.0
    %2941 = vmatpush1.msra.mxu0 0.0
    %2942 = vmatprep.subr.mxu0 0.0
    %2943 = vmatpush1.msra.mxu0 0.0
    %2944 = vmatprep.subr.mxu0 0.0
    %2945 = vmatpush1.msra.mxu0 0.0
    %2946 = vmatprep.subr.mxu0 0.0
    %2947 = vmatpush1.msra.mxu0 0.0
    %2948 = vmatprep.subr.mxu0 0.0
    %2949 = vmatpush1.msra.mxu0 0.0
    %2950 = vmatprep.subr.mxu0 0.0
    %2951 = vmatpush1.msra.mxu0 0.0
    %2952 = vmatprep.subr.mxu0 0.0
    %2953 = vmatpush1.msra.mxu0 0.0
    %2954 = vmatprep.subr.mxu0 0.0
    %2955 = vmatpush1.msra.mxu0 0.0
    %2956 = vmatprep.subr.mxu0 0.0
    %2957 = vmatpush1.msra.mxu0 0.0
    %2958 = vmatprep.subr.mxu0 0.0
    %2959 = vmatpush1.msra.mxu0 0.0
    %2960 = vmatprep.subr.mxu0 0.0
    %2961 = vmatpush1.msra.mxu0 0.0
    %2962 = vmatprep.subr.mxu0 0.0
    %2963 = vmatpush1.msra.mxu0 0.0
    %2964 = vmatprep.subr.mxu0 0.0
    %2965 = vmatpush1.msra.mxu0 0.0
    %2966 = vmatprep.subr.mxu0 0.0
    %2967 = vmatpush1.msra.mxu0 0.0
    %2968 = vmatprep.subr.mxu0 0.0
    %2969 = vmatpush1.msra.mxu0 0.0
    %2970 = vmatprep.subr.mxu0 0.0
    %2971 = vmatpush1.msra.mxu0 0.0
    %2972 = vmatprep.subr.mxu0 0.0
    %2973 = vmatpush1.msra.mxu0 0.0
    %2974 = vmatprep.subr.mxu0 0.0
    %2975 = vmatpush1.msra.mxu0 0.0
    %2976 = vmatprep.subr.mxu0 0.0
    %2977 = vmatpush1.msra.mxu0 0.0
    %2978 = vmatprep.subr.mxu0 0.0
    %2979 = vmatpush1.msra.mxu0 0.0
    %2980 = vmatprep.subr.mxu0 0.0
    %2981 = vmatpush1.msra.mxu0 0.0
    %2982 = vmatprep.subr.mxu0 0.0
    %2983 = vmatpush1.msra.mxu0 0.0
    %2984 = vmatprep.subr.mxu0 0.0
    %2985 = vmatpush1.msra.mxu0 0.0
    %2986 = vmatprep.mubr.f32.mxu0 0.0
    %2987 = vmatmul.mubr.f32.gmra.mrb[0].mxu0 %v2920
    %v2988 = vpop.f32.mrb[0].mxu0
    %v2989 = vadd.f32 %v2863, %v2988
    %v2990 = vpop.f32.mrb[0].mxu0
    %2991 = vdwg.mxu0
    %v2992 = vld [vmem:[#allocation8] sm:$0xff]
    %v2993 = vld [vmem:[#allocation8 + $0x8] sm:$0xff]
    %v2994 = vld [vmem:[#allocation8 + $0x10] sm:$0xff]
    %v2995 = vld [vmem:[#allocation8 + $0x18] sm:$0xff]
    %v2996 = vld [vmem:[#allocation10] sm:$0x1]
    %v2998 = vlaneseq
    %v2999 = vshrl.u32 %v2998, 7
    %v3000 = vsub.s32 0, %v2999
    %v3001 = vrot.slane %v2996, %v3000
    %v3004 = vsel %vm2919, %v2989, 0
    %3006 = vmatprep.subr.mxu0 0.0
    %3007 = vmatpush1.msra.mxu0 %v2992
    %3008 = vmatprep.subr.mxu0 0.0
    %3009 = vmatpush1.msra.mxu0 %v2993
    %3010 = vmatprep.subr.mxu0 0.0
    %3011 = vmatpush1.msra.mxu0 %v2994
    %3012 = vmatprep.subr.mxu0 0.0
    %3013 = vmatpush1.msra.mxu0 %v2995
    %3014 = vmatprep.subr.mxu0 0.0
    %3015 = vmatpush1.msra.mxu0 0.0
    %3016 = vmatprep.subr.mxu0 0.0
    %3017 = vmatpush1.msra.mxu0 0.0
    %3018 = vmatprep.subr.mxu0 0.0
    %3019 = vmatpush1.msra.mxu0 0.0
    %3020 = vmatprep.subr.mxu0 0.0
    %3021 = vmatpush1.msra.mxu0 0.0
    %3022 = vmatprep.subr.mxu0 0.0
    %3023 = vmatpush1.msra.mxu0 0.0
    %3024 = vmatprep.subr.mxu0 0.0
    %3025 = vmatpush1.msra.mxu0 0.0
    %3026 = vmatprep.subr.mxu0 0.0
    %3027 = vmatpush1.msra.mxu0 0.0
    %3028 = vmatprep.subr.mxu0 0.0
    %3029 = vmatpush1.msra.mxu0 0.0
    %3030 = vmatprep.subr.mxu0 0.0
    %3031 = vmatpush1.msra.mxu0 0.0
    %3032 = vmatprep.subr.mxu0 0.0
    %3033 = vmatpush1.msra.mxu0 0.0
    %3034 = vmatprep.subr.mxu0 0.0
    %3035 = vmatpush1.msra.mxu0 0.0
    %3036 = vmatprep.subr.mxu0 0.0
    %3037 = vmatpush1.msra.mxu0 0.0
    %3038 = vmatprep.subr.mxu0 0.0
    %3039 = vmatpush1.msra.mxu0 0.0
    %3040 = vmatprep.subr.mxu0 0.0
    %3041 = vmatpush1.msra.mxu0 0.0
    %3042 = vmatprep.subr.mxu0 0.0
    %3043 = vmatpush1.msra.mxu0 0.0
    %3044 = vmatprep.subr.mxu0 0.0
    %3045 = vmatpush1.msra.mxu0 0.0
    %3046 = vmatprep.subr.mxu0 0.0
    %3047 = vmatpush1.msra.mxu0 0.0
    %3048 = vmatprep.subr.mxu0 0.0
    %3049 = vmatpush1.msra.mxu0 0.0
    %3050 = vmatprep.subr.mxu0 0.0
    %3051 = vmatpush1.msra.mxu0 0.0
    %3052 = vmatprep.subr.mxu0 0.0
    %3053 = vmatpush1.msra.mxu0 0.0
    %3054 = vmatprep.subr.mxu0 0.0
    %3055 = vmatpush1.msra.mxu0 0.0
    %3056 = vmatprep.subr.mxu0 0.0
    %3057 = vmatpush1.msra.mxu0 0.0
    %3058 = vmatprep.subr.mxu0 0.0
    %3059 = vmatpush1.msra.mxu0 0.0
    %3060 = vmatprep.subr.mxu0 0.0
    %3061 = vmatpush1.msra.mxu0 0.0
    %3062 = vmatprep.subr.mxu0 0.0
    %3063 = vmatpush1.msra.mxu0 0.0
    %3064 = vmatprep.subr.mxu0 0.0
    %3065 = vmatpush1.msra.mxu0 0.0
    %3066 = vmatprep.subr.mxu0 0.0
    %3067 = vmatpush1.msra.mxu0 0.0
    %3068 = vmatprep.subr.mxu0 0.0
    %3069 = vmatpush1.msra.mxu0 0.0
    %3070 = vmatprep.mubr.f32.mxu0 0.0
    %3071 = vmatmul.mubr.f32.gmra.mrb[0].mxu0 %v3004
    %v3072 = vpop.f32.mrb[0].mxu0
    %v3073 = vadd.f32 %v3001, %v3072
    %v3074 = vpop.f32.mrb[0].mxu0
    %3075 = vdwg.mxu0
    %3077 = vrot.lane.b32.xlu0 %v3073, 96
    %v3078 = vpop.permute.xlu0 %3077
    %v3080 = vmax.f32 %v3073, %v3078
    %v3081 = vsub.f32 %v3073, %v3080
    %v3082 = vmul.f32 %v3081, 1.442695
    %v3083 = vpow.pop %v3082
    %3085 = vrot.lane.b32.xlu0 %v3080, 32
    %v3086 = vpop.permute.xlu0 %3085
    %v3088 = vsub.f32 %v3073, %v3086
    %v3089 = vmul.f32 %v3088, 1.442695
    %v3090 = vpow.pop %v3089
    %3092 = vrot.lane.b32.xlu0 %v3090, 96
    %v3093 = vpop.permute.xlu0 %3092
    %v3095 = vadd.f32 %v3083, %v3093
    %v3096 = vrcp.pop %v3095
    %v3097 = vmul.f32 1.0, %v3096
    %v3098 = vmul.f32 %v3083, %v3097
    %v3099 = vlaneseq
    %v3100 = vshrl.u32 %v3099, 7
    %v3101 = vsub.s32 0, %v3100
    %v3102 = vrot.slane %v3098, %v3101
    %3104 = vbcast.lane.b32.xlu0 %v3102, 256
    %v3105 = vpop.permute.xlu0 %3104
    %s3107 = sor.u32 256, 8
    %3108 = vbcast.lane.b32.xlu0 %v3102, %s3107
    %v3109 = vpop.permute.xlu0 %3108
    %s3111 = sor.u32 256, 16
    %3112 = vbcast.lane.b32.xlu0 %v3102, %s3111
    %v3113 = vpop.permute.xlu0 %3112
    %s3115 = sor.u32 256, 24
    %3116 = vbcast.lane.b32.xlu0 %v3102, %s3115
    %v3117 = vpop.permute.xlu0 %3116
    %v3118 = vlaneseq
    %v3119 = vshrl.u32 %v3118, 7
    %v3120 = vsub.s32 1, %v3119
    %v3121 = vrot.slane %v3098, %v3120
    %3123 = vbcast.lane.b32.xlu0 %v3121, 256
    %v3124 = vpop.permute.xlu0 %3123
    %s3126 = sor.u32 256, 8
    %3127 = vbcast.lane.b32.xlu0 %v3121, %s3126
    %v3128 = vpop.permute.xlu0 %3127
    %s3130 = sor.u32 256, 16
    %3131 = vbcast.lane.b32.xlu0 %v3121, %s3130
    %v3132 = vpop.permute.xlu0 %3131
    %s3134 = sor.u32 256, 24
    %3135 = vbcast.lane.b32.xlu0 %v3121, %s3134
    %v3136 = vpop.permute.xlu0 %3135
    %v3137 = vmul.f32 %v2732, %v3105
    %v3138 = vmul.f32 %v2733, %v3105
    %v3139 = vmul.f32 %v2734, %v3109
    %v3140 = vmul.f32 %v2735, %v3109
    %v3141 = vmul.f32 %v2736, %v3113
    %v3142 = vmul.f32 %v2737, %v3113
    %v3143 = vmul.f32 %v2738, %v3117
    %v3144 = vmul.f32 %v2739, %v3117
    %v3145 = vmul.f32 %v2740, %v3124
    %v3146 = vmul.f32 %v2741, %v3124
    %v3147 = vmul.f32 %v2742, %v3128
    %v3148 = vmul.f32 %v2743, %v3128
    %v3149 = vmul.f32 %v2744, %v3132
    %v3150 = vmul.f32 %v2745, %v3132
    %v3151 = vmul.f32 %v2746, %v3136
    %v3152 = vmul.f32 %v2747, %v3136
    %3154 = vrot.lane.b32.xlu0 %v3097, 32
    %v3155 = vpop.permute.xlu0 %3154
    %v3157 = vmul.f32 %v3090, %v3155
    %v3158 = vlaneseq
    %v3159 = vshrl.u32 %v3158, 7
    %v3160 = vsub.s32 0, %v3159
    %v3161 = vrot.slane %v3157, %v3160
    %s3163 = sor.u32 256, 32
    %3164 = vbcast.lane.b32.xlu0 %v3161, %s3163
    %v3165 = vpop.permute.xlu0 %3164
    %s3167 = sor.u32 256, 40
    %3168 = vbcast.lane.b32.xlu0 %v3161, %s3167
    %v3169 = vpop.permute.xlu0 %3168
    %s3171 = sor.u32 256, 48
    %3172 = vbcast.lane.b32.xlu0 %v3161, %s3171
    %v3173 = vpop.permute.xlu0 %3172
    %s3175 = sor.u32 256, 56
    %3176 = vbcast.lane.b32.xlu0 %v3161, %s3175
    %v3177 = vpop.permute.xlu0 %3176
    %v3178 = vlaneseq
    %v3179 = vshrl.u32 %v3178, 7
    %v3180 = vsub.s32 1, %v3179
    %v3181 = vrot.slane %v3157, %v3180
    %s3183 = sor.u32 256, 32
    %3184 = vbcast.lane.b32.xlu0 %v3181, %s3183
    %v3185 = vpop.permute.xlu0 %3184
    %s3187 = sor.u32 256, 40
    %3188 = vbcast.lane.b32.xlu0 %v3181, %s3187
    %v3189 = vpop.permute.xlu0 %3188
    %s3191 = sor.u32 256, 48
    %3192 = vbcast.lane.b32.xlu0 %v3181, %s3191
    %v3193 = vpop.permute.xlu0 %3192
    %s3195 = sor.u32 256, 56
    %3196 = vbcast.lane.b32.xlu0 %v3181, %s3195
    %v3197 = vpop.permute.xlu0 %3196
    %v3198 = vmul.f32 %v2789, %v3165
    %v3199 = vmul.f32 %v2790, %v3165
    %v3200 = vmul.f32 %v2791, %v3169
    %v3201 = vmul.f32 %v2792, %v3169
    %v3202 = vmul.f32 %v2793, %v3173
    %v3203 = vmul.f32 %v2794, %v3173
    %v3204 = vmul.f32 %v2795, %v3177
    %v3205 = vmul.f32 %v2796, %v3177
    %v3206 = vmul.f32 %v2797, %v3185
    %v3207 = vmul.f32 %v2798, %v3185
    %v3208 = vmul.f32 %v2799, %v3189
    %v3209 = vmul.f32 %v2800, %v3189
    %v3210 = vmul.f32 %v2801, %v3193
    %v3211 = vmul.f32 %v2802, %v3193
    %v3212 = vmul.f32 %v2803, %v3197
    %v3213 = vmul.f32 %v2804, %v3197
    %v3214 = vadd.f32 %v3137, %v3198
    %v3215 = vadd.f32 %v3138, %v3199
    %v3216 = vadd.f32 %v3139, %v3200
    %v3217 = vadd.f32 %v3140, %v3201
    %v3218 = vadd.f32 %v3141, %v3202
    %v3219 = vadd.f32 %v3142, %v3203
    %v3220 = vadd.f32 %v3143, %v3204
    %v3221 = vadd.f32 %v3144, %v3205
    %v3222 = vadd.f32 %v3145, %v3206
    %v3223 = vadd.f32 %v3146, %v3207
    %v3224 = vadd.f32 %v3147, %v3208
    %v3225 = vadd.f32 %v3148, %v3209
    %v3226 = vadd.f32 %v3149, %v3210
    %v3227 = vadd.f32 %v3150, %v3211
    %v3228 = vadd.f32 %v3151, %v3212
    %v3229 = vadd.f32 %v3152, %v3213
    %3230 = vst [vmem:[#allocation13] sm:$0xff] %v3214
    %3231 = vst [vmem:[#allocation13 + $0x8] sm:$0xff] %v3215
    %3232 = vst [vmem:[#allocation13 + $0x10] sm:$0xff] %v3216
    %3233 = vst [vmem:[#allocation13 + $0x18] sm:$0xff] %v3217
    %3234 = vst [vmem:[#allocation13 + $0x20] sm:$0xff] %v3218
    %3235 = vst [vmem:[#allocation13 + $0x28] sm:$0xff] %v3219
    %3236 = vst [vmem:[#allocation13 + $0x30] sm:$0xff] %v3220
    %3237 = vst [vmem:[#allocation13 + $0x38] sm:$0xff] %v3221
    %3238 = vst [vmem:[#allocation13 + $0x40] sm:$0xff] %v3222
    %3239 = vst [vmem:[#allocation13 + $0x48] sm:$0xff] %v3223
    %3240 = vst [vmem:[#allocation13 + $0x50] sm:$0xff] %v3224
    %3241 = vst [vmem:[#allocation13 + $0x58] sm:$0xff] %v3225
    %3242 = vst [vmem:[#allocation13 + $0x60] sm:$0xff] %v3226
    %3243 = vst [vmem:[#allocation13 + $0x68] sm:$0xff] %v3227
    %3244 = vst [vmem:[#allocation13 + $0x70] sm:$0xff] %v3228
    %3245 = vst [vmem:[#allocation13 + $0x78] sm:$0xff] %v3229
    // Predicated region
    $region54: #{tpu_custom_call.1} parent=1 // pred_check
      _
    $region55: #{tpu_custom_call.1} parent=1 // pred_check_branch
      %3247 = sbr.rel (0) target = $region57
    $region56: #{tpu_custom_call.1} parent=1 // pred_region
      %s3249 = ssub.s32 2048, 2048
      %3250 = vsyncadd [#allocation4], %s3249
      %s3251 = sshll.u32 [#allocation13], 4
      %s3252 = int_to_ptr.vmem [resolvable:$true] %s3251
      %3257 = dma.vmem_to_hbm [thread:$0]  %s3252, 2048, %s7, [#allocation4], 256, 256, 16
    $region57: #{tpu_custom_call.1} parent=1 // pred_fallthru
      _
    // Predicated region
    $region58: #{tpu_custom_call.1} parent=1 // pred_check
      _
    $region59: #{tpu_custom_call.1} parent=1 // pred_check_branch
      %3259 = sbr.rel (0) target = $region61
    $region60: #{tpu_custom_call.1} parent=1 // pred_region
      %3260 = dma.done [#allocation4], 2048
    $region61: #{tpu_custom_call.1} parent=1 // pred_fallthru
      _
    %3261 = vsyncpa [#allocation3], 1
    %3262 = vsyncpa [#allocation6], 1
    %3263 = vsyncpa [#allocation9], 1
    %3264 = vsyncpa [#allocation12], 1
    %3265 = vsyncpa [#allocation4], 1

</llo_original>
